<compile_context>
chip_gen: v7x
topology: tpu7x:2x2x1
jax: 0.10.0
libtpu: 0.0.40
codegen_flags: <defaults>
</compile_context>

<pallas_src>
import functools

import jax
import jax.numpy as jnp
from jax import lax
from jax.experimental import pallas as pl
from jax.experimental.pallas import tpu as pltpu


def _round_up(x, m):
    return ((x + m - 1) // m) * m


def resnet_block_kernel(*refs, H, W, WPP, K1, eps, has_skip):
    if has_skip:
        (x_ref, n1w_ref, n1b_ref, g1a_ref, g1b_ref, w1_ref, c1b_ref,
         n2w_ref, n2b_ref, g2a_ref, g2b_ref, w2_ref, c2b_ref,
         wsk_ref, gam_ref, o_ref, pad1_ref, pad2_ref) = refs
    else:
        (x_ref, n1w_ref, n1b_ref, g1a_ref, g1b_ref, w1_ref, c1b_ref,
         n2w_ref, n2b_ref, g2a_ref, g2b_ref, w2_ref, c2b_ref,
         gam_ref, o_ref, pad1_ref, pad2_ref) = refs
        wsk_ref = None

    f32 = jnp.float32
    Cin = x_ref.shape[1]
    Cp = o_ref.shape[1]                 # Cout padded to a multiple of 128
    RC = K1 * WPP                       # rows per conv chunk (top-left coords)
    RX = K1 * W                         # matching compact rows per chunk
    NCH = H // K1                       # number of row chunks
    ROWS = pad1_ref.shape[0]
    rx_aligned = (RX % 8 == 0)
    w_aligned = (W % 8 == 0)

    def ds8(start, size, aligned=True):
        # Dynamic slice with an alignment hint where statically provable.
        if aligned:
            start = pl.multiple_of(start, 8)
        return pl.ds(start, size)

    def silu(z):
        # z * sigmoid(z) = 0.5 * z * (1 + tanh(z/2)); tanh runs on the EUP slot.
        return 0.5 * z * (1.0 + jnp.tanh(0.5 * z))

    def finalize_gn(s1, s2, ga_ref, gb_ref, w_ref, b_ref):
        # Per-channel affine (scale, shift) from the masked sums: y = v*scale+shift.
        mean = jnp.dot(jnp.dot(s1, ga_ref[...], preferred_element_type=f32),
                       gb_ref[...], preferred_element_type=f32)
        ex2 = jnp.dot(jnp.dot(s2, ga_ref[...], preferred_element_type=f32),
                      gb_ref[...], preferred_element_type=f32)
        rstd = lax.rsqrt(ex2 - mean * mean + eps)
        scale = rstd * w_ref[...]
        return scale, b_ref[...] - mean * scale

    # ---- zero the padding stripes (top/head and bottom/tail) of both scratches.
    # Re-done every grid step (tiny) so the batch axis can stay "parallel".
    head = WPP + 8
    tail = (H + 1) * WPP + 8
    pad1_ref[0:head, :] = jnp.zeros((head, Cin), f32)
    pad1_ref[tail:ROWS, :] = jnp.zeros((ROWS - tail, Cin), f32)
    pad2_ref[0:head, :] = jnp.zeros((head, Cp), f32)
    pad2_ref[tail:ROWS, :] = jnp.zeros((ROWS - tail, Cp), f32)

    # ---- GroupNorm1 statistics (single pass; every compact row is a valid pixel).
    def gn1_stats(c, carry):
        s1, s2 = carry
        xc = x_ref[ds8(c * RX, RX, rx_aligned), :]
        return (s1 + jnp.sum(xc, axis=0, keepdims=True),
                s2 + jnp.sum(xc * xc, axis=0, keepdims=True))

    s1, s2 = lax.fori_loop(0, NCH, gn1_stats,
                           (jnp.zeros((1, Cin), f32), jnp.zeros((1, Cin), f32)))
    scale1, shift1 = finalize_gn(s1, s2, g1a_ref, g1b_ref, n1w_ref, n1b_ref)

    # ---- GroupNorm1 apply + SiLU, scattered into the padded conv1 input layout:
    # pixel (i, j) lives at pad row (i+1)*WPP + j + 8 (8-aligned stripe starts).
    gap_zeros1 = jnp.zeros((WPP - W, Cin), f32)

    def gn1_apply(c, carry):
        h = silu(x_ref[ds8(c * RX, RX, rx_aligned), :] * scale1 + shift1)
        for li in range(K1):
            dst = (c * K1 + li + 1) * WPP + 8
            pad1_ref[ds8(dst, W), :] = h[li * W:(li + 1) * W, :]
            pad1_ref[ds8(dst + W, WPP - W, w_aligned), :] = gap_zeros1
        return carry

    lax.fori_loop(0, NCH, gn1_apply, 0)

    # ---- conv1: 9 shifted contiguous matmuls per row chunk (bf16 -> f32 acc),
    # masked write of the raw conv1 output into pad2 + GroupNorm2 running sums.
    c1b = c1b_ref[...]

    def conv1_chunk(c, carry):
        s1b, s2b = carry
        base = pl.multiple_of(c * RC, 8)
        acc = jnp.zeros((RC, Cp), f32)
        for t in range(9):
            dy, dx = divmod(t, 3)
            lhs = pad1_ref[ds8(base + dy * WPP + dx + 7, RC, dx == 1), :]
            acc = acc + jnp.dot(lhs.astype(jnp.bfloat16), w1_ref[t],
                                preferred_element_type=f32)
        # Zero the rows that are not valid top-left coordinates (j >= W) so pad2
        # keeps correct zero padding and the GN2 sums only see valid pixels.
        ri = lax.broadcasted_iota(jnp.int32, (RC, Cp), 0)
        valid = functools.reduce(
            jnp.logical_or,
            [(ri >= li * WPP) & (ri < li * WPP + W) for li in range(K1)])
        acc = jnp.where(valid, acc + c1b, 0.0)
        pad2_ref[ds8(base + WPP + 8, RC), :] = acc
        return (s1b + jnp.sum(acc, axis=0, keepdims=True),
                s2b + jnp.sum(acc * acc, axis=0, keepdims=True))

    s1b, s2b = lax.fori_loop(0, NCH, conv1_chunk,
                             (jnp.zeros((1, Cp), f32), jnp.zeros((1, Cp), f32)))
    scale2, shift2 = finalize_gn(s1b, s2b, g2a_ref, g2b_ref, n2w_ref, n2b_ref)

    # ---- GroupNorm2 apply + SiLU in place on the valid pixel rows of pad2 (the
    # zero-padding rows stay zero).  Dropout(p=0.0) is the identity.
    def gn2_apply(c, carry):
        for li in range(K1):
            dst = (c * K1 + li + 1) * WPP + 8
            v = pad2_ref[ds8(dst, W), :]
            pad2_ref[ds8(dst, W), :] = silu(v * scale2 + shift2)
        return carry

    lax.fori_loop(0, NCH, gn2_apply, 0)

    # ---- conv2 + 1x1 skip + residual scale; compact, lane-dense output stores.
    c2b = c2b_ref[...]
    gam = gam_ref[...]

    def conv2_chunk(c, carry):
        base = pl.multiple_of(c * RC, 8)
        acc = jnp.zeros((RC, Cp), f32)
        for t in range(9):
            dy, dx = divmod(t, 3)
            lhs = pad2_ref[ds8(base + dy * WPP + dx + 7, RC, dx == 1), :]
            acc = acc + jnp.dot(lhs.astype(jnp.bfloat16), w2_ref[t],
                                preferred_element_type=f32)
        acc = acc + c2b
        xs = x_ref[ds8(c * RX, RX, rx_aligned), :]
        if has_skip:
            skip = jnp.dot(xs.astype(jnp.bfloat16), wsk_ref[...],
                           preferred_element_type=f32)
        elif Cin == Cp:
            skip = xs                           # identity skip, no matmul
        else:
            skip = jnp.concatenate([xs, jnp.zeros((RX, Cp - Cin), f32)], axis=-1)
        for li in range(K1):
            out_blk = (skip[li * W:(li + 1) * W, :]
                       + acc[li * WPP:li * WPP + W, :] * gam)
            o_ref[ds8((c * K1 + li) * W, W, w_aligned), :] = out_blk.astype(o_ref.dtype)
        return carry

    lax.fori_loop(0, NCH, conv2_chunk, 0)


def resnet_block_2d(x_nchw, params, *, groups, eps=1e-6):
    """ResNetBlock2D forward.  x_nchw: (N, Cin, H, W) f32 -> (N, Cout, H, W) f32."""
    N, Cin, H, W = x_nchw.shape
    Cout = params["conv1_w"].shape[0]
    P = H * W
    assert Cin % groups == 0 and Cout % groups == 0
    assert P % 8 == 0, "H*W must be a multiple of 8"

    Cp = _round_up(Cout, 128)            # lane-dense output channels
    WPP = _round_up(W + 2, 8)            # 8-aligned padded row width
    ROWS = (H + 2) * WPP + 16            # padded rows + tail margin for tap reads
    K1 = 1                               # image rows per conv row chunk
    for k in range(1, H + 1):
        if H % k == 0 and k * WPP <= 128:
            K1 = k
    has_skip = "skip_w" in params

    # NCHW -> compact flat NHWC rows (channels on lanes).  The padded conv layout
    # is built inside the kernel (no padded HBM copy of the activations).
    # TODO(synk): keep activations in this flat NHWC layout across layers so the
    # wrapper transposes don't cost an extra HBM round trip per block.
    x_flat = jnp.transpose(x_nchw, (0, 2, 3, 1)).reshape(N * P, Cin)
    x_flat = x_flat.astype(jnp.float32)

    # Small per-group averaging / broadcast matrices (padded channels unmapped).
    def group_mats(C, C_pad):
        cg = C // groups
        onehot = (jnp.arange(C)[:, None] // cg ==
                  jnp.arange(groups)[None, :]).astype(jnp.float32)
        onehot = jnp.pad(onehot, ((0, C_pad - C), (0, 0)))
        return onehot / float(P * cg), onehot.T        # (C_pad, G), (G, C_pad)

    g1a, g1b = group_mats(Cin, Cin)
    g2a, g2b = group_mats(Cout, Cp)

    def padc(v):
        return jnp.pad(v, (0, Cp - Cout))

    # Conv weights: OIHW -> tap-major (9, K, Cout_p) bf16 for the MXU.
    w1 = jnp.transpose(params["conv1_w"], (2, 3, 1, 0)).reshape(9, Cin, Cout)
    w1 = jnp.pad(w1, ((0, 0), (0, 0), (0, Cp - Cout))).astype(jnp.bfloat16)
    w2 = jnp.transpose(params["conv2_w"], (2, 3, 1, 0)).reshape(9, Cout, Cout)
    w2 = jnp.pad(w2, ((0, 0), (0, Cp - Cout), (0, Cp - Cout))).astype(jnp.bfloat16)

    n1w = params["norm1_w"].reshape(1, Cin).astype(jnp.float32)
    n1b = params["norm1_b"].reshape(1, Cin).astype(jnp.float32)
    n2w = padc(params["norm2_w"]).reshape(1, Cp).astype(jnp.float32)
    n2b = padc(params["norm2_b"]).reshape(1, Cp).astype(jnp.float32)
    c1b = padc(params["conv1_b"]).reshape(1, Cp).astype(jnp.float32)
    c2b = padc(params["conv2_b"]).reshape(1, Cp).astype(jnp.float32)
    gam = params["gamma"].reshape(1, 1).astype(jnp.float32)

    args = [x_flat, n1w, n1b, g1a, g1b, w1, c1b, n2w, n2b, g2a, g2b, w2, c2b]
    if has_skip:
        wsk = jnp.transpose(params["skip_w"][:, :, 0, 0], (1, 0))      # (Cin, Cout)
        wsk = jnp.pad(wsk, ((0, 0), (0, Cp - Cout))).astype(jnp.bfloat16)
        args.append(wsk)
    args.append(gam)

    def full_spec(a):
        return pl.BlockSpec(a.shape, lambda n, _nd=a.ndim: (0,) * _nd)

    in_specs = ([pl.BlockSpec((P, Cin), lambda n: (n, 0))]
                + [full_spec(a) for a in args[1:]])

    kernel = functools.partial(resnet_block_kernel, H=H, W=W, WPP=WPP, K1=K1,
                               eps=eps, has_skip=has_skip)

    flops = 2 * N * P * (9 * Cin * Cp + 9 * Cp * Cp
                         + (Cin * Cp if has_skip else 0))
    cost = pl.CostEstimate(
        flops=int(flops),
        transcendentals=int(N * P * (Cin + Cp)),
        bytes_accessed=int(4 * N * P * (Cin + Cp) + 2 * (w1.size + w2.size)))

    out_flat = pl.pallas_call(
        kernel,
        out_shape=jax.ShapeDtypeStruct((N * P, Cp), jnp.float32),
        grid_spec=pltpu.PrefetchScalarGridSpec(
            num_scalar_prefetch=0,
            grid=(N,),
            in_specs=in_specs,
            out_specs=pl.BlockSpec((P, Cp), lambda n: (n, 0)),
            scratch_shapes=[
                pltpu.VMEM((ROWS, Cin), jnp.float32),   # padded conv1 input
                pltpu.VMEM((ROWS, Cp), jnp.float32),    # padded conv2 input
            ],
        ),
        compiler_params=pltpu.CompilerParams(
            dimension_semantics=("parallel",),
            vmem_limit_bytes=32 * 1024 * 1024,
        ),
        cost_estimate=cost,
    )(*args)

    out = out_flat.reshape(N, H, W, Cp)[..., :Cout]
    return jnp.transpose(out, (0, 3, 1, 2))             # back to NCHW


# ---------------- pure-JAX reference (matches PyTorch semantics) ----------------
def reference_forward(x, params, *, groups, eps=1e-6):
    def gn(y, w, b):
        N, C, H, W = y.shape
        yg = y.reshape(N, groups, C // groups, H, W)
        mean = yg.mean(axis=(2, 3, 4), keepdims=True)
        var = ((yg - mean) ** 2).mean(axis=(2, 3, 4), keepdims=True)
        yn = ((yg - mean) / jnp.sqrt(var + eps)).reshape(N, C, H, W)
        return yn * w[None, :, None, None] + b[None, :, None, None]

    def swish(y):
        return y * jax.nn.sigmoid(y)

    def conv(y, w, b, pad):
        out = lax.conv_general_dilated(y, w, (1, 1), [(pad, pad), (pad, pad)],
                                       dimension_numbers=("NCHW", "OIHW", "NCHW"))
        return out if b is None else out + b[None, :, None, None]

    skip = conv(x, params["skip_w"], None, 0) if "skip_w" in params else x
    h = conv(swish(gn(x, params["norm1_w"], params["norm1_b"])),
             params["conv1_w"], params["conv1_b"], 1)
    h = conv(swish(gn(h, params["norm2_w"], params["norm2_b"])),
             params["conv2_w"], params["conv2_b"], 1)
    return skip + h * params["gamma"].reshape(1, 1, 1, 1)


if __name__ == "__main__":
    # in_channels != out_channels so the 1x1 skip conv path is exercised;
    # groups divides both channel counts.
    N, Cin, Cout, H, W = 2, 32, 64, 16, 16
    groups, eps = 8, 1e-6

    key = jax.random.PRNGKey(0)
    ks = jax.random.split(key, 10)

    params = {
        "norm1_w": 1.0 + 0.1 * jax.random.normal(ks[0], (Cin,), jnp.float32),
        "norm1_b": 0.1 * jax.random.normal(ks[1], (Cin,), jnp.float32),
        "conv1_w": 0.1 * jax.random.normal(ks[2], (Cout, Cin, 3, 3), jnp.float32),
        "conv1_b": 0.1 * jax.random.normal(ks[3], (Cout,), jnp.float32),
        "norm2_w": 1.0 + 0.1 * jax.random.normal(ks[4], (Cout,), jnp.float32),
        "norm2_b": 0.1 * jax.random.normal(ks[5], (Cout,), jnp.float32),
        "conv2_w": 0.1 * jax.random.normal(ks[6], (Cout, Cout, 3, 3), jnp.float32),
        "conv2_b": 0.1 * jax.random.normal(ks[7], (Cout,), jnp.float32),
        "skip_w": 0.1 * jax.random.normal(ks[8], (Cout, Cin, 1, 1), jnp.float32),
        "gamma": jnp.ones((1,), jnp.float32),   # residual_scale_init = 1.0
    }

    x = jax.random.normal(ks[9], (N, Cin, H, W), jnp.float32)

    fwd = jax.jit(functools.partial(resnet_block_2d, groups=groups, eps=eps))
    out = jax.block_until_ready(fwd(x, params))

    ref = reference_forward(x, params, groups=groups, eps=eps)
    assert out.shape == (N, Cout, H, W), out.shape
    # bf16 MXU matmuls (f32 accumulation) -> expect a few 1e-2 absolute deviation.
    err = float(jnp.max(jnp.abs(out - ref)))
    assert jnp.allclose(out, ref, rtol=5e-2, atol=5e-2), err

    print("KERNEL_OK")
</pallas_src>

<mosaic_0001>
module attributes {stable_mosaic.version = 11 : i64} {
  func.func @resnet_block_kernel(%arg0: i32, %arg1: memref<256x32xf32, #tpu.memory_space<vmem>>, %arg2: memref<1x32xf32, #tpu.memory_space<vmem>>, %arg3: memref<1x32xf32, #tpu.memory_space<vmem>>, %arg4: memref<32x8xf32, #tpu.memory_space<vmem>>, %arg5: memref<8x32xf32, #tpu.memory_space<vmem>>, %arg6: memref<9x32x128xbf16, #tpu.memory_space<vmem>>, %arg7: memref<1x128xf32, #tpu.memory_space<vmem>>, %arg8: memref<1x128xf32, #tpu.memory_space<vmem>>, %arg9: memref<1x128xf32, #tpu.memory_space<vmem>>, %arg10: memref<128x8xf32, #tpu.memory_space<vmem>>, %arg11: memref<8x128xf32, #tpu.memory_space<vmem>>, %arg12: memref<9x128x128xbf16, #tpu.memory_space<vmem>>, %arg13: memref<1x128xf32, #tpu.memory_space<vmem>>, %arg14: memref<32x128xbf16, #tpu.memory_space<vmem>>, %arg15: memref<1x1xf32, #tpu.memory_space<vmem>>, %arg16: memref<256x128xf32, #tpu.memory_space<vmem>>, %arg17: memref<448x32xf32, #tpu.memory_space<vmem>>, %arg18: memref<448x128xf32, #tpu.memory_space<vmem>>) attributes {dimension_semantics = [#tpu.dimension_semantics<parallel>], iteration_bounds = array<i64: 2>, scalar_prefetch = 0 : i64, scratch_operands = 2 : i64, tpu.core_type = #tpu.core_type<tc>, window_params = [{transform_indices = @transform_0, window_bounds = array<i64: 256, 32>}, {pipeline_mode = #tpu.pipeline_mode<synchronous>, transform_indices = @transform_1, window_bounds = array<i64: 1, 32>}, {pipeline_mode = #tpu.pipeline_mode<synchronous>, transform_indices = @transform_2, window_bounds = array<i64: 1, 32>}, {pipeline_mode = #tpu.pipeline_mode<synchronous>, transform_indices = @transform_3, window_bounds = array<i64: 32, 8>}, {pipeline_mode = #tpu.pipeline_mode<synchronous>, transform_indices = @transform_4, window_bounds = array<i64: 8, 32>}, {pipeline_mode = #tpu.pipeline_mode<synchronous>, transform_indices = @transform_5, window_bounds = array<i64: 9, 32, 128>}, {pipeline_mode = #tpu.pipeline_mode<synchronous>, transform_indices = @transform_6, window_bounds = array<i64: 1, 128>}, {pipeline_mode = #tpu.pipeline_mode<synchronous>, transform_indices = @transform_7, window_bounds = array<i64: 1, 128>}, {pipeline_mode = #tpu.pipeline_mode<synchronous>, transform_indices = @transform_8, window_bounds = array<i64: 1, 128>}, {pipeline_mode = #tpu.pipeline_mode<synchronous>, transform_indices = @transform_9, window_bounds = array<i64: 128, 8>}, {pipeline_mode = #tpu.pipeline_mode<synchronous>, transform_indices = @transform_10, window_bounds = array<i64: 8, 128>}, {pipeline_mode = #tpu.pipeline_mode<synchronous>, transform_indices = @transform_11, window_bounds = array<i64: 9, 128, 128>}, {pipeline_mode = #tpu.pipeline_mode<synchronous>, transform_indices = @transform_12, window_bounds = array<i64: 1, 128>}, {pipeline_mode = #tpu.pipeline_mode<synchronous>, transform_indices = @transform_13, window_bounds = array<i64: 32, 128>}, {pipeline_mode = #tpu.pipeline_mode<synchronous>, transform_indices = @transform_14, window_bounds = array<i64: 1, 1>}, {transform_indices = @transform_15, window_bounds = array<i64: 256, 128>}]} {
    %cst = arith.constant 0.000000e+00 : f32
    %0 = vector.broadcast %cst : f32 to vector<32x32xf32>
    %c0 = arith.constant 0 : index
    %c0_0 = arith.constant 0 : index
    %1 = vector.load %arg17[%c0, %c0_0] : memref<448x32xf32, #tpu.memory_space<vmem>>, vector<32x32xf32>
    tpu.vector_store %arg17[%c0, %c0_0], %0 {strides = array<i32>} : memref<448x32xf32, #tpu.memory_space<vmem>>, vector<32x32xf32>,
    %cst_1 = arith.constant 0.000000e+00 : f32
    %2 = vector.broadcast %cst_1 : f32 to vector<32x32xf32>
    %c416 = arith.constant 416 : index
    %c0_2 = arith.constant 0 : index
    %3 = vector.load %arg17[%c416, %c0_2] : memref<448x32xf32, #tpu.memory_space<vmem>>, vector<32x32xf32>
    tpu.vector_store %arg17[%c416, %c0_2], %2 {strides = array<i32>} : memref<448x32xf32, #tpu.memory_space<vmem>>, vector<32x32xf32>,
    %cst_3 = arith.constant 0.000000e+00 : f32
    %4 = vector.broadcast %cst_3 : f32 to vector<32x128xf32>
    %c0_4 = arith.constant 0 : index
    %c0_5 = arith.constant 0 : index
    %5 = vector.load %arg18[%c0_4, %c0_5] : memref<448x128xf32, #tpu.memory_space<vmem>>, vector<32x128xf32>
    tpu.vector_store %arg18[%c0_4, %c0_5], %4 {strides = array<i32>} : memref<448x128xf32, #tpu.memory_space<vmem>>, vector<32x128xf32>,
    %cst_6 = arith.constant 0.000000e+00 : f32
    %6 = vector.broadcast %cst_6 : f32 to vector<32x128xf32>
    %c416_7 = arith.constant 416 : index
    %c0_8 = arith.constant 0 : index
    %7 = vector.load %arg18[%c416_7, %c0_8] : memref<448x128xf32, #tpu.memory_space<vmem>>, vector<32x128xf32>
    tpu.vector_store %arg18[%c416_7, %c0_8], %6 {strides = array<i32>} : memref<448x128xf32, #tpu.memory_space<vmem>>, vector<32x128xf32>,
    %cst_9 = arith.constant 0.000000e+00 : f32
    %8 = vector.broadcast %cst_9 : f32 to vector<1x32xf32>
    %cst_10 = arith.constant 0.000000e+00 : f32
    %9 = vector.broadcast %cst_10 : f32 to vector<1x32xf32>
    %c0_i32 = arith.constant 0 : i32
    %c4_i32 = arith.constant 4 : i32
    %10 = arith.addi %c0_i32, %c4_i32 : i32
    %c1_i32 = arith.constant 1 : i32
    %11:2 = scf.for %arg19 = %c0_i32 to %10 step %c1_i32 iter_args(%arg20 = %8, %arg21 = %9) -> (vector<1x32xf32>, vector<1x32xf32>)  : i32 {
      %c64_i32 = arith.constant 64 : i32
      %59 = arith.muli %arg19, %c64_i32 : i32
      %60 = tpu.assume_multiple %59, 8 : i32
      %61 = arith.index_cast %60 : i32 to index
      %c0_71 = arith.constant 0 : index
      %62 = vector.load %arg1[%61, %c0_71] : memref<256x32xf32, #tpu.memory_space<vmem>>, vector<64x32xf32>
      %cst_72 = arith.constant dense<0.000000e+00> : vector<32xf32>
      %63 = vector.multi_reduction <add>, %62, %cst_72 [0] : vector<64x32xf32> to vector<32xf32>
      %64 = vector.shape_cast %63 : vector<32xf32> to vector<1x32xf32>
      %65 = arith.addf %arg20, %64 : vector<1x32xf32>
      %66 = arith.mulf %62, %62 : vector<64x32xf32>
      %cst_73 = arith.constant dense<0.000000e+00> : vector<32xf32>
      %67 = vector.multi_reduction <add>, %66, %cst_73 [0] : vector<64x32xf32> to vector<32xf32>
      %68 = vector.shape_cast %67 : vector<32xf32> to vector<1x32xf32>
      %69 = arith.addf %arg21, %68 : vector<1x32xf32>
      scf.yield %65, %69 : vector<1x32xf32>, vector<1x32xf32>
    }
    %c4_i32_11 = arith.constant 4 : i32
    %c0_12 = arith.constant 0 : index
    %c0_13 = arith.constant 0 : index
    %12 = vector.load %arg4[%c0_12, %c0_13] : memref<32x8xf32, #tpu.memory_space<vmem>>, vector<32x8xf32>
    %cst_14 = arith.constant dense<0.000000e+00> : vector<1x8xf32>
    %13 = tpu.matmul %11#0, %12, %cst_14 {dimension_numbers = #tpu.dot_dimension_numbers<[1], [0], [0], [1], [0, 0, 1, 1], [], []>} : vector<1x32xf32>, vector<32x8xf32>, vector<1x8xf32> -> vector<1x8xf32>
    %c0_15 = arith.constant 0 : index
    %c0_16 = arith.constant 0 : index
    %14 = vector.load %arg5[%c0_15, %c0_16] : memref<8x32xf32, #tpu.memory_space<vmem>>, vector<8x32xf32>
    %cst_17 = arith.constant dense<0.000000e+00> : vector<1x32xf32>
    %15 = tpu.matmul %13, %14, %cst_17 {dimension_numbers = #tpu.dot_dimension_numbers<[1], [0], [0], [1], [0, 0, 1, 1], [], []>} : vector<1x8xf32>, vector<8x32xf32>, vector<1x32xf32> -> vector<1x32xf32>
    %c0_18 = arith.constant 0 : index
    %c0_19 = arith.constant 0 : index
    %16 = vector.load %arg4[%c0_18, %c0_19] : memref<32x8xf32, #tpu.memory_space<vmem>>, vector<32x8xf32>
    %cst_20 = arith.constant dense<0.000000e+00> : vector<1x8xf32>
    %17 = tpu.matmul %11#1, %16, %cst_20 {dimension_numbers = #tpu.dot_dimension_numbers<[1], [0], [0], [1], [0, 0, 1, 1], [], []>} : vector<1x32xf32>, vector<32x8xf32>, vector<1x8xf32> -> vector<1x8xf32>
    %c0_21 = arith.constant 0 : index
    %c0_22 = arith.constant 0 : index
    %18 = vector.load %arg5[%c0_21, %c0_22] : memref<8x32xf32, #tpu.memory_space<vmem>>, vector<8x32xf32>
    %cst_23 = arith.constant dense<0.000000e+00> : vector<1x32xf32>
    %19 = tpu.matmul %17, %18, %cst_23 {dimension_numbers = #tpu.dot_dimension_numbers<[1], [0], [0], [1], [0, 0, 1, 1], [], []>} : vector<1x8xf32>, vector<8x32xf32>, vector<1x32xf32> -> vector<1x32xf32>
    %20 = arith.mulf %15, %15 : vector<1x32xf32>
    %21 = arith.subf %19, %20 : vector<1x32xf32>
    %cst_24 = arith.constant 9.99999997E-7 : f32
    %22 = vector.broadcast %cst_24 : f32 to vector<1x32xf32>
    %23 = arith.addf %21, %22 : vector<1x32xf32>
    %24 = math.rsqrt %23 : vector<1x32xf32>
    %c0_25 = arith.constant 0 : index
    %c0_26 = arith.constant 0 : index
    %25 = vector.load %arg2[%c0_25, %c0_26] : memref<1x32xf32, #tpu.memory_space<vmem>>, vector<1x32xf32>
    %26 = arith.mulf %24, %25 : vector<1x32xf32>
    %c0_27 = arith.constant 0 : index
    %c0_28 = arith.constant 0 : index
    %27 = vector.load %arg3[%c0_27, %c0_28] : memref<1x32xf32, #tpu.memory_space<vmem>>, vector<1x32xf32>
    %28 = arith.mulf %15, %26 : vector<1x32xf32>
    %29 = arith.subf %27, %28 : vector<1x32xf32>
    %cst_29 = arith.constant 0.000000e+00 : f32
    %30 = vector.broadcast %cst_29 : f32 to vector<8x32xf32>
    %c0_i32_30 = arith.constant 0 : i32
    %c4_i32_31 = arith.constant 4 : i32
    %31 = arith.addi %c0_i32_30, %c4_i32_31 : i32
    %c1_i32_32 = arith.constant 1 : i32
    scf.for %arg19 = %c0_i32_30 to %31 step %c1_i32_32  : i32 {
      %c64_i32 = arith.constant 64 : i32
      %59 = arith.muli %arg19, %c64_i32 : i32
      %60 = tpu.assume_multiple %59, 8 : i32
      %61 = arith.index_cast %60 : i32 to index
      %c0_71 = arith.constant 0 : index
      %62 = vector.load %arg1[%61, %c0_71] : memref<256x32xf32, #tpu.memory_space<vmem>>, vector<64x32xf32>
      %63 = vector.broadcast %26 : vector<1x32xf32> to vector<64x32xf32>
      %64 = arith.mulf %62, %63 : vector<64x32xf32>
      %65 = vector.broadcast %29 : vector<1x32xf32> to vector<64x32xf32>
      %66 = arith.addf %64, %65 : vector<64x32xf32>
      %cst_72 = arith.constant 5.000000e-01 : f32
      %67 = vector.broadcast %cst_72 : f32 to vector<64x32xf32>
      %68 = arith.mulf %67, %66 : vector<64x32xf32>
      %cst_73 = arith.constant 5.000000e-01 : f32
      %69 = vector.broadcast %cst_73 : f32 to vector<64x32xf32>
      %70 = arith.mulf %69, %66 : vector<64x32xf32>
      %71 = math.tanh %70 : vector<64x32xf32>
      %cst_74 = arith.constant 1.000000e+00 : f32
      %72 = vector.broadcast %cst_74 : f32 to vector<64x32xf32>
      %73 = arith.addf %72, %71 : vector<64x32xf32>
      %74 = arith.mulf %68, %73 : vector<64x32xf32>
      %c4_i32_75 = arith.constant 4 : i32
      %75 = arith.muli %arg19, %c4_i32_75 : i32
      %c0_i32_76 = arith.constant 0 : i32
      %76 = arith.addi %75, %c0_i32_76 : i32
      %c1_i32_77 = arith.constant 1 : i32
      %77 = arith.addi %76, %c1_i32_77 : i32
      %c24_i32 = arith.constant 24 : i32
      %78 = arith.muli %77, %c24_i32 : i32
      %c8_i32 = arith.constant 8 : i32
      %79 = arith.addi %78, %c8_i32 : i32
      %80 = vector.extract_strided_slice %74 {offsets = [0, 0], sizes = [16, 32], strides = [1, 1]} : vector<64x32xf32> to vector<16x32xf32>
      %81 = tpu.assume_multiple %79, 8 : i32
      %82 = arith.index_cast %81 : i32 to index
      %c0_78 = arith.constant 0 : index
      %83 = vector.load %arg17[%82, %c0_78] : memref<448x32xf32, #tpu.memory_space<vmem>>, vector<16x32xf32>
      tpu.vector_store %arg17[%82, %c0_78], %80 {strides = array<i32>} : memref<448x32xf32, #tpu.memory_space<vmem>>, vector<16x32xf32>,
      %c16_i32 = arith.constant 16 : i32
      %84 = arith.addi %79, %c16_i32 : i32
      %85 = tpu.assume_multiple %84, 8 : i32
      %86 = arith.index_cast %85 : i32 to index
      %c0_79 = arith.constant 0 : index
      %87 = vector.load %arg17[%86, %c0_79] : memref<448x32xf32, #tpu.memory_space<vmem>>, vector<8x32xf32>
      tpu.vector_store %arg17[%86, %c0_79], %30 {strides = array<i32>} : memref<448x32xf32, #tpu.memory_space<vmem>>, vector<8x32xf32>,
      %c4_i32_80 = arith.constant 4 : i32
      %88 = arith.muli %arg19, %c4_i32_80 : i32
      %c1_i32_81 = arith.constant 1 : i32
      %89 = arith.addi %88, %c1_i32_81 : i32
      %c1_i32_82 = arith.constant 1 : i32
      %90 = arith.addi %89, %c1_i32_82 : i32
      %c24_i32_83 = arith.constant 24 : i32
      %91 = arith.muli %90, %c24_i32_83 : i32
      %c8_i32_84 = arith.constant 8 : i32
      %92 = arith.addi %91, %c8_i32_84 : i32
      %93 = vector.extract_strided_slice %74 {offsets = [16, 0], sizes = [16, 32], strides = [1, 1]} : vector<64x32xf32> to vector<16x32xf32>
      %94 = tpu.assume_multiple %92, 8 : i32
      %95 = arith.index_cast %94 : i32 to index
      %c0_85 = arith.constant 0 : index
      %96 = vector.load %arg17[%95, %c0_85] : memref<448x32xf32, #tpu.memory_space<vmem>>, vector<16x32xf32>
      tpu.vector_store %arg17[%95, %c0_85], %93 {strides = array<i32>} : memref<448x32xf32, #tpu.memory_space<vmem>>, vector<16x32xf32>,
      %c16_i32_86 = arith.constant 16 : i32
      %97 = arith.addi %92, %c16_i32_86 : i32
      %98 = tpu.assume_multiple %97, 8 : i32
      %99 = arith.index_cast %98 : i32 to index
      %c0_87 = arith.constant 0 : index
      %100 = vector.load %arg17[%99, %c0_87] : memref<448x32xf32, #tpu.memory_space<vmem>>, vector<8x32xf32>
      tpu.vector_store %arg17[%99, %c0_87], %30 {strides = array<i32>} : memref<448x32xf32, #tpu.memory_space<vmem>>, vector<8x32xf32>,
      %c4_i32_88 = arith.constant 4 : i32
      %101 = arith.muli %arg19, %c4_i32_88 : i32
      %c2_i32 = arith.constant 2 : i32
      %102 = arith.addi %101, %c2_i32 : i32
      %c1_i32_89 = arith.constant 1 : i32
      %103 = arith.addi %102, %c1_i32_89 : i32
      %c24_i32_90 = arith.constant 24 : i32
      %104 = arith.muli %103, %c24_i32_90 : i32
      %c8_i32_91 = arith.constant 8 : i32
      %105 = arith.addi %104, %c8_i32_91 : i32
      %106 = vector.extract_strided_slice %74 {offsets = [32, 0], sizes = [16, 32], strides = [1, 1]} : vector<64x32xf32> to vector<16x32xf32>
      %107 = tpu.assume_multiple %105, 8 : i32
      %108 = arith.index_cast %107 : i32 to index
      %c0_92 = arith.constant 0 : index
      %109 = vector.load %arg17[%108, %c0_92] : memref<448x32xf32, #tpu.memory_space<vmem>>, vector<16x32xf32>
      tpu.vector_store %arg17[%108, %c0_92], %106 {strides = array<i32>} : memref<448x32xf32, #tpu.memory_space<vmem>>, vector<16x32xf32>,
      %c16_i32_93 = arith.constant 16 : i32
      %110 = arith.addi %105, %c16_i32_93 : i32
      %111 = tpu.assume_multiple %110, 8 : i32
      %112 = arith.index_cast %111 : i32 to index
      %c0_94 = arith.constant 0 : index
      %113 = vector.load %arg17[%112, %c0_94] : memref<448x32xf32, #tpu.memory_space<vmem>>, vector<8x32xf32>
      tpu.vector_store %arg17[%112, %c0_94], %30 {strides = array<i32>} : memref<448x32xf32, #tpu.memory_space<vmem>>, vector<8x32xf32>,
      %c4_i32_95 = arith.constant 4 : i32
      %114 = arith.muli %arg19, %c4_i32_95 : i32
      %c3_i32 = arith.constant 3 : i32
      %115 = arith.addi %114, %c3_i32 : i32
      %c1_i32_96 = arith.constant 1 : i32
      %116 = arith.addi %115, %c1_i32_96 : i32
      %c24_i32_97 = arith.constant 24 : i32
      %117 = arith.muli %116, %c24_i32_97 : i32
      %c8_i32_98 = arith.constant 8 : i32
      %118 = arith.addi %117, %c8_i32_98 : i32
      %119 = vector.extract_strided_slice %74 {offsets = [48, 0], sizes = [16, 32], strides = [1, 1]} : vector<64x32xf32> to vector<16x32xf32>
      %120 = tpu.assume_multiple %118, 8 : i32
      %121 = arith.index_cast %120 : i32 to index
      %c0_99 = arith.constant 0 : index
      %122 = vector.load %arg17[%121, %c0_99] : memref<448x32xf32, #tpu.memory_space<vmem>>, vector<16x32xf32>
      tpu.vector_store %arg17[%121, %c0_99], %119 {strides = array<i32>} : memref<448x32xf32, #tpu.memory_space<vmem>>, vector<16x32xf32>,
      %c16_i32_100 = arith.constant 16 : i32
      %123 = arith.addi %118, %c16_i32_100 : i32
      %124 = tpu.assume_multiple %123, 8 : i32
      %125 = arith.index_cast %124 : i32 to index
      %c0_101 = arith.constant 0 : index
      %126 = vector.load %arg17[%125, %c0_101] : memref<448x32xf32, #tpu.memory_space<vmem>>, vector<8x32xf32>
      tpu.vector_store %arg17[%125, %c0_101], %30 {strides = array<i32>} : memref<448x32xf32, #tpu.memory_space<vmem>>, vector<8x32xf32>,
    }
    %c4_i32_33 = arith.constant 4 : i32
    %c0_34 = arith.constant 0 : index
    %c0_35 = arith.constant 0 : index
    %32 = vector.load %arg7[%c0_34, %c0_35] : memref<1x128xf32, #tpu.memory_space<vmem>>, vector<1x128xf32>
    %cst_36 = arith.constant 0.000000e+00 : f32
    %33 = vector.broadcast %cst_36 : f32 to vector<1x128xf32>
    %cst_37 = arith.constant 0.000000e+00 : f32
    %34 = vector.broadcast %cst_37 : f32 to vector<1x128xf32>
    %c0_i32_38 = arith.constant 0 : i32
    %c4_i32_39 = arith.constant 4 : i32
    %35 = arith.addi %c0_i32_38, %c4_i32_39 : i32
    %c1_i32_40 = arith.constant 1 : i32
    %36:2 = scf.for %arg19 = %c0_i32_38 to %35 step %c1_i32_40 iter_args(%arg20 = %33, %arg21 = %34) -> (vector<1x128xf32>, vector<1x128xf32>)  : i32 {
      %c96_i32 = arith.constant 96 : i32
      %59 = arith.muli %arg19, %c96_i32 : i32
      %60 = tpu.assume_multiple %59, 8 : i32
      %cst_71 = arith.constant 0.000000e+00 : f32
      %61 = vector.broadcast %cst_71 : f32 to vector<96x128xf32>
      %c0_i32_72 = arith.constant 0 : i32
      %62 = arith.addi %60, %c0_i32_72 : i32
      %c0_i32_73 = arith.constant 0 : i32
      %63 = arith.addi %62, %c0_i32_73 : i32
      %c7_i32 = arith.constant 7 : i32
      %64 = arith.addi %63, %c7_i32 : i32
      %65 = arith.index_cast %64 : i32 to index
      %c0_74 = arith.constant 0 : index
      %66 = vector.load %arg17[%65, %c0_74] : memref<448x32xf32, #tpu.memory_space<vmem>>, vector<96x32xf32>
      %67 = arith.truncf %66 : vector<96x32xf32> to vector<96x32xbf16>
      %c0_75 = arith.constant 0 : index
      %c0_76 = arith.constant 0 : index
      %c0_77 = arith.constant 0 : index
      %68 = vector.load %arg6[%c0_75, %c0_76, %c0_77] : memref<9x32x128xbf16, #tpu.memory_space<vmem>>, vector<1x32x128xbf16>
      %69 = vector.shape_cast %68 : vector<1x32x128xbf16> to vector<32x128xbf16>
      %cst_78 = arith.constant dense<0.000000e+00> : vector<96x128xf32>
      %70 = tpu.matmul %67, %69, %cst_78 {dimension_numbers = #tpu.dot_dimension_numbers<[1], [0], [0], [1], [0, 0, 1, 1], [], []>} : vector<96x32xbf16>, vector<32x128xbf16>, vector<96x128xf32> -> vector<96x128xf32>
      %71 = arith.addf %61, %70 : vector<96x128xf32>
      %c0_i32_79 = arith.constant 0 : i32
      %72 = arith.addi %60, %c0_i32_79 : i32
      %c1_i32_80 = arith.constant 1 : i32
      %73 = arith.addi %72, %c1_i32_80 : i32
      %c7_i32_81 = arith.constant 7 : i32
      %74 = arith.addi %73, %c7_i32_81 : i32
      %75 = tpu.assume_multiple %74, 8 : i32
      %76 = arith.index_cast %75 : i32 to index
      %c0_82 = arith.constant 0 : index
      %77 = vector.load %arg17[%76, %c0_82] : memref<448x32xf32, #tpu.memory_space<vmem>>, vector<96x32xf32>
      %78 = arith.truncf %77 : vector<96x32xf32> to vector<96x32xbf16>
      %c1 = arith.constant 1 : index
      %c0_83 = arith.constant 0 : index
      %c0_84 = arith.constant 0 : index
      %79 = vector.load %arg6[%c1, %c0_83, %c0_84] : memref<9x32x128xbf16, #tpu.memory_space<vmem>>, vector<1x32x128xbf16>
      %80 = vector.shape_cast %79 : vector<1x32x128xbf16> to vector<32x128xbf16>
      %cst_85 = arith.constant dense<0.000000e+00> : vector<96x128xf32>
      %81 = tpu.matmul %78, %80, %cst_85 {dimension_numbers = #tpu.dot_dimension_numbers<[1], [0], [0], [1], [0, 0, 1, 1], [], []>} : vector<96x32xbf16>, vector<32x128xbf16>, vector<96x128xf32> -> vector<96x128xf32>
      %82 = arith.addf %71, %81 : vector<96x128xf32>
      %c0_i32_86 = arith.constant 0 : i32
      %83 = arith.addi %60, %c0_i32_86 : i32
      %c2_i32 = arith.constant 2 : i32
      %84 = arith.addi %83, %c2_i32 : i32
      %c7_i32_87 = arith.constant 7 : i32
      %85 = arith.addi %84, %c7_i32_87 : i32
      %86 = arith.index_cast %85 : i32 to index
      %c0_88 = arith.constant 0 : index
      %87 = vector.load %arg17[%86, %c0_88] : memref<448x32xf32, #tpu.memory_space<vmem>>, vector<96x32xf32>
      %88 = arith.truncf %87 : vector<96x32xf32> to vector<96x32xbf16>
      %c2 = arith.constant 2 : index
      %c0_89 = arith.constant 0 : index
      %c0_90 = arith.constant 0 : index
      %89 = vector.load %arg6[%c2, %c0_89, %c0_90] : memref<9x32x128xbf16, #tpu.memory_space<vmem>>, vector<1x32x128xbf16>
      %90 = vector.shape_cast %89 : vector<1x32x128xbf16> to vector<32x128xbf16>
      %cst_91 = arith.constant dense<0.000000e+00> : vector<96x128xf32>
      %91 = tpu.matmul %88, %90, %cst_91 {dimension_numbers = #tpu.dot_dimension_numbers<[1], [0], [0], [1], [0, 0, 1, 1], [], []>} : vector<96x32xbf16>, vector<32x128xbf16>, vector<96x128xf32> -> vector<96x128xf32>
      %92 = arith.addf %82, %91 : vector<96x128xf32>
      %c24_i32 = arith.constant 24 : i32
      %93 = arith.addi %60, %c24_i32 : i32
      %c0_i32_92 = arith.constant 0 : i32
      %94 = arith.addi %93, %c0_i32_92 : i32
      %c7_i32_93 = arith.constant 7 : i32
      %95 = arith.addi %94, %c7_i32_93 : i32
      %96 = arith.index_cast %95 : i32 to index
      %c0_94 = arith.constant 0 : index
      %97 = vector.load %arg17[%96, %c0_94] : memref<448x32xf32, #tpu.memory_space<vmem>>, vector<96x32xf32>
      %98 = arith.truncf %97 : vector<96x32xf32> to vector<96x32xbf16>
      %c3 = arith.constant 3 : index
      %c0_95 = arith.constant 0 : index
      %c0_96 = arith.constant 0 : index
      %99 = vector.load %arg6[%c3, %c0_95, %c0_96] : memref<9x32x128xbf16, #tpu.memory_space<vmem>>, vector<1x32x128xbf16>
      %100 = vector.shape_cast %99 : vector<1x32x128xbf16> to vector<32x128xbf16>
      %cst_97 = arith.constant dense<0.000000e+00> : vector<96x128xf32>
      %101 = tpu.matmul %98, %100, %cst_97 {dimension_numbers = #tpu.dot_dimension_numbers<[1], [0], [0], [1], [0, 0, 1, 1], [], []>} : vector<96x32xbf16>, vector<32x128xbf16>, vector<96x128xf32> -> vector<96x128xf32>
      %102 = arith.addf %92, %101 : vector<96x128xf32>
      %c24_i32_98 = arith.constant 24 : i32
      %103 = arith.addi %60, %c24_i32_98 : i32
      %c1_i32_99 = arith.constant 1 : i32
      %104 = arith.addi %103, %c1_i32_99 : i32
      %c7_i32_100 = arith.constant 7 : i32
      %105 = arith.addi %104, %c7_i32_100 : i32
      %106 = tpu.assume_multiple %105, 8 : i32
      %107 = arith.index_cast %106 : i32 to index
      %c0_101 = arith.constant 0 : index
      %108 = vector.load %arg17[%107, %c0_101] : memref<448x32xf32, #tpu.memory_space<vmem>>, vector<96x32xf32>
      %109 = arith.truncf %108 : vector<96x32xf32> to vector<96x32xbf16>
      %c4 = arith.constant 4 : index
      %c0_102 = arith.constant 0 : index
      %c0_103 = arith.constant 0 : index
      %110 = vector.load %arg6[%c4, %c0_102, %c0_103] : memref<9x32x128xbf16, #tpu.memory_space<vmem>>, vector<1x32x128xbf16>
      %111 = vector.shape_cast %110 : vector<1x32x128xbf16> to vector<32x128xbf16>
      %cst_104 = arith.constant dense<0.000000e+00> : vector<96x128xf32>
      %112 = tpu.matmul %109, %111, %cst_104 {dimension_numbers = #tpu.dot_dimension_numbers<[1], [0], [0], [1], [0, 0, 1, 1], [], []>} : vector<96x32xbf16>, vector<32x128xbf16>, vector<96x128xf32> -> vector<96x128xf32>
      %113 = arith.addf %102, %112 : vector<96x128xf32>
      %c24_i32_105 = arith.constant 24 : i32
      %114 = arith.addi %60, %c24_i32_105 : i32
      %c2_i32_106 = arith.constant 2 : i32
      %115 = arith.addi %114, %c2_i32_106 : i32
      %c7_i32_107 = arith.constant 7 : i32
      %116 = arith.addi %115, %c7_i32_107 : i32
      %117 = arith.index_cast %116 : i32 to index
      %c0_108 = arith.constant 0 : index
      %118 = vector.load %arg17[%117, %c0_108] : memref<448x32xf32, #tpu.memory_space<vmem>>, vector<96x32xf32>
      %119 = arith.truncf %118 : vector<96x32xf32> to vector<96x32xbf16>
      %c5 = arith.constant 5 : index
      %c0_109 = arith.constant 0 : index
      %c0_110 = arith.constant 0 : index
      %120 = vector.load %arg6[%c5, %c0_109, %c0_110] : memref<9x32x128xbf16, #tpu.memory_space<vmem>>, vector<1x32x128xbf16>
      %121 = vector.shape_cast %120 : vector<1x32x128xbf16> to vector<32x128xbf16>
      %cst_111 = arith.constant dense<0.000000e+00> : vector<96x128xf32>
      %122 = tpu.matmul %119, %121, %cst_111 {dimension_numbers = #tpu.dot_dimension_numbers<[1], [0], [0], [1], [0, 0, 1, 1], [], []>} : vector<96x32xbf16>, vector<32x128xbf16>, vector<96x128xf32> -> vector<96x128xf32>
      %123 = arith.addf %113, %122 : vector<96x128xf32>
      %c48_i32 = arith.constant 48 : i32
      %124 = arith.addi %60, %c48_i32 : i32
      %c0_i32_112 = arith.constant 0 : i32
      %125 = arith.addi %124, %c0_i32_112 : i32
      %c7_i32_113 = arith.constant 7 : i32
      %126 = arith.addi %125, %c7_i32_113 : i32
      %127 = arith.index_cast %126 : i32 to index
      %c0_114 = arith.constant 0 : index
      %128 = vector.load %arg17[%127, %c0_114] : memref<448x32xf32, #tpu.memory_space<vmem>>, vector<96x32xf32>
      %129 = arith.truncf %128 : vector<96x32xf32> to vector<96x32xbf16>
      %c6 = arith.constant 6 : index
      %c0_115 = arith.constant 0 : index
      %c0_116 = arith.constant 0 : index
      %130 = vector.load %arg6[%c6, %c0_115, %c0_116] : memref<9x32x128xbf16, #tpu.memory_space<vmem>>, vector<1x32x128xbf16>
      %131 = vector.shape_cast %130 : vector<1x32x128xbf16> to vector<32x128xbf16>
      %cst_117 = arith.constant dense<0.000000e+00> : vector<96x128xf32>
      %132 = tpu.matmul %129, %131, %cst_117 {dimension_numbers = #tpu.dot_dimension_numbers<[1], [0], [0], [1], [0, 0, 1, 1], [], []>} : vector<96x32xbf16>, vector<32x128xbf16>, vector<96x128xf32> -> vector<96x128xf32>
      %133 = arith.addf %123, %132 : vector<96x128xf32>
      %c48_i32_118 = arith.constant 48 : i32
      %134 = arith.addi %60, %c48_i32_118 : i32
      %c1_i32_119 = arith.constant 1 : i32
      %135 = arith.addi %134, %c1_i32_119 : i32
      %c7_i32_120 = arith.constant 7 : i32
      %136 = arith.addi %135, %c7_i32_120 : i32
      %137 = tpu.assume_multiple %136, 8 : i32
      %138 = arith.index_cast %137 : i32 to index
      %c0_121 = arith.constant 0 : index
      %139 = vector.load %arg17[%138, %c0_121] : memref<448x32xf32, #tpu.memory_space<vmem>>, vector<96x32xf32>
      %140 = arith.truncf %139 : vector<96x32xf32> to vector<96x32xbf16>
      %c7 = arith.constant 7 : index
      %c0_122 = arith.constant 0 : index
      %c0_123 = arith.constant 0 : index
      %141 = vector.load %arg6[%c7, %c0_122, %c0_123] : memref<9x32x128xbf16, #tpu.memory_space<vmem>>, vector<1x32x128xbf16>
      %142 = vector.shape_cast %141 : vector<1x32x128xbf16> to vector<32x128xbf16>
      %cst_124 = arith.constant dense<0.000000e+00> : vector<96x128xf32>
      %143 = tpu.matmul %140, %142, %cst_124 {dimension_numbers = #tpu.dot_dimension_numbers<[1], [0], [0], [1], [0, 0, 1, 1], [], []>} : vector<96x32xbf16>, vector<32x128xbf16>, vector<96x128xf32> -> vector<96x128xf32>
      %144 = arith.addf %133, %143 : vector<96x128xf32>
      %c48_i32_125 = arith.constant 48 : i32
      %145 = arith.addi %60, %c48_i32_125 : i32
      %c2_i32_126 = arith.constant 2 : i32
      %146 = arith.addi %145, %c2_i32_126 : i32
      %c7_i32_127 = arith.constant 7 : i32
      %147 = arith.addi %146, %c7_i32_127 : i32
      %148 = arith.index_cast %147 : i32 to index
      %c0_128 = arith.constant 0 : index
      %149 = vector.load %arg17[%148, %c0_128] : memref<448x32xf32, #tpu.memory_space<vmem>>, vector<96x32xf32>
      %150 = arith.truncf %149 : vector<96x32xf32> to vector<96x32xbf16>
      %c8 = arith.constant 8 : index
      %c0_129 = arith.constant 0 : index
      %c0_130 = arith.constant 0 : index
      %151 = vector.load %arg6[%c8, %c0_129, %c0_130] : memref<9x32x128xbf16, #tpu.memory_space<vmem>>, vector<1x32x128xbf16>
      %152 = vector.shape_cast %151 : vector<1x32x128xbf16> to vector<32x128xbf16>
      %cst_131 = arith.constant dense<0.000000e+00> : vector<96x128xf32>
      %153 = tpu.matmul %150, %152, %cst_131 {dimension_numbers = #tpu.dot_dimension_numbers<[1], [0], [0], [1], [0, 0, 1, 1], [], []>} : vector<96x32xbf16>, vector<32x128xbf16>, vector<96x128xf32> -> vector<96x128xf32>
      %154 = arith.addf %144, %153 : vector<96x128xf32>
      %155 = tpu.iota {dimensions = array<i32: 0>} : vector<96x128xi32>
      %c0_i32_132 = arith.constant 0 : i32
      %156 = vector.broadcast %c0_i32_132 : i32 to vector<96x128xi32>
      %157 = arith.cmpi sge, %155, %156 : vector<96x128xi32>
      %c16_i32 = arith.constant 16 : i32
      %158 = vector.broadcast %c16_i32 : i32 to vector<96x128xi32>
      %159 = arith.cmpi slt, %155, %158 : vector<96x128xi32>
      %160 = arith.andi %157, %159 : vector<96x128xi1>
      %c24_i32_133 = arith.constant 24 : i32
      %161 = vector.broadcast %c24_i32_133 : i32 to vector<96x128xi32>
      %162 = arith.cmpi sge, %155, %161 : vector<96x128xi32>
      %c40_i32 = arith.constant 40 : i32
      %163 = vector.broadcast %c40_i32 : i32 to vector<96x128xi32>
      %164 = arith.cmpi slt, %155, %163 : vector<96x128xi32>
      %165 = arith.andi %162, %164 : vector<96x128xi1>
      %c48_i32_134 = arith.constant 48 : i32
      %166 = vector.broadcast %c48_i32_134 : i32 to vector<96x128xi32>
      %167 = arith.cmpi sge, %155, %166 : vector<96x128xi32>
      %c64_i32 = arith.constant 64 : i32
      %168 = vector.broadcast %c64_i32 : i32 to vector<96x128xi32>
      %169 = arith.cmpi slt, %155, %168 : vector<96x128xi32>
      %170 = arith.andi %167, %169 : vector<96x128xi1>
      %c72_i32 = arith.constant 72 : i32
      %171 = vector.broadcast %c72_i32 : i32 to vector<96x128xi32>
      %172 = arith.cmpi sge, %155, %171 : vector<96x128xi32>
      %c88_i32 = arith.constant 88 : i32
      %173 = vector.broadcast %c88_i32 : i32 to vector<96x128xi32>
      %174 = arith.cmpi slt, %155, %173 : vector<96x128xi32>
      %175 = arith.andi %172, %174 : vector<96x128xi1>
      %176 = arith.ori %160, %165 : vector<96x128xi1>
      %177 = arith.ori %176, %170 : vector<96x128xi1>
      %178 = arith.ori %177, %175 : vector<96x128xi1>
      %179 = vector.broadcast %32 : vector<1x128xf32> to vector<96x128xf32>
      %180 = arith.addf %154, %179 : vector<96x128xf32>
      %cst_135 = arith.constant 0.000000e+00 : f32
      %181 = vector.broadcast %cst_135 : f32 to vector<96x128xf32>
      %182 = arith.select %178, %180, %181 : vector<96x128xi1>, vector<96x128xf32>
      %c24_i32_136 = arith.constant 24 : i32
      %183 = arith.addi %60, %c24_i32_136 : i32
      %c8_i32 = arith.constant 8 : i32
      %184 = arith.addi %183, %c8_i32 : i32
      %185 = tpu.assume_multiple %184, 8 : i32
      %186 = arith.index_cast %185 : i32 to index
      %c0_137 = arith.constant 0 : index
      %187 = vector.load %arg18[%186, %c0_137] : memref<448x128xf32, #tpu.memory_space<vmem>>, vector<96x128xf32>
      tpu.vector_store %arg18[%186, %c0_137], %182 {strides = array<i32>} : memref<448x128xf32, #tpu.memory_space<vmem>>, vector<96x128xf32>,
      %cst_138 = arith.constant dense<0.000000e+00> : vector<128xf32>
      %188 = vector.multi_reduction <add>, %182, %cst_138 [0] : vector<96x128xf32> to vector<128xf32>
      %189 = vector.shape_cast %188 : vector<128xf32> to vector<1x128xf32>
      %190 = arith.addf %arg20, %189 : vector<1x128xf32>
      %191 = arith.mulf %182, %182 : vector<96x128xf32>
      %cst_139 = arith.constant dense<0.000000e+00> : vector<128xf32>
      %192 = vector.multi_reduction <add>, %191, %cst_139 [0] : vector<96x128xf32> to vector<128xf32>
      %193 = vector.shape_cast %192 : vector<128xf32> to vector<1x128xf32>
      %194 = arith.addf %arg21, %193 : vector<1x128xf32>
      scf.yield %190, %194 : vector<1x128xf32>, vector<1x128xf32>
    }
    %c4_i32_41 = arith.constant 4 : i32
    %c0_42 = arith.constant 0 : index
    %c0_43 = arith.constant 0 : index
    %37 = vector.load %arg10[%c0_42, %c0_43] : memref<128x8xf32, #tpu.memory_space<vmem>>, vector<128x8xf32>
    %cst_44 = arith.constant dense<0.000000e+00> : vector<1x8xf32>
    %38 = tpu.matmul %36#0, %37, %cst_44 {dimension_numbers = #tpu.dot_dimension_numbers<[1], [0], [0], [1], [0, 0, 1, 1], [], []>} : vector<1x128xf32>, vector<128x8xf32>, vector<1x8xf32> -> vector<1x8xf32>
    %c0_45 = arith.constant 0 : index
    %c0_46 = arith.constant 0 : index
    %39 = vector.load %arg11[%c0_45, %c0_46] : memref<8x128xf32, #tpu.memory_space<vmem>>, vector<8x128xf32>
    %cst_47 = arith.constant dense<0.000000e+00> : vector<1x128xf32>
    %40 = tpu.matmul %38, %39, %cst_47 {dimension_numbers = #tpu.dot_dimension_numbers<[1], [0], [0], [1], [0, 0, 1, 1], [], []>} : vector<1x8xf32>, vector<8x128xf32>, vector<1x128xf32> -> vector<1x128xf32>
    %c0_48 = arith.constant 0 : index
    %c0_49 = arith.constant 0 : index
    %41 = vector.load %arg10[%c0_48, %c0_49] : memref<128x8xf32, #tpu.memory_space<vmem>>, vector<128x8xf32>
    %cst_50 = arith.constant dense<0.000000e+00> : vector<1x8xf32>
    %42 = tpu.matmul %36#1, %41, %cst_50 {dimension_numbers = #tpu.dot_dimension_numbers<[1], [0], [0], [1], [0, 0, 1, 1], [], []>} : vector<1x128xf32>, vector<128x8xf32>, vector<1x8xf32> -> vector<1x8xf32>
    %c0_51 = arith.constant 0 : index
    %c0_52 = arith.constant 0 : index
    %43 = vector.load %arg11[%c0_51, %c0_52] : memref<8x128xf32, #tpu.memory_space<vmem>>, vector<8x128xf32>
    %cst_53 = arith.constant dense<0.000000e+00> : vector<1x128xf32>
    %44 = tpu.matmul %42, %43, %cst_53 {dimension_numbers = #tpu.dot_dimension_numbers<[1], [0], [0], [1], [0, 0, 1, 1], [], []>} : vector<1x8xf32>, vector<8x128xf32>, vector<1x128xf32> -> vector<1x128xf32>
    %45 = arith.mulf %40, %40 : vector<1x128xf32>
    %46 = arith.subf %44, %45 : vector<1x128xf32>
    %cst_54 = arith.constant 9.99999997E-7 : f32
    %47 = vector.broadcast %cst_54 : f32 to vector<1x128xf32>
    %48 = arith.addf %46, %47 : vector<1x128xf32>
    %49 = math.rsqrt %48 : vector<1x128xf32>
    %c0_55 = arith.constant 0 : index
    %c0_56 = arith.constant 0 : index
    %50 = vector.load %arg8[%c0_55, %c0_56] : memref<1x128xf32, #tpu.memory_space<vmem>>, vector<1x128xf32>
    %51 = arith.mulf %49, %50 : vector<1x128xf32>
    %c0_57 = arith.constant 0 : index
    %c0_58 = arith.constant 0 : index
    %52 = vector.load %arg9[%c0_57, %c0_58] : memref<1x128xf32, #tpu.memory_space<vmem>>, vector<1x128xf32>
    %53 = arith.mulf %40, %51 : vector<1x128xf32>
    %54 = arith.subf %52, %53 : vector<1x128xf32>
    %c0_i32_59 = arith.constant 0 : i32
    %c4_i32_60 = arith.constant 4 : i32
    %55 = arith.addi %c0_i32_59, %c4_i32_60 : i32
    %c1_i32_61 = arith.constant 1 : i32
    scf.for %arg19 = %c0_i32_59 to %55 step %c1_i32_61  : i32 {
      %c4_i32_71 = arith.constant 4 : i32
      %59 = arith.muli %arg19, %c4_i32_71 : i32
      %c0_i32_72 = arith.constant 0 : i32
      %60 = arith.addi %59, %c0_i32_72 : i32
      %c1_i32_73 = arith.constant 1 : i32
      %61 = arith.addi %60, %c1_i32_73 : i32
      %c24_i32 = arith.constant 24 : i32
      %62 = arith.muli %61, %c24_i32 : i32
      %c8_i32 = arith.constant 8 : i32
      %63 = arith.addi %62, %c8_i32 : i32
      %64 = tpu.assume_multiple %63, 8 : i32
      %65 = arith.index_cast %64 : i32 to index
      %c0_74 = arith.constant 0 : index
      %66 = vector.load %arg18[%65, %c0_74] : memref<448x128xf32, #tpu.memory_space<vmem>>, vector<16x128xf32>
      %67 = vector.broadcast %51 : vector<1x128xf32> to vector<16x128xf32>
      %68 = arith.mulf %66, %67 : vector<16x128xf32>
      %69 = vector.broadcast %54 : vector<1x128xf32> to vector<16x128xf32>
      %70 = arith.addf %68, %69 : vector<16x128xf32>
      %cst_75 = arith.constant 5.000000e-01 : f32
      %71 = vector.broadcast %cst_75 : f32 to vector<16x128xf32>
      %72 = arith.mulf %71, %70 : vector<16x128xf32>
      %cst_76 = arith.constant 5.000000e-01 : f32
      %73 = vector.broadcast %cst_76 : f32 to vector<16x128xf32>
      %74 = arith.mulf %73, %70 : vector<16x128xf32>
      %75 = math.tanh %74 : vector<16x128xf32>
      %cst_77 = arith.constant 1.000000e+00 : f32
      %76 = vector.broadcast %cst_77 : f32 to vector<16x128xf32>
      %77 = arith.addf %76, %75 : vector<16x128xf32>
      %78 = arith.mulf %72, %77 : vector<16x128xf32>
      %79 = tpu.assume_multiple %63, 8 : i32
      %80 = arith.index_cast %79 : i32 to index
      %c0_78 = arith.constant 0 : index
      %81 = vector.load %arg18[%80, %c0_78] : memref<448x128xf32, #tpu.memory_space<vmem>>, vector<16x128xf32>
      tpu.vector_store %arg18[%80, %c0_78], %78 {strides = array<i32>} : memref<448x128xf32, #tpu.memory_space<vmem>>, vector<16x128xf32>,
      %c4_i32_79 = arith.constant 4 : i32
      %82 = arith.muli %arg19, %c4_i32_79 : i32
      %c1_i32_80 = arith.constant 1 : i32
      %83 = arith.addi %82, %c1_i32_80 : i32
      %c1_i32_81 = arith.constant 1 : i32
      %84 = arith.addi %83, %c1_i32_81 : i32
      %c24_i32_82 = arith.constant 24 : i32
      %85 = arith.muli %84, %c24_i32_82 : i32
      %c8_i32_83 = arith.constant 8 : i32
      %86 = arith.addi %85, %c8_i32_83 : i32
      %87 = tpu.assume_multiple %86, 8 : i32
      %88 = arith.index_cast %87 : i32 to index
      %c0_84 = arith.constant 0 : index
      %89 = vector.load %arg18[%88, %c0_84] : memref<448x128xf32, #tpu.memory_space<vmem>>, vector<16x128xf32>
      %90 = vector.broadcast %51 : vector<1x128xf32> to vector<16x128xf32>
      %91 = arith.mulf %89, %90 : vector<16x128xf32>
      %92 = vector.broadcast %54 : vector<1x128xf32> to vector<16x128xf32>
      %93 = arith.addf %91, %92 : vector<16x128xf32>
      %cst_85 = arith.constant 5.000000e-01 : f32
      %94 = vector.broadcast %cst_85 : f32 to vector<16x128xf32>
      %95 = arith.mulf %94, %93 : vector<16x128xf32>
      %cst_86 = arith.constant 5.000000e-01 : f32
      %96 = vector.broadcast %cst_86 : f32 to vector<16x128xf32>
      %97 = arith.mulf %96, %93 : vector<16x128xf32>
      %98 = math.tanh %97 : vector<16x128xf32>
      %cst_87 = arith.constant 1.000000e+00 : f32
      %99 = vector.broadcast %cst_87 : f32 to vector<16x128xf32>
      %100 = arith.addf %99, %98 : vector<16x128xf32>
      %101 = arith.mulf %95, %100 : vector<16x128xf32>
      %102 = tpu.assume_multiple %86, 8 : i32
      %103 = arith.index_cast %102 : i32 to index
      %c0_88 = arith.constant 0 : index
      %104 = vector.load %arg18[%103, %c0_88] : memref<448x128xf32, #tpu.memory_space<vmem>>, vector<16x128xf32>
      tpu.vector_store %arg18[%103, %c0_88], %101 {strides = array<i32>} : memref<448x128xf32, #tpu.memory_space<vmem>>, vector<16x128xf32>,
      %c4_i32_89 = arith.constant 4 : i32
      %105 = arith.muli %arg19, %c4_i32_89 : i32
      %c2_i32 = arith.constant 2 : i32
      %106 = arith.addi %105, %c2_i32 : i32
      %c1_i32_90 = arith.constant 1 : i32
      %107 = arith.addi %106, %c1_i32_90 : i32
      %c24_i32_91 = arith.constant 24 : i32
      %108 = arith.muli %107, %c24_i32_91 : i32
      %c8_i32_92 = arith.constant 8 : i32
      %109 = arith.addi %108, %c8_i32_92 : i32
      %110 = tpu.assume_multiple %109, 8 : i32
      %111 = arith.index_cast %110 : i32 to index
      %c0_93 = arith.constant 0 : index
      %112 = vector.load %arg18[%111, %c0_93] : memref<448x128xf32, #tpu.memory_space<vmem>>, vector<16x128xf32>
      %113 = vector.broadcast %51 : vector<1x128xf32> to vector<16x128xf32>
      %114 = arith.mulf %112, %113 : vector<16x128xf32>
      %115 = vector.broadcast %54 : vector<1x128xf32> to vector<16x128xf32>
      %116 = arith.addf %114, %115 : vector<16x128xf32>
      %cst_94 = arith.constant 5.000000e-01 : f32
      %117 = vector.broadcast %cst_94 : f32 to vector<16x128xf32>
      %118 = arith.mulf %117, %116 : vector<16x128xf32>
      %cst_95 = arith.constant 5.000000e-01 : f32
      %119 = vector.broadcast %cst_95 : f32 to vector<16x128xf32>
      %120 = arith.mulf %119, %116 : vector<16x128xf32>
      %121 = math.tanh %120 : vector<16x128xf32>
      %cst_96 = arith.constant 1.000000e+00 : f32
      %122 = vector.broadcast %cst_96 : f32 to vector<16x128xf32>
      %123 = arith.addf %122, %121 : vector<16x128xf32>
      %124 = arith.mulf %118, %123 : vector<16x128xf32>
      %125 = tpu.assume_multiple %109, 8 : i32
      %126 = arith.index_cast %125 : i32 to index
      %c0_97 = arith.constant 0 : index
      %127 = vector.load %arg18[%126, %c0_97] : memref<448x128xf32, #tpu.memory_space<vmem>>, vector<16x128xf32>
      tpu.vector_store %arg18[%126, %c0_97], %124 {strides = array<i32>} : memref<448x128xf32, #tpu.memory_space<vmem>>, vector<16x128xf32>,
      %c4_i32_98 = arith.constant 4 : i32
      %128 = arith.muli %arg19, %c4_i32_98 : i32
      %c3_i32 = arith.constant 3 : i32
      %129 = arith.addi %128, %c3_i32 : i32
      %c1_i32_99 = arith.constant 1 : i32
      %130 = arith.addi %129, %c1_i32_99 : i32
      %c24_i32_100 = arith.constant 24 : i32
      %131 = arith.muli %130, %c24_i32_100 : i32
      %c8_i32_101 = arith.constant 8 : i32
      %132 = arith.addi %131, %c8_i32_101 : i32
      %133 = tpu.assume_multiple %132, 8 : i32
      %134 = arith.index_cast %133 : i32 to index
      %c0_102 = arith.constant 0 : index
      %135 = vector.load %arg18[%134, %c0_102] : memref<448x128xf32, #tpu.memory_space<vmem>>, vector<16x128xf32>
      %136 = vector.broadcast %51 : vector<1x128xf32> to vector<16x128xf32>
      %137 = arith.mulf %135, %136 : vector<16x128xf32>
      %138 = vector.broadcast %54 : vector<1x128xf32> to vector<16x128xf32>
      %139 = arith.addf %137, %138 : vector<16x128xf32>
      %cst_103 = arith.constant 5.000000e-01 : f32
      %140 = vector.broadcast %cst_103 : f32 to vector<16x128xf32>
      %141 = arith.mulf %140, %139 : vector<16x128xf32>
      %cst_104 = arith.constant 5.000000e-01 : f32
      %142 = vector.broadcast %cst_104 : f32 to vector<16x128xf32>
      %143 = arith.mulf %142, %139 : vector<16x128xf32>
      %144 = math.tanh %143 : vector<16x128xf32>
      %cst_105 = arith.constant 1.000000e+00 : f32
      %145 = vector.broadcast %cst_105 : f32 to vector<16x128xf32>
      %146 = arith.addf %145, %144 : vector<16x128xf32>
      %147 = arith.mulf %141, %146 : vector<16x128xf32>
      %148 = tpu.assume_multiple %132, 8 : i32
      %149 = arith.index_cast %148 : i32 to index
      %c0_106 = arith.constant 0 : index
      %150 = vector.load %arg18[%149, %c0_106] : memref<448x128xf32, #tpu.memory_space<vmem>>, vector<16x128xf32>
      tpu.vector_store %arg18[%149, %c0_106], %147 {strides = array<i32>} : memref<448x128xf32, #tpu.memory_space<vmem>>, vector<16x128xf32>,
    }
    %c4_i32_62 = arith.constant 4 : i32
    %c0_63 = arith.constant 0 : index
    %c0_64 = arith.constant 0 : index
    %56 = vector.load %arg13[%c0_63, %c0_64] : memref<1x128xf32, #tpu.memory_space<vmem>>, vector<1x128xf32>
    %c0_65 = arith.constant 0 : index
    %c0_66 = arith.constant 0 : index
    %57 = vector.load %arg15[%c0_65, %c0_66] : memref<1x1xf32, #tpu.memory_space<vmem>>, vector<1x1xf32>
    %c0_i32_67 = arith.constant 0 : i32
    %c4_i32_68 = arith.constant 4 : i32
    %58 = arith.addi %c0_i32_67, %c4_i32_68 : i32
    %c1_i32_69 = arith.constant 1 : i32
    scf.for %arg19 = %c0_i32_67 to %58 step %c1_i32_69  : i32 {
      %c96_i32 = arith.constant 96 : i32
      %59 = arith.muli %arg19, %c96_i32 : i32
      %60 = tpu.assume_multiple %59, 8 : i32
      %cst_71 = arith.constant 0.000000e+00 : f32
      %61 = vector.broadcast %cst_71 : f32 to vector<96x128xf32>
      %c0_i32_72 = arith.constant 0 : i32
      %62 = arith.addi %60, %c0_i32_72 : i32
      %c0_i32_73 = arith.constant 0 : i32
      %63 = arith.addi %62, %c0_i32_73 : i32
      %c7_i32 = arith.constant 7 : i32
      %64 = arith.addi %63, %c7_i32 : i32
      %65 = arith.index_cast %64 : i32 to index
      %c0_74 = arith.constant 0 : index
      %66 = vector.load %arg18[%65, %c0_74] : memref<448x128xf32, #tpu.memory_space<vmem>>, vector<96x128xf32>
      %67 = arith.truncf %66 : vector<96x128xf32> to vector<96x128xbf16>
      %c0_75 = arith.constant 0 : index
      %c0_76 = arith.constant 0 : index
      %c0_77 = arith.constant 0 : index
      %68 = vector.load %arg12[%c0_75, %c0_76, %c0_77] : memref<9x128x128xbf16, #tpu.memory_space<vmem>>, vector<1x128x128xbf16>
      %69 = vector.shape_cast %68 : vector<1x128x128xbf16> to vector<128x128xbf16>
      %cst_78 = arith.constant dense<0.000000e+00> : vector<96x128xf32>
      %70 = tpu.matmul %67, %69, %cst_78 {dimension_numbers = #tpu.dot_dimension_numbers<[1], [0], [0], [1], [0, 0, 1, 1], [], []>} : vector<96x128xbf16>, vector<128x128xbf16>, vector<96x128xf32> -> vector<96x128xf32>
      %71 = arith.addf %61, %70 : vector<96x128xf32>
      %c0_i32_79 = arith.constant 0 : i32
      %72 = arith.addi %60, %c0_i32_79 : i32
      %c1_i32_80 = arith.constant 1 : i32
      %73 = arith.addi %72, %c1_i32_80 : i32
      %c7_i32_81 = arith.constant 7 : i32
      %74 = arith.addi %73, %c7_i32_81 : i32
      %75 = tpu.assume_multiple %74, 8 : i32
      %76 = arith.index_cast %75 : i32 to index
      %c0_82 = arith.constant 0 : index
      %77 = vector.load %arg18[%76, %c0_82] : memref<448x128xf32, #tpu.memory_space<vmem>>, vector<96x128xf32>
      %78 = arith.truncf %77 : vector<96x128xf32> to vector<96x128xbf16>
      %c1 = arith.constant 1 : index
      %c0_83 = arith.constant 0 : index
      %c0_84 = arith.constant 0 : index
      %79 = vector.load %arg12[%c1, %c0_83, %c0_84] : memref<9x128x128xbf16, #tpu.memory_space<vmem>>, vector<1x128x128xbf16>
      %80 = vector.shape_cast %79 : vector<1x128x128xbf16> to vector<128x128xbf16>
      %cst_85 = arith.constant dense<0.000000e+00> : vector<96x128xf32>
      %81 = tpu.matmul %78, %80, %cst_85 {dimension_numbers = #tpu.dot_dimension_numbers<[1], [0], [0], [1], [0, 0, 1, 1], [], []>} : vector<96x128xbf16>, vector<128x128xbf16>, vector<96x128xf32> -> vector<96x128xf32>
      %82 = arith.addf %71, %81 : vector<96x128xf32>
      %c0_i32_86 = arith.constant 0 : i32
      %83 = arith.addi %60, %c0_i32_86 : i32
      %c2_i32 = arith.constant 2 : i32
      %84 = arith.addi %83, %c2_i32 : i32
      %c7_i32_87 = arith.constant 7 : i32
      %85 = arith.addi %84, %c7_i32_87 : i32
      %86 = arith.index_cast %85 : i32 to index
      %c0_88 = arith.constant 0 : index
      %87 = vector.load %arg18[%86, %c0_88] : memref<448x128xf32, #tpu.memory_space<vmem>>, vector<96x128xf32>
      %88 = arith.truncf %87 : vector<96x128xf32> to vector<96x128xbf16>
      %c2 = arith.constant 2 : index
      %c0_89 = arith.constant 0 : index
      %c0_90 = arith.constant 0 : index
      %89 = vector.load %arg12[%c2, %c0_89, %c0_90] : memref<9x128x128xbf16, #tpu.memory_space<vmem>>, vector<1x128x128xbf16>
      %90 = vector.shape_cast %89 : vector<1x128x128xbf16> to vector<128x128xbf16>
      %cst_91 = arith.constant dense<0.000000e+00> : vector<96x128xf32>
      %91 = tpu.matmul %88, %90, %cst_91 {dimension_numbers = #tpu.dot_dimension_numbers<[1], [0], [0], [1], [0, 0, 1, 1], [], []>} : vector<96x128xbf16>, vector<128x128xbf16>, vector<96x128xf32> -> vector<96x128xf32>
      %92 = arith.addf %82, %91 : vector<96x128xf32>
      %c24_i32 = arith.constant 24 : i32
      %93 = arith.addi %60, %c24_i32 : i32
      %c0_i32_92 = arith.constant 0 : i32
      %94 = arith.addi %93, %c0_i32_92 : i32
      %c7_i32_93 = arith.constant 7 : i32
      %95 = arith.addi %94, %c7_i32_93 : i32
      %96 = arith.index_cast %95 : i32 to index
      %c0_94 = arith.constant 0 : index
      %97 = vector.load %arg18[%96, %c0_94] : memref<448x128xf32, #tpu.memory_space<vmem>>, vector<96x128xf32>
      %98 = arith.truncf %97 : vector<96x128xf32> to vector<96x128xbf16>
      %c3 = arith.constant 3 : index
      %c0_95 = arith.constant 0 : index
      %c0_96 = arith.constant 0 : index
      %99 = vector.load %arg12[%c3, %c0_95, %c0_96] : memref<9x128x128xbf16, #tpu.memory_space<vmem>>, vector<1x128x128xbf16>
      %100 = vector.shape_cast %99 : vector<1x128x128xbf16> to vector<128x128xbf16>
      %cst_97 = arith.constant dense<0.000000e+00> : vector<96x128xf32>
      %101 = tpu.matmul %98, %100, %cst_97 {dimension_numbers = #tpu.dot_dimension_numbers<[1], [0], [0], [1], [0, 0, 1, 1], [], []>} : vector<96x128xbf16>, vector<128x128xbf16>, vector<96x128xf32> -> vector<96x128xf32>
      %102 = arith.addf %92, %101 : vector<96x128xf32>
      %c24_i32_98 = arith.constant 24 : i32
      %103 = arith.addi %60, %c24_i32_98 : i32
      %c1_i32_99 = arith.constant 1 : i32
      %104 = arith.addi %103, %c1_i32_99 : i32
      %c7_i32_100 = arith.constant 7 : i32
      %105 = arith.addi %104, %c7_i32_100 : i32
      %106 = tpu.assume_multiple %105, 8 : i32
      %107 = arith.index_cast %106 : i32 to index
      %c0_101 = arith.constant 0 : index
      %108 = vector.load %arg18[%107, %c0_101] : memref<448x128xf32, #tpu.memory_space<vmem>>, vector<96x128xf32>
      %109 = arith.truncf %108 : vector<96x128xf32> to vector<96x128xbf16>
      %c4 = arith.constant 4 : index
      %c0_102 = arith.constant 0 : index
      %c0_103 = arith.constant 0 : index
      %110 = vector.load %arg12[%c4, %c0_102, %c0_103] : memref<9x128x128xbf16, #tpu.memory_space<vmem>>, vector<1x128x128xbf16>
      %111 = vector.shape_cast %110 : vector<1x128x128xbf16> to vector<128x128xbf16>
      %cst_104 = arith.constant dense<0.000000e+00> : vector<96x128xf32>
      %112 = tpu.matmul %109, %111, %cst_104 {dimension_numbers = #tpu.dot_dimension_numbers<[1], [0], [0], [1], [0, 0, 1, 1], [], []>} : vector<96x128xbf16>, vector<128x128xbf16>, vector<96x128xf32> -> vector<96x128xf32>
      %113 = arith.addf %102, %112 : vector<96x128xf32>
      %c24_i32_105 = arith.constant 24 : i32
      %114 = arith.addi %60, %c24_i32_105 : i32
      %c2_i32_106 = arith.constant 2 : i32
      %115 = arith.addi %114, %c2_i32_106 : i32
      %c7_i32_107 = arith.constant 7 : i32
      %116 = arith.addi %115, %c7_i32_107 : i32
      %117 = arith.index_cast %116 : i32 to index
      %c0_108 = arith.constant 0 : index
      %118 = vector.load %arg18[%117, %c0_108] : memref<448x128xf32, #tpu.memory_space<vmem>>, vector<96x128xf32>
      %119 = arith.truncf %118 : vector<96x128xf32> to vector<96x128xbf16>
      %c5 = arith.constant 5 : index
      %c0_109 = arith.constant 0 : index
      %c0_110 = arith.constant 0 : index
      %120 = vector.load %arg12[%c5, %c0_109, %c0_110] : memref<9x128x128xbf16, #tpu.memory_space<vmem>>, vector<1x128x128xbf16>
      %121 = vector.shape_cast %120 : vector<1x128x128xbf16> to vector<128x128xbf16>
      %cst_111 = arith.constant dense<0.000000e+00> : vector<96x128xf32>
      %122 = tpu.matmul %119, %121, %cst_111 {dimension_numbers = #tpu.dot_dimension_numbers<[1], [0], [0], [1], [0, 0, 1, 1], [], []>} : vector<96x128xbf16>, vector<128x128xbf16>, vector<96x128xf32> -> vector<96x128xf32>
      %123 = arith.addf %113, %122 : vector<96x128xf32>
      %c48_i32 = arith.constant 48 : i32
      %124 = arith.addi %60, %c48_i32 : i32
      %c0_i32_112 = arith.constant 0 : i32
      %125 = arith.addi %124, %c0_i32_112 : i32
      %c7_i32_113 = arith.constant 7 : i32
      %126 = arith.addi %125, %c7_i32_113 : i32
      %127 = arith.index_cast %126 : i32 to index
      %c0_114 = arith.constant 0 : index
      %128 = vector.load %arg18[%127, %c0_114] : memref<448x128xf32, #tpu.memory_space<vmem>>, vector<96x128xf32>
      %129 = arith.truncf %128 : vector<96x128xf32> to vector<96x128xbf16>
      %c6 = arith.constant 6 : index
      %c0_115 = arith.constant 0 : index
      %c0_116 = arith.constant 0 : index
      %130 = vector.load %arg12[%c6, %c0_115, %c0_116] : memref<9x128x128xbf16, #tpu.memory_space<vmem>>, vector<1x128x128xbf16>
      %131 = vector.shape_cast %130 : vector<1x128x128xbf16> to vector<128x128xbf16>
      %cst_117 = arith.constant dense<0.000000e+00> : vector<96x128xf32>
      %132 = tpu.matmul %129, %131, %cst_117 {dimension_numbers = #tpu.dot_dimension_numbers<[1], [0], [0], [1], [0, 0, 1, 1], [], []>} : vector<96x128xbf16>, vector<128x128xbf16>, vector<96x128xf32> -> vector<96x128xf32>
      %133 = arith.addf %123, %132 : vector<96x128xf32>
      %c48_i32_118 = arith.constant 48 : i32
      %134 = arith.addi %60, %c48_i32_118 : i32
      %c1_i32_119 = arith.constant 1 : i32
      %135 = arith.addi %134, %c1_i32_119 : i32
      %c7_i32_120 = arith.constant 7 : i32
      %136 = arith.addi %135, %c7_i32_120 : i32
      %137 = tpu.assume_multiple %136, 8 : i32
      %138 = arith.index_cast %137 : i32 to index
      %c0_121 = arith.constant 0 : index
      %139 = vector.load %arg18[%138, %c0_121] : memref<448x128xf32, #tpu.memory_space<vmem>>, vector<96x128xf32>
      %140 = arith.truncf %139 : vector<96x128xf32> to vector<96x128xbf16>
      %c7 = arith.constant 7 : index
      %c0_122 = arith.constant 0 : index
      %c0_123 = arith.constant 0 : index
      %141 = vector.load %arg12[%c7, %c0_122, %c0_123] : memref<9x128x128xbf16, #tpu.memory_space<vmem>>, vector<1x128x128xbf16>
      %142 = vector.shape_cast %141 : vector<1x128x128xbf16> to vector<128x128xbf16>
      %cst_124 = arith.constant dense<0.000000e+00> : vector<96x128xf32>
      %143 = tpu.matmul %140, %142, %cst_124 {dimension_numbers = #tpu.dot_dimension_numbers<[1], [0], [0], [1], [0, 0, 1, 1], [], []>} : vector<96x128xbf16>, vector<128x128xbf16>, vector<96x128xf32> -> vector<96x128xf32>
      %144 = arith.addf %133, %143 : vector<96x128xf32>
      %c48_i32_125 = arith.constant 48 : i32
      %145 = arith.addi %60, %c48_i32_125 : i32
      %c2_i32_126 = arith.constant 2 : i32
      %146 = arith.addi %145, %c2_i32_126 : i32
      %c7_i32_127 = arith.constant 7 : i32
      %147 = arith.addi %146, %c7_i32_127 : i32
      %148 = arith.index_cast %147 : i32 to index
      %c0_128 = arith.constant 0 : index
      %149 = vector.load %arg18[%148, %c0_128] : memref<448x128xf32, #tpu.memory_space<vmem>>, vector<96x128xf32>
      %150 = arith.truncf %149 : vector<96x128xf32> to vector<96x128xbf16>
      %c8 = arith.constant 8 : index
      %c0_129 = arith.constant 0 : index
      %c0_130 = arith.constant 0 : index
      %151 = vector.load %arg12[%c8, %c0_129, %c0_130] : memref<9x128x128xbf16, #tpu.memory_space<vmem>>, vector<1x128x128xbf16>
      %152 = vector.shape_cast %151 : vector<1x128x128xbf16> to vector<128x128xbf16>
      %cst_131 = arith.constant dense<0.000000e+00> : vector<96x128xf32>
      %153 = tpu.matmul %150, %152, %cst_131 {dimension_numbers = #tpu.dot_dimension_numbers<[1], [0], [0], [1], [0, 0, 1, 1], [], []>} : vector<96x128xbf16>, vector<128x128xbf16>, vector<96x128xf32> -> vector<96x128xf32>
      %154 = arith.addf %144, %153 : vector<96x128xf32>
      %155 = vector.broadcast %56 : vector<1x128xf32> to vector<96x128xf32>
      %156 = arith.addf %154, %155 : vector<96x128xf32>
      %c64_i32 = arith.constant 64 : i32
      %157 = arith.muli %arg19, %c64_i32 : i32
      %158 = tpu.assume_multiple %157, 8 : i32
      %159 = arith.index_cast %158 : i32 to index
      %c0_132 = arith.constant 0 : index
      %160 = vector.load %arg1[%159, %c0_132] : memref<256x32xf32, #tpu.memory_space<vmem>>, vector<64x32xf32>
      %161 = arith.truncf %160 : vector<64x32xf32> to vector<64x32xbf16>
      %c0_133 = arith.constant 0 : index
      %c0_134 = arith.constant 0 : index
      %162 = vector.load %arg14[%c0_133, %c0_134] : memref<32x128xbf16, #tpu.memory_space<vmem>>, vector<32x128xbf16>
      %cst_135 = arith.constant dense<0.000000e+00> : vector<64x128xf32>
      %163 = tpu.matmul %161, %162, %cst_135 {dimension_numbers = #tpu.dot_dimension_numbers<[1], [0], [0], [1], [0, 0, 1, 1], [], []>} : vector<64x32xbf16>, vector<32x128xbf16>, vector<64x128xf32> -> vector<64x128xf32>
      %164 = vector.extract_strided_slice %163 {offsets = [0, 0], sizes = [16, 128], strides = [1, 1]} : vector<64x128xf32> to vector<16x128xf32>
      %165 = vector.extract_strided_slice %156 {offsets = [0, 0], sizes = [16, 128], strides = [1, 1]} : vector<96x128xf32> to vector<16x128xf32>
      %166 = vector.broadcast %57 : vector<1x1xf32> to vector<16x128xf32>
      %167 = arith.mulf %165, %166 : vector<16x128xf32>
      %168 = arith.addf %164, %167 : vector<16x128xf32>
      %c4_i32_136 = arith.constant 4 : i32
      %169 = arith.muli %arg19, %c4_i32_136 : i32
      %c0_i32_137 = arith.constant 0 : i32
      %170 = arith.addi %169, %c0_i32_137 : i32
      %c16_i32 = arith.constant 16 : i32
      %171 = arith.muli %170, %c16_i32 : i32
      %172 = tpu.assume_multiple %171, 8 : i32
      %173 = arith.index_cast %172 : i32 to index
      %c0_138 = arith.constant 0 : index
      %174 = vector.load %arg16[%173, %c0_138] : memref<256x128xf32, #tpu.memory_space<vmem>>, vector<16x128xf32>
      tpu.vector_store %arg16[%173, %c0_138], %168 {strides = array<i32>} : memref<256x128xf32, #tpu.memory_space<vmem>>, vector<16x128xf32>,
      %175 = vector.extract_strided_slice %163 {offsets = [16, 0], sizes = [16, 128], strides = [1, 1]} : vector<64x128xf32> to vector<16x128xf32>
      %176 = vector.extract_strided_slice %156 {offsets = [24, 0], sizes = [16, 128], strides = [1, 1]} : vector<96x128xf32> to vector<16x128xf32>
      %177 = vector.broadcast %57 : vector<1x1xf32> to vector<16x128xf32>
      %178 = arith.mulf %176, %177 : vector<16x128xf32>
      %179 = arith.addf %175, %178 : vector<16x128xf32>
      %c4_i32_139 = arith.constant 4 : i32
      %180 = arith.muli %arg19, %c4_i32_139 : i32
      %c1_i32_140 = arith.constant 1 : i32
      %181 = arith.addi %180, %c1_i32_140 : i32
      %c16_i32_141 = arith.constant 16 : i32
      %182 = arith.muli %181, %c16_i32_141 : i32
      %183 = tpu.assume_multiple %182, 8 : i32
      %184 = arith.index_cast %183 : i32 to index
      %c0_142 = arith.constant 0 : index
      %185 = vector.load %arg16[%184, %c0_142] : memref<256x128xf32, #tpu.memory_space<vmem>>, vector<16x128xf32>
      tpu.vector_store %arg16[%184, %c0_142], %179 {strides = array<i32>} : memref<256x128xf32, #tpu.memory_space<vmem>>, vector<16x128xf32>,
      %186 = vector.extract_strided_slice %163 {offsets = [32, 0], sizes = [16, 128], strides = [1, 1]} : vector<64x128xf32> to vector<16x128xf32>
      %187 = vector.extract_strided_slice %156 {offsets = [48, 0], sizes = [16, 128], strides = [1, 1]} : vector<96x128xf32> to vector<16x128xf32>
      %188 = vector.broadcast %57 : vector<1x1xf32> to vector<16x128xf32>
      %189 = arith.mulf %187, %188 : vector<16x128xf32>
      %190 = arith.addf %186, %189 : vector<16x128xf32>
      %c4_i32_143 = arith.constant 4 : i32
      %191 = arith.muli %arg19, %c4_i32_143 : i32
      %c2_i32_144 = arith.constant 2 : i32
      %192 = arith.addi %191, %c2_i32_144 : i32
      %c16_i32_145 = arith.constant 16 : i32
      %193 = arith.muli %192, %c16_i32_145 : i32
      %194 = tpu.assume_multiple %193, 8 : i32
      %195 = arith.index_cast %194 : i32 to index
      %c0_146 = arith.constant 0 : index
      %196 = vector.load %arg16[%195, %c0_146] : memref<256x128xf32, #tpu.memory_space<vmem>>, vector<16x128xf32>
      tpu.vector_store %arg16[%195, %c0_146], %190 {strides = array<i32>} : memref<256x128xf32, #tpu.memory_space<vmem>>, vector<16x128xf32>,
      %197 = vector.extract_strided_slice %163 {offsets = [48, 0], sizes = [16, 128], strides = [1, 1]} : vector<64x128xf32> to vector<16x128xf32>
      %198 = vector.extract_strided_slice %156 {offsets = [72, 0], sizes = [16, 128], strides = [1, 1]} : vector<96x128xf32> to vector<16x128xf32>
      %199 = vector.broadcast %57 : vector<1x1xf32> to vector<16x128xf32>
      %200 = arith.mulf %198, %199 : vector<16x128xf32>
      %201 = arith.addf %197, %200 : vector<16x128xf32>
      %c4_i32_147 = arith.constant 4 : i32
      %202 = arith.muli %arg19, %c4_i32_147 : i32
      %c3_i32 = arith.constant 3 : i32
      %203 = arith.addi %202, %c3_i32 : i32
      %c16_i32_148 = arith.constant 16 : i32
      %204 = arith.muli %203, %c16_i32_148 : i32
      %205 = tpu.assume_multiple %204, 8 : i32
      %206 = arith.index_cast %205 : i32 to index
      %c0_149 = arith.constant 0 : index
      %207 = vector.load %arg16[%206, %c0_149] : memref<256x128xf32, #tpu.memory_space<vmem>>, vector<16x128xf32>
      tpu.vector_store %arg16[%206, %c0_149], %201 {strides = array<i32>} : memref<256x128xf32, #tpu.memory_space<vmem>>, vector<16x128xf32>,
    }
    %c4_i32_70 = arith.constant 4 : i32
    return
  }
  func.func @transform_0(%arg0: i32) -> (i32, i32) {
    %c0_i32 = arith.constant 0 : i32
    %c0_i32_0 = arith.constant 0 : i32
    return %arg0, %c0_i32 : i32, i32
  }
  func.func @transform_1(%arg0: i32) -> (i32, i32) {
    %c0_i32 = arith.constant 0 : i32
    %c0_i32_0 = arith.constant 0 : i32
    %c0_i32_1 = arith.constant 0 : i32
    return %c0_i32, %c0_i32_0 : i32, i32
  }
  func.func @transform_2(%arg0: i32) -> (i32, i32) {
    %c0_i32 = arith.constant 0 : i32
    %c0_i32_0 = arith.constant 0 : i32
    %c0_i32_1 = arith.constant 0 : i32
    return %c0_i32, %c0_i32_0 : i32, i32
  }
  func.func @transform_3(%arg0: i32) -> (i32, i32) {
    %c0_i32 = arith.constant 0 : i32
    %c0_i32_0 = arith.constant 0 : i32
    %c0_i32_1 = arith.constant 0 : i32
    return %c0_i32, %c0_i32_0 : i32, i32
  }
  func.func @transform_4(%arg0: i32) -> (i32, i32) {
    %c0_i32 = arith.constant 0 : i32
    %c0_i32_0 = arith.constant 0 : i32
    %c0_i32_1 = arith.constant 0 : i32
    return %c0_i32, %c0_i32_0 : i32, i32
  }
  func.func @transform_5(%arg0: i32) -> (i32, i32, i32) {
    %c0_i32 = arith.constant 0 : i32
    %c0_i32_0 = arith.constant 0 : i32
    %c0_i32_1 = arith.constant 0 : i32
    %c0_i32_2 = arith.constant 0 : i32
    return %c0_i32, %c0_i32_0, %c0_i32_1 : i32, i32, i32
  }
  func.func @transform_6(%arg0: i32) -> (i32, i32) {
    %c0_i32 = arith.constant 0 : i32
    %c0_i32_0 = arith.constant 0 : i32
    %c0_i32_1 = arith.constant 0 : i32
    return %c0_i32, %c0_i32_0 : i32, i32
  }
  func.func @transform_7(%arg0: i32) -> (i32, i32) {
    %c0_i32 = arith.constant 0 : i32
    %c0_i32_0 = arith.constant 0 : i32
    %c0_i32_1 = arith.constant 0 : i32
    return %c0_i32, %c0_i32_0 : i32, i32
  }
  func.func @transform_8(%arg0: i32) -> (i32, i32) {
    %c0_i32 = arith.constant 0 : i32
    %c0_i32_0 = arith.constant 0 : i32
    %c0_i32_1 = arith.constant 0 : i32
    return %c0_i32, %c0_i32_0 : i32, i32
  }
  func.func @transform_9(%arg0: i32) -> (i32, i32) {
    %c0_i32 = arith.constant 0 : i32
    %c0_i32_0 = arith.constant 0 : i32
    %c0_i32_1 = arith.constant 0 : i32
    return %c0_i32, %c0_i32_0 : i32, i32
  }
  func.func @transform_10(%arg0: i32) -> (i32, i32) {
    %c0_i32 = arith.constant 0 : i32
    %c0_i32_0 = arith.constant 0 : i32
    %c0_i32_1 = arith.constant 0 : i32
    return %c0_i32, %c0_i32_0 : i32, i32
  }
  func.func @transform_11(%arg0: i32) -> (i32, i32, i32) {
    %c0_i32 = arith.constant 0 : i32
    %c0_i32_0 = arith.constant 0 : i32
    %c0_i32_1 = arith.constant 0 : i32
    %c0_i32_2 = arith.constant 0 : i32
    return %c0_i32, %c0_i32_0, %c0_i32_1 : i32, i32, i32
  }
  func.func @transform_12(%arg0: i32) -> (i32, i32) {
    %c0_i32 = arith.constant 0 : i32
    %c0_i32_0 = arith.constant 0 : i32
    %c0_i32_1 = arith.constant 0 : i32
    return %c0_i32, %c0_i32_0 : i32, i32
  }
  func.func @transform_13(%arg0: i32) -> (i32, i32) {
    %c0_i32 = arith.constant 0 : i32
    %c0_i32_0 = arith.constant 0 : i32
    %c0_i32_1 = arith.constant 0 : i32
    return %c0_i32, %c0_i32_0 : i32, i32
  }
  func.func @transform_14(%arg0: i32) -> (i32, i32) {
    %c0_i32 = arith.constant 0 : i32
    %c0_i32_0 = arith.constant 0 : i32
    %c0_i32_1 = arith.constant 0 : i32
    return %c0_i32, %c0_i32_0 : i32, i32
  }
  func.func @transform_15(%arg0: i32) -> (i32, i32) {
    %c0_i32 = arith.constant 0 : i32
    %c0_i32_0 = arith.constant 0 : i32
    return %arg0, %c0_i32 : i32, i32
  }
}

</mosaic_0001>

<llo_original>
// kernel: resnet_block_2d.1
$region0: #{resnet_block_2d.1}
  #allocation0 [shape = 'u32[]', space=smem, size = 0x4, offset = 0x4, fixed_abs, tag = 'smem constant byte address 0x4 - core index']
  #allocation1 [shape = 'u32[144,128]{1,0:T(1,128)}', space=vmem, size = 0x12000, scoped, tag = 'internal scratch']
  #allocation2 [shape = 'f32[448,32]{1,0:T(8,128)}', space=vmem, size = 0x38000, scoped, tag = 'scratch operand']
  #allocation3 [shape = 'f32[448,128]{1,0:T(8,128)}', space=vmem, size = 0x38000, scoped, tag = 'scratch operand']
  #allocation4 [shape = 'f32[1,1]{1,0:T(1,128)S(1)}', space=vmem, size = 0x200, scoped, tag = 'scoped memory for resnet_block_2d.1']
  %s0 = inlined_call_operand.vmem [shape: f32[512,32], index: 0, kind: input, shape index: {}]
  %s1 = inlined_call_operand.vmem [shape: f32[1,32], index: 1, kind: input, shape index: {}]
  %s2 = inlined_call_operand.vmem [shape: f32[1,32], index: 2, kind: input, shape index: {}]
  %s3 = inlined_call_operand.vmem [shape: f32[32,8], index: 3, kind: input, shape index: {}]
  %s4 = inlined_call_operand.vmem [shape: f32[8,32], index: 4, kind: input, shape index: {}]
  %s5 = inlined_call_operand.vmem [shape: bf16[9,32,128], index: 5, kind: input, shape index: {}]
  %s6 = inlined_call_operand.vmem [shape: f32[1,128], index: 6, kind: input, shape index: {}]
  %s7 = inlined_call_operand.vmem [shape: f32[1,128], index: 7, kind: input, shape index: {}]
  %s8 = inlined_call_operand.vmem [shape: f32[1,128], index: 8, kind: input, shape index: {}]
  %s9 = inlined_call_operand.vmem [shape: f32[128,8], index: 9, kind: input, shape index: {}]
  %s10 = inlined_call_operand.vmem [shape: f32[8,128], index: 10, kind: input, shape index: {}]
  %s11 = inlined_call_operand.vmem [shape: bf16[9,128,128], index: 11, kind: input, shape index: {}]
  %s12 = inlined_call_operand.vmem [shape: f32[1,128], index: 12, kind: input, shape index: {}]
  %s13 = inlined_call_operand.vmem [shape: bf16[32,128], index: 13, kind: input, shape index: {}]
  %s14 = inlined_call_operand.<no memory space> [shape: f32[1,1], index: 14, kind: input, shape index: {}]
  %s15 = inlined_call_operand.vmem [shape: f32[512,128], index: 15, kind: output, shape index: {}]
  %s16 = sld [smem:[#allocation0]]
  $region128: #{resnet_block_2d.1} parent=0
    _
  %s18 = ssub.s32 1, %s16
  %s19 = scalar_select 0, %s18, %s16
  %v20 = vstv %s14
  %21 = vst [vmem:[#allocation4] sm:$0x1] %v20
  loop: start=0, step=1, limit=4
  $region2: #{resnet_block_2d.1} parent=0 // loop_pre_header
    _
  $region3: #{resnet_block_2d.1} parent=0 // loop_header
    %s23 = sphi 0, %s27
    %p24 = scmp.ge.s32.totalorder %s23, 4
    %s33 = sphi 0, %s35
    %s36 = sphi 0, %s33
    %s37 = sphi 0, %s36
    %s53 = sphi 0, %s37
    %s57 = sphi 0, %s57
    %s59 = sphi 0, %s57
    %s60 = sphi 0, %s59
    %s74 = sphi 0, %s60
    %s78 = sphi 0, %s78
    %s80 = sphi 0, %s78
    %s81 = sphi 0, %s80
    %s95 = sphi 0, %s81
    %s99 = sphi 0, %s99
    %s101 = sphi 0, %s99
    %s102 = sphi 0, %s101
    %s116 = sphi 0, %s102
    %s120 = sphi 0, %s120
    %s122 = sphi 0, %s120
    %s123 = sphi 0, %s122
    %s137 = sphi 0, %s123
    %s141 = sphi 0, %s141
    %s143 = sphi 0, %s141
    %s144 = sphi 0, %s143
    %s158 = sphi 0, %s144
    %s162 = sphi 0, %s162
    %s164 = sphi 0, %s162
    %s165 = sphi 0, %s164
    %s179 = sphi 0, %s165
    %s183 = sphi 0, %s183
    %s185 = sphi 0, %s183
    %s186 = sphi 0, %s185
    %s200 = sphi 0, %s186
    %s204 = sphi 0, %s204
    %s206 = sphi 0, %s204
    %s207 = sphi 0, %s206
    %s221 = sphi 0, %s207
    %s225 = sphi 0, %s225
    %s227 = sphi 0, %s225
    %s228 = sphi 0, %s227
    %s242 = sphi 0, %s228
    %s246 = sphi 0, %s246
    %s248 = sphi 0, %s246
    %s249 = sphi 0, %s248
    %s263 = sphi 0, %s249
    %s267 = sphi 0, %s267
    %s269 = sphi 0, %s267
    %s270 = sphi 0, %s269
    %s284 = sphi 0, %s270
    %s288 = sphi 0, %s288
    %s290 = sphi 0, %s288
    %s291 = sphi 0, %s290
    %s305 = sphi 0, %s291
    %s309 = sphi 0, %s309
    %s311 = sphi 0, %s309
    %s312 = sphi 0, %s311
    %s326 = sphi 0, %s312
    %s330 = sphi 0, %s330
    %s332 = sphi 0, %s330
    %s333 = sphi 0, %s332
    %s347 = sphi 0, %s333
    %s353 = sphi 0, %s355
    %s356 = sphi 0, %s353
    %s357 = sphi 0, %s356
    %s373 = sphi 0, %s357
  $region4: #{resnet_block_2d.1} parent=0 // loop_header_branch
    %26 = sbr.rel (%p24) target = $region8
  $region5: #{resnet_block_2d.1} parent=0 // loop_body
    %s28 = ssub.s32 %s23, 1
    %s29 = ssub.s32 %s23, 2
    %s30 = sadd.s32 %s23, 1
    %s31 = ssub.s32 %s23, %s30
    %p32 = scmp.eq.s32.totalorder %s31, 0
    %s34 = sadd.s32 %s33, 1
    %s35 = scalar_select %p32, %s33, %s34
    %p38 = pneg %p32
    %p39 = scmp.eq.s32.totalorder %s23, 1
    %p40 = por %p38, %p39
    %p41 = scmp.ne.s32.totalorder %s33, %s36
    %p42 = scmp.eq.s32.totalorder %s23, 0
    %p43 = por %p41, %p42
    %p44 = scmp.ne.s32.totalorder %s33, %s36
    %p45 = scmp.eq.s32.totalorder %s28, 1
    %p46 = por %p44, %p45
    %p47 = scmp.ne.s32.totalorder %s36, %s37
    %p48 = scmp.eq.s32.totalorder %s28, 0
    %p49 = por %p47, %p48
    %p50 = scmp.ne.s32.totalorder %s36, %s37
    %p51 = scmp.eq.s32.totalorder %s29, 1
    %p52 = por %p50, %p51
    %p54 = scmp.ne.s32.totalorder %s37, %s53
    %p55 = scmp.eq.s32.totalorder %s29, 0
    %p56 = por %p54, %p55
    %s58 = sadd.s32 %s57, 1
    %p61 = scmp.eq.s32.totalorder %s23, 1
    %p62 = scmp.ne.s32.totalorder %s57, %s59
    %p63 = scmp.eq.s32.totalorder %s23, 0
    %p64 = por %p62, %p63
    %p65 = scmp.ne.s32.totalorder %s57, %s59
    %p66 = scmp.eq.s32.totalorder %s28, 1
    %p67 = por %p65, %p66
    %p68 = scmp.ne.s32.totalorder %s59, %s60
    %p69 = scmp.eq.s32.totalorder %s28, 0
    %p70 = por %p68, %p69
    %p71 = scmp.ne.s32.totalorder %s59, %s60
    %p72 = scmp.eq.s32.totalorder %s29, 1
    %p73 = por %p71, %p72
    %p75 = scmp.ne.s32.totalorder %s60, %s74
    %p76 = scmp.eq.s32.totalorder %s29, 0
    %p77 = por %p75, %p76
    %s79 = sadd.s32 %s78, 1
    %p82 = scmp.eq.s32.totalorder %s23, 1
    %p83 = scmp.ne.s32.totalorder %s78, %s80
    %p84 = scmp.eq.s32.totalorder %s23, 0
    %p85 = por %p83, %p84
    %p86 = scmp.ne.s32.totalorder %s78, %s80
    %p87 = scmp.eq.s32.totalorder %s28, 1
    %p88 = por %p86, %p87
    %p89 = scmp.ne.s32.totalorder %s80, %s81
    %p90 = scmp.eq.s32.totalorder %s28, 0
    %p91 = por %p89, %p90
    %p92 = scmp.ne.s32.totalorder %s80, %s81
    %p93 = scmp.eq.s32.totalorder %s29, 1
    %p94 = por %p92, %p93
    %p96 = scmp.ne.s32.totalorder %s81, %s95
    %p97 = scmp.eq.s32.totalorder %s29, 0
    %p98 = por %p96, %p97
    %s100 = sadd.s32 %s99, 1
    %p103 = scmp.eq.s32.totalorder %s23, 1
    %p104 = scmp.ne.s32.totalorder %s99, %s101
    %p105 = scmp.eq.s32.totalorder %s23, 0
    %p106 = por %p104, %p105
    %p107 = scmp.ne.s32.totalorder %s99, %s101
    %p108 = scmp.eq.s32.totalorder %s28, 1
    %p109 = por %p107, %p108
    %p110 = scmp.ne.s32.totalorder %s101, %s102
    %p111 = scmp.eq.s32.totalorder %s28, 0
    %p112 = por %p110, %p111
    %p113 = scmp.ne.s32.totalorder %s101, %s102
    %p114 = scmp.eq.s32.totalorder %s29, 1
    %p115 = por %p113, %p114
    %p117 = scmp.ne.s32.totalorder %s102, %s116
    %p118 = scmp.eq.s32.totalorder %s29, 0
    %p119 = por %p117, %p118
    %s121 = sadd.s32 %s120, 1
    %p124 = scmp.eq.s32.totalorder %s23, 1
    %p125 = scmp.ne.s32.totalorder %s120, %s122
    %p126 = scmp.eq.s32.totalorder %s23, 0
    %p127 = por %p125, %p126
    %p128 = scmp.ne.s32.totalorder %s120, %s122
    %p129 = scmp.eq.s32.totalorder %s28, 1
    %p130 = por %p128, %p129
    %p131 = scmp.ne.s32.totalorder %s122, %s123
    %p132 = scmp.eq.s32.totalorder %s28, 0
    %p133 = por %p131, %p132
    %p134 = scmp.ne.s32.totalorder %s122, %s123
    %p135 = scmp.eq.s32.totalorder %s29, 1
    %p136 = por %p134, %p135
    %p138 = scmp.ne.s32.totalorder %s123, %s137
    %p139 = scmp.eq.s32.totalorder %s29, 0
    %p140 = por %p138, %p139
    %s142 = sadd.s32 %s141, 1
    %p145 = scmp.eq.s32.totalorder %s23, 1
    %p146 = scmp.ne.s32.totalorder %s141, %s143
    %p147 = scmp.eq.s32.totalorder %s23, 0
    %p148 = por %p146, %p147
    %p149 = scmp.ne.s32.totalorder %s141, %s143
    %p150 = scmp.eq.s32.totalorder %s28, 1
    %p151 = por %p149, %p150
    %p152 = scmp.ne.s32.totalorder %s143, %s144
    %p153 = scmp.eq.s32.totalorder %s28, 0
    %p154 = por %p152, %p153
    %p155 = scmp.ne.s32.totalorder %s143, %s144
    %p156 = scmp.eq.s32.totalorder %s29, 1
    %p157 = por %p155, %p156
    %p159 = scmp.ne.s32.totalorder %s144, %s158
    %p160 = scmp.eq.s32.totalorder %s29, 0
    %p161 = por %p159, %p160
    %s163 = sadd.s32 %s162, 1
    %p166 = scmp.eq.s32.totalorder %s23, 1
    %p167 = scmp.ne.s32.totalorder %s162, %s164
    %p168 = scmp.eq.s32.totalorder %s23, 0
    %p169 = por %p167, %p168
    %p170 = scmp.ne.s32.totalorder %s162, %s164
    %p171 = scmp.eq.s32.totalorder %s28, 1
    %p172 = por %p170, %p171
    %p173 = scmp.ne.s32.totalorder %s164, %s165
    %p174 = scmp.eq.s32.totalorder %s28, 0
    %p175 = por %p173, %p174
    %p176 = scmp.ne.s32.totalorder %s164, %s165
    %p177 = scmp.eq.s32.totalorder %s29, 1
    %p178 = por %p176, %p177
    %p180 = scmp.ne.s32.totalorder %s165, %s179
    %p181 = scmp.eq.s32.totalorder %s29, 0
    %p182 = por %p180, %p181
    %s184 = sadd.s32 %s183, 1
    %p187 = scmp.eq.s32.totalorder %s23, 1
    %p188 = scmp.ne.s32.totalorder %s183, %s185
    %p189 = scmp.eq.s32.totalorder %s23, 0
    %p190 = por %p188, %p189
    %p191 = scmp.ne.s32.totalorder %s183, %s185
    %p192 = scmp.eq.s32.totalorder %s28, 1
    %p193 = por %p191, %p192
    %p194 = scmp.ne.s32.totalorder %s185, %s186
    %p195 = scmp.eq.s32.totalorder %s28, 0
    %p196 = por %p194, %p195
    %p197 = scmp.ne.s32.totalorder %s185, %s186
    %p198 = scmp.eq.s32.totalorder %s29, 1
    %p199 = por %p197, %p198
    %p201 = scmp.ne.s32.totalorder %s186, %s200
    %p202 = scmp.eq.s32.totalorder %s29, 0
    %p203 = por %p201, %p202
    %s205 = sadd.s32 %s204, 1
    %p208 = scmp.eq.s32.totalorder %s23, 1
    %p209 = scmp.ne.s32.totalorder %s204, %s206
    %p210 = scmp.eq.s32.totalorder %s23, 0
    %p211 = por %p209, %p210
    %p212 = scmp.ne.s32.totalorder %s204, %s206
    %p213 = scmp.eq.s32.totalorder %s28, 1
    %p214 = por %p212, %p213
    %p215 = scmp.ne.s32.totalorder %s206, %s207
    %p216 = scmp.eq.s32.totalorder %s28, 0
    %p217 = por %p215, %p216
    %p218 = scmp.ne.s32.totalorder %s206, %s207
    %p219 = scmp.eq.s32.totalorder %s29, 1
    %p220 = por %p218, %p219
    %p222 = scmp.ne.s32.totalorder %s207, %s221
    %p223 = scmp.eq.s32.totalorder %s29, 0
    %p224 = por %p222, %p223
    %s226 = sadd.s32 %s225, 1
    %p229 = scmp.eq.s32.totalorder %s23, 1
    %p230 = scmp.ne.s32.totalorder %s225, %s227
    %p231 = scmp.eq.s32.totalorder %s23, 0
    %p232 = por %p230, %p231
    %p233 = scmp.ne.s32.totalorder %s225, %s227
    %p234 = scmp.eq.s32.totalorder %s28, 1
    %p235 = por %p233, %p234
    %p236 = scmp.ne.s32.totalorder %s227, %s228
    %p237 = scmp.eq.s32.totalorder %s28, 0
    %p238 = por %p236, %p237
    %p239 = scmp.ne.s32.totalorder %s227, %s228
    %p240 = scmp.eq.s32.totalorder %s29, 1
    %p241 = por %p239, %p240
    %p243 = scmp.ne.s32.totalorder %s228, %s242
    %p244 = scmp.eq.s32.totalorder %s29, 0
    %p245 = por %p243, %p244
    %s247 = sadd.s32 %s246, 1
    %p250 = scmp.eq.s32.totalorder %s23, 1
    %p251 = scmp.ne.s32.totalorder %s246, %s248
    %p252 = scmp.eq.s32.totalorder %s23, 0
    %p253 = por %p251, %p252
    %p254 = scmp.ne.s32.totalorder %s246, %s248
    %p255 = scmp.eq.s32.totalorder %s28, 1
    %p256 = por %p254, %p255
    %p257 = scmp.ne.s32.totalorder %s248, %s249
    %p258 = scmp.eq.s32.totalorder %s28, 0
    %p259 = por %p257, %p258
    %p260 = scmp.ne.s32.totalorder %s248, %s249
    %p261 = scmp.eq.s32.totalorder %s29, 1
    %p262 = por %p260, %p261
    %p264 = scmp.ne.s32.totalorder %s249, %s263
    %p265 = scmp.eq.s32.totalorder %s29, 0
    %p266 = por %p264, %p265
    %s268 = sadd.s32 %s267, 1
    %p271 = scmp.eq.s32.totalorder %s23, 1
    %p272 = scmp.ne.s32.totalorder %s267, %s269
    %p273 = scmp.eq.s32.totalorder %s23, 0
    %p274 = por %p272, %p273
    %p275 = scmp.ne.s32.totalorder %s267, %s269
    %p276 = scmp.eq.s32.totalorder %s28, 1
    %p277 = por %p275, %p276
    %p278 = scmp.ne.s32.totalorder %s269, %s270
    %p279 = scmp.eq.s32.totalorder %s28, 0
    %p280 = por %p278, %p279
    %p281 = scmp.ne.s32.totalorder %s269, %s270
    %p282 = scmp.eq.s32.totalorder %s29, 1
    %p283 = por %p281, %p282
    %p285 = scmp.ne.s32.totalorder %s270, %s284
    %p286 = scmp.eq.s32.totalorder %s29, 0
    %p287 = por %p285, %p286
    %s289 = sadd.s32 %s288, 1
    %p292 = scmp.eq.s32.totalorder %s23, 1
    %p293 = scmp.ne.s32.totalorder %s288, %s290
    %p294 = scmp.eq.s32.totalorder %s23, 0
    %p295 = por %p293, %p294
    %p296 = scmp.ne.s32.totalorder %s288, %s290
    %p297 = scmp.eq.s32.totalorder %s28, 1
    %p298 = por %p296, %p297
    %p299 = scmp.ne.s32.totalorder %s290, %s291
    %p300 = scmp.eq.s32.totalorder %s28, 0
    %p301 = por %p299, %p300
    %p302 = scmp.ne.s32.totalorder %s290, %s291
    %p303 = scmp.eq.s32.totalorder %s29, 1
    %p304 = por %p302, %p303
    %p306 = scmp.ne.s32.totalorder %s291, %s305
    %p307 = scmp.eq.s32.totalorder %s29, 0
    %p308 = por %p306, %p307
    %s310 = sadd.s32 %s309, 1
    %p313 = scmp.eq.s32.totalorder %s23, 1
    %p314 = scmp.ne.s32.totalorder %s309, %s311
    %p315 = scmp.eq.s32.totalorder %s23, 0
    %p316 = por %p314, %p315
    %p317 = scmp.ne.s32.totalorder %s309, %s311
    %p318 = scmp.eq.s32.totalorder %s28, 1
    %p319 = por %p317, %p318
    %p320 = scmp.ne.s32.totalorder %s311, %s312
    %p321 = scmp.eq.s32.totalorder %s28, 0
    %p322 = por %p320, %p321
    %p323 = scmp.ne.s32.totalorder %s311, %s312
    %p324 = scmp.eq.s32.totalorder %s29, 1
    %p325 = por %p323, %p324
    %p327 = scmp.ne.s32.totalorder %s312, %s326
    %p328 = scmp.eq.s32.totalorder %s29, 0
    %p329 = por %p327, %p328
    %s331 = sadd.s32 %s330, 1
    %p334 = scmp.eq.s32.totalorder %s23, 1
    %p335 = scmp.ne.s32.totalorder %s330, %s332
    %p336 = scmp.eq.s32.totalorder %s23, 0
    %p337 = por %p335, %p336
    %p338 = scmp.ne.s32.totalorder %s330, %s332
    %p339 = scmp.eq.s32.totalorder %s28, 1
    %p340 = por %p338, %p339
    %p341 = scmp.ne.s32.totalorder %s332, %s333
    %p342 = scmp.eq.s32.totalorder %s28, 0
    %p343 = por %p341, %p342
    %p344 = scmp.ne.s32.totalorder %s332, %s333
    %p345 = scmp.eq.s32.totalorder %s29, 1
    %p346 = por %p344, %p345
    %p348 = scmp.ne.s32.totalorder %s333, %s347
    %p349 = scmp.eq.s32.totalorder %s29, 0
    %p350 = por %p348, %p349
    %s351 = ssub.s32 %s23, %s30
    %p352 = scmp.eq.s32.totalorder %s351, 0
    %s354 = sadd.s32 %s353, 1
    %s355 = scalar_select %p352, %s353, %s354
    %p358 = pneg %p352
    %p359 = scmp.eq.s32.totalorder %s23, 1
    %p360 = por %p358, %p359
    %p361 = scmp.ne.s32.totalorder %s353, %s356
    %p362 = scmp.eq.s32.totalorder %s23, 0
    %p363 = por %p361, %p362
    %p364 = scmp.ne.s32.totalorder %s353, %s356
    %p365 = scmp.eq.s32.totalorder %s28, 1
    %p366 = por %p364, %p365
    %p367 = scmp.ne.s32.totalorder %s356, %s357
    %p368 = scmp.eq.s32.totalorder %s28, 0
    %p369 = por %p367, %p368
    %p370 = scmp.ne.s32.totalorder %s356, %s357
    %p371 = scmp.eq.s32.totalorder %s29, 1
    %p372 = por %p370, %p371
    %p374 = scmp.ne.s32.totalorder %s357, %s373
    %p375 = scmp.eq.s32.totalorder %s29, 0
    %p376 = por %p374, %p375
    %p377 = scmp.le.s32.totalorder 1, %s23
    %p378 = scmp.lt.s32.totalorder %s23, 3
    %p379 = pnand %p377, %p378
    %p380 = pneg %p379
    // Predicated region
    $region9: #{resnet_block_2d.1} parent=5 // pred_check
      _
    $region10: #{resnet_block_2d.1} parent=5 // pred_check_branch
      %382 = sbr.rel (%p379) target = $region12
    $region11: #{resnet_block_2d.1} parent=5 // pred_region
      %s383 = ssub.s32 %s23, 1
      // Predicated region
      $region13: #{resnet_block_2d.1} parent=11 // pred_check
        %p384 = pneg %p70
      $region14: #{resnet_block_2d.1} parent=11 // pred_check_branch
        %386 = sbr.rel (%p384) target = $region16
      $region15: #{resnet_block_2d.1} parent=11 // pred_region
        _
      $region16: #{resnet_block_2d.1} parent=11 // pred_fallthru
        _
      // Predicated region
      $region17: #{resnet_block_2d.1} parent=11 // pred_check
        %p387 = pneg %p91
      $region18: #{resnet_block_2d.1} parent=11 // pred_check_branch
        %389 = sbr.rel (%p387) target = $region20
      $region19: #{resnet_block_2d.1} parent=11 // pred_region
        _
      $region20: #{resnet_block_2d.1} parent=11 // pred_fallthru
        _
      // Predicated region
      $region21: #{resnet_block_2d.1} parent=11 // pred_check
        %p390 = pneg %p112
      $region22: #{resnet_block_2d.1} parent=11 // pred_check_branch
        %392 = sbr.rel (%p390) target = $region24
      $region23: #{resnet_block_2d.1} parent=11 // pred_region
        _
      $region24: #{resnet_block_2d.1} parent=11 // pred_fallthru
        _
      // Predicated region
      $region25: #{resnet_block_2d.1} parent=11 // pred_check
        %p393 = pneg %p133
      $region26: #{resnet_block_2d.1} parent=11 // pred_check_branch
        %395 = sbr.rel (%p393) target = $region28
      $region27: #{resnet_block_2d.1} parent=11 // pred_region
        _
      $region28: #{resnet_block_2d.1} parent=11 // pred_fallthru
        _
      // Predicated region
      $region29: #{resnet_block_2d.1} parent=11 // pred_check
        %p396 = pneg %p154
      $region30: #{resnet_block_2d.1} parent=11 // pred_check_branch
        %398 = sbr.rel (%p396) target = $region32
      $region31: #{resnet_block_2d.1} parent=11 // pred_region
        _
      $region32: #{resnet_block_2d.1} parent=11 // pred_fallthru
        _
      // Predicated region
      $region33: #{resnet_block_2d.1} parent=11 // pred_check
        %p399 = pneg %p175
      $region34: #{resnet_block_2d.1} parent=11 // pred_check_branch
        %401 = sbr.rel (%p399) target = $region36
      $region35: #{resnet_block_2d.1} parent=11 // pred_region
        _
      $region36: #{resnet_block_2d.1} parent=11 // pred_fallthru
        _
      // Predicated region
      $region37: #{resnet_block_2d.1} parent=11 // pred_check
        %p402 = pneg %p196
      $region38: #{resnet_block_2d.1} parent=11 // pred_check_branch
        %404 = sbr.rel (%p402) target = $region40
      $region39: #{resnet_block_2d.1} parent=11 // pred_region
        _
      $region40: #{resnet_block_2d.1} parent=11 // pred_fallthru
        _
      // Predicated region
      $region41: #{resnet_block_2d.1} parent=11 // pred_check
        %p405 = pneg %p217
      $region42: #{resnet_block_2d.1} parent=11 // pred_check_branch
        %407 = sbr.rel (%p405) target = $region44
      $region43: #{resnet_block_2d.1} parent=11 // pred_region
        _
      $region44: #{resnet_block_2d.1} parent=11 // pred_fallthru
        _
      // Predicated region
      $region45: #{resnet_block_2d.1} parent=11 // pred_check
        %p408 = pneg %p238
      $region46: #{resnet_block_2d.1} parent=11 // pred_check_branch
        %410 = sbr.rel (%p408) target = $region48
      $region47: #{resnet_block_2d.1} parent=11 // pred_region
        _
      $region48: #{resnet_block_2d.1} parent=11 // pred_fallthru
        _
      // Predicated region
      $region49: #{resnet_block_2d.1} parent=11 // pred_check
        %p411 = pneg %p259
      $region50: #{resnet_block_2d.1} parent=11 // pred_check_branch
        %413 = sbr.rel (%p411) target = $region52
      $region51: #{resnet_block_2d.1} parent=11 // pred_region
        _
      $region52: #{resnet_block_2d.1} parent=11 // pred_fallthru
        _
      // Predicated region
      $region53: #{resnet_block_2d.1} parent=11 // pred_check
        %p414 = pneg %p280
      $region54: #{resnet_block_2d.1} parent=11 // pred_check_branch
        %416 = sbr.rel (%p414) target = $region56
      $region55: #{resnet_block_2d.1} parent=11 // pred_region
        _
      $region56: #{resnet_block_2d.1} parent=11 // pred_fallthru
        _
      // Predicated region
      $region57: #{resnet_block_2d.1} parent=11 // pred_check
        %p417 = pneg %p301
      $region58: #{resnet_block_2d.1} parent=11 // pred_check_branch
        %419 = sbr.rel (%p417) target = $region60
      $region59: #{resnet_block_2d.1} parent=11 // pred_region
        _
      $region60: #{resnet_block_2d.1} parent=11 // pred_fallthru
        _
      // Predicated region
      $region61: #{resnet_block_2d.1} parent=11 // pred_check
        %p420 = pneg %p322
      $region62: #{resnet_block_2d.1} parent=11 // pred_check_branch
        %422 = sbr.rel (%p420) target = $region64
      $region63: #{resnet_block_2d.1} parent=11 // pred_region
        _
      $region64: #{resnet_block_2d.1} parent=11 // pred_fallthru
        _
      // Predicated region
      $region65: #{resnet_block_2d.1} parent=11 // pred_check
        %p423 = pneg %p343
      $region66: #{resnet_block_2d.1} parent=11 // pred_check_branch
        %425 = sbr.rel (%p423) target = $region68
      $region67: #{resnet_block_2d.1} parent=11 // pred_region
        _
      $region68: #{resnet_block_2d.1} parent=11 // pred_fallthru
        _
    $region12: #{resnet_block_2d.1} parent=5 // pred_fallthru
      _
    %p426 = scmp.lt.s32.totalorder %s23, 2
    // Predicated region
    $region69: #{resnet_block_2d.1} parent=5 // pred_check
      %p427 = pneg %p426
    $region70: #{resnet_block_2d.1} parent=5 // pred_check_branch
      %429 = sbr.rel (%p427) target = $region72
    $region71: #{resnet_block_2d.1} parent=5 // pred_region
      // Predicated region
      $region73: #{resnet_block_2d.1} parent=71 // pred_check
        %p430 = pneg %p43
      $region74: #{resnet_block_2d.1} parent=71 // pred_check_branch
        %432 = sbr.rel (%p430) target = $region76
      $region75: #{resnet_block_2d.1} parent=71 // pred_region
        %s433 = smul.u32 32, %s23
        %p434 = scmp.lt.s32.totalorder %s433, 63
        %s435 = scalar_select %p434, %s433, 63
        %s436 = smul.addr %s435, 8
        %s437 = scalar_lea.vmem %s0, %s436
        %s438 = smul.u32 32, %s23
      $region76: #{resnet_block_2d.1} parent=71 // pred_fallthru
        _
    $region72: #{resnet_block_2d.1} parent=5 // pred_fallthru
      _
    %p439 = scmp.le.s32.totalorder 1, %s23
    %p440 = scmp.lt.s32.totalorder %s23, 3
    %p441 = pnand %p439, %p440
    %p442 = pneg %p441
    // Predicated region
    $region77: #{resnet_block_2d.1} parent=5 // pred_check
      _
    $region78: #{resnet_block_2d.1} parent=5 // pred_check_branch
      %444 = sbr.rel (%p441) target = $region80
    $region79: #{resnet_block_2d.1} parent=5 // pred_region
      %s445 = ssub.s32 %s23, 1
      %s446 = smul.u32 32, %s28
      %p447 = scmp.lt.s32.totalorder %s446, 63
      %s448 = scalar_select %p447, %s446, 63
      %s449 = smul.addr %s448, 8
      %s450 = scalar_lea.vmem %s0, %s449
      %p451 = pneg %p49
      %p452 = pneg %p46
      %p453 = pneg %p70
      %p454 = pneg %p67
      %p455 = pneg %p91
      %p456 = pneg %p88
      %p457 = pneg %p112
      %p458 = pneg %p109
      %p459 = pneg %p133
      %p460 = pneg %p130
      %p461 = pneg %p154
      %p462 = pneg %p151
      %p463 = pneg %p175
      %p464 = pneg %p172
      %p465 = pneg %p196
      %p466 = pneg %p193
      %p467 = pneg %p217
      %p468 = pneg %p214
      %p469 = pneg %p238
      %p470 = pneg %p235
      %p471 = pneg %p259
      %p472 = pneg %p256
      %p473 = pneg %p280
      %p474 = pneg %p277
      %p475 = pneg %p301
      %p476 = pneg %p298
      %p477 = pneg %p322
      %p478 = pneg %p319
      %p479 = pneg %p343
      %p480 = pneg %p340
      %p481 = pneg %p369
      %p482 = pneg %p366
      %s483 = smul.u32 32, %s28
      %p484 = scmp.lt.s32.totalorder %s483, 63
      %s485 = scalar_select %p484, %s483, 63
      %s486 = smul.addr %s485, 8
      %s487 = scalar_lea.vmem %s15, %s486
      %s488 = smul.u32 32, %s28
      %p489 = scmp.lt.s32.totalorder %s488, 63
      %s490 = scalar_select %p489, %s488, 63
      %s491 = smul.addr %s490, 8
      %s492 = scalar_lea.vmem %s0, %s491
      %s493 = smul.u32 32, %s28
      %s494 = smul.u32 32, %s28
      %p495 = scmp.lt.s32.totalorder %s494, 63
      %s496 = scalar_select %p495, %s494, 63
      %s497 = smul.addr %s496, 8
      %s498 = scalar_lea.vmem %s15, %s497
      %s499 = smul.u32 32, %s28
      %vm501 = vcmask 261120
      %502 = vst.msk [vmem:[#allocation2] sm:$0xff] %vm501, 0.0
      %503 = vst.msk [vmem:[#allocation2 + $0x8] sm:$0xff] %vm501, 0.0
      %504 = vst.msk [vmem:[#allocation2 + $0x10] sm:$0xff] %vm501, 0.0
      %505 = vst.msk [vmem:[#allocation2 + $0x18] sm:$0xff] %vm501, 0.0
      %506 = vst.msk [vmem:[#allocation2 + $0x1a0] sm:$0xff] %vm501, 0.0
      %507 = vst.msk [vmem:[#allocation2 + $0x1a8] sm:$0xff] %vm501, 0.0
      %508 = vst.msk [vmem:[#allocation2 + $0x1b0] sm:$0xff] %vm501, 0.0
      %509 = vst.msk [vmem:[#allocation2 + $0x1b8] sm:$0xff] %vm501, 0.0
      %510 = vst [vmem:[#allocation3] sm:$0xff] 0.0
      %511 = vst [vmem:[#allocation3 + $0x8] sm:$0xff] 0.0
      %512 = vst [vmem:[#allocation3 + $0x10] sm:$0xff] 0.0
      %513 = vst [vmem:[#allocation3 + $0x18] sm:$0xff] 0.0
      %514 = vst [vmem:[#allocation3 + $0x1a0] sm:$0xff] 0.0
      %515 = vst [vmem:[#allocation3 + $0x1a8] sm:$0xff] 0.0
      %516 = vst [vmem:[#allocation3 + $0x1b0] sm:$0xff] 0.0
      %517 = vst [vmem:[#allocation3 + $0x1b8] sm:$0xff] 0.0
      loop: start=0, step=1, limit=4
      $region81: #{resnet_block_2d.1} parent=79 // loop_pre_header
        _
      $region82: #{resnet_block_2d.1} parent=79 // loop_header
        %s519 = sphi 0, %s523
        %p520 = scmp.ge.s32.totalorder %s519, 4
        %v524 = vphi 0.0, %v557
        %v525 = vphi 0.0, %v587
      $region83: #{resnet_block_2d.1} parent=79 // loop_header_branch
        %522 = sbr.rel (%p520) target = $region87
      $region84: #{resnet_block_2d.1} parent=79 // loop_body
        %s526 = smul.u32 %s519, 64
        %s527 = scalar_lea.vmem %s492, %s526
        %v528 = vld [vmem:[%s527] sm:$0xff]
        %v529 = vld [vmem:[%s527 + $0x8] sm:$0xff]
        %v530 = vld [vmem:[%s527 + $0x10] sm:$0xff]
        %v531 = vld [vmem:[%s527 + $0x18] sm:$0xff]
        %v532 = vld [vmem:[%s527 + $0x20] sm:$0xff]
        %v533 = vld [vmem:[%s527 + $0x28] sm:$0xff]
        %v534 = vld [vmem:[%s527 + $0x30] sm:$0xff]
        %v535 = vld [vmem:[%s527 + $0x38] sm:$0xff]
        %v536 = vsel %vm501, %v528, 0.0
        %v537 = vsel %vm501, %v529, 0.0
        %v538 = vadd.f32 %v536, %v537
        %v539 = vsel %vm501, %v530, 0.0
        %v540 = vadd.f32 %v538, %v539
        %v541 = vsel %vm501, %v531, 0.0
        %v542 = vadd.f32 %v540, %v541
        %v543 = vsel %vm501, %v532, 0.0
        %v544 = vadd.f32 %v542, %v543
        %v545 = vsel %vm501, %v533, 0.0
        %v546 = vadd.f32 %v544, %v545
        %v547 = vsel %vm501, %v534, 0.0
        %v548 = vadd.f32 %v546, %v547
        %v549 = vsel %vm501, %v535, 0.0
        %v550 = vadd.f32 %v548, %v549
        %v551 = vrot.slane %v550, 4
        %v552 = vadd.f32 %v550, %v551
        %v553 = vrot.slane %v552, 2
        %v554 = vadd.f32 %v552, %v553
        %v555 = vrot.slane %v554, 1
        %v556 = vadd.f32 %v554, %v555
        %v557 = vadd.f32 %v524, %v556
        %v558 = vmul.f32 %v528, %v528
        %v559 = vmul.f32 %v529, %v529
        %v560 = vmul.f32 %v530, %v530
        %v561 = vmul.f32 %v531, %v531
        %v562 = vmul.f32 %v532, %v532
        %v563 = vmul.f32 %v533, %v533
        %v564 = vmul.f32 %v534, %v534
        %v565 = vmul.f32 %v535, %v535
        %v566 = vsel %vm501, %v558, 0.0
        %v567 = vsel %vm501, %v559, 0.0
        %v568 = vadd.f32 %v566, %v567
        %v569 = vsel %vm501, %v560, 0.0
        %v570 = vadd.f32 %v568, %v569
        %v571 = vsel %vm501, %v561, 0.0
        %v572 = vadd.f32 %v570, %v571
        %v573 = vsel %vm501, %v562, 0.0
        %v574 = vadd.f32 %v572, %v573
        %v575 = vsel %vm501, %v563, 0.0
        %v576 = vadd.f32 %v574, %v575
        %v577 = vsel %vm501, %v564, 0.0
        %v578 = vadd.f32 %v576, %v577
        %v579 = vsel %vm501, %v565, 0.0
        %v580 = vadd.f32 %v578, %v579
        %v581 = vrot.slane %v580, 4
        %v582 = vadd.f32 %v580, %v581
        %v583 = vrot.slane %v582, 2
        %v584 = vadd.f32 %v582, %v583
        %v585 = vrot.slane %v584, 1
        %v586 = vadd.f32 %v584, %v585
        %v587 = vadd.f32 %v525, %v586
      $region85: #{resnet_block_2d.1} parent=79 // loop_footer
        %s523 = sadd.s32 1, %s519
      $region86: #{resnet_block_2d.1} parent=79 // loop_footer_branch
        %518 = sbr.rel target = $region82
      $region87: #{resnet_block_2d.1} parent=79 // loop_exit
        _
      %v588 = vld [vmem:[%s3] sm:$0xff]
      %v589 = vld [vmem:[%s3 + $0x8] sm:$0xff]
      %v590 = vld [vmem:[%s3 + $0x10] sm:$0xff]
      %v591 = vld [vmem:[%s3 + $0x18] sm:$0xff]
      %v593 = vsel %vm501, %v524, 0
      %595 = vmatprep.subr.mxu0 0.0
      %596 = vmatpush1.msra.mxu0 %v588
      %597 = vmatprep.subr.mxu0 0.0
      %598 = vmatpush1.msra.mxu0 %v589
      %599 = vmatprep.subr.mxu0 0.0
      %600 = vmatpush1.msra.mxu0 %v590
      %601 = vmatprep.subr.mxu0 0.0
      %602 = vmatpush1.msra.mxu0 %v591
      %603 = vmatprep.subr.mxu0 0.0
      %604 = vmatpush1.msra.mxu0 0.0
      %605 = vmatprep.subr.mxu0 0.0
      %606 = vmatpush1.msra.mxu0 0.0
      %607 = vmatprep.subr.mxu0 0.0
      %608 = vmatpush1.msra.mxu0 0.0
      %609 = vmatprep.subr.mxu0 0.0
      %610 = vmatpush1.msra.mxu0 0.0
      %611 = vmatprep.subr.mxu0 0.0
      %612 = vmatpush1.msra.mxu0 0.0
      %613 = vmatprep.subr.mxu0 0.0
      %614 = vmatpush1.msra.mxu0 0.0
      %615 = vmatprep.subr.mxu0 0.0
      %616 = vmatpush1.msra.mxu0 0.0
      %617 = vmatprep.subr.mxu0 0.0
      %618 = vmatpush1.msra.mxu0 0.0
      %619 = vmatprep.subr.mxu0 0.0
      %620 = vmatpush1.msra.mxu0 0.0
      %621 = vmatprep.subr.mxu0 0.0
      %622 = vmatpush1.msra.mxu0 0.0
      %623 = vmatprep.subr.mxu0 0.0
      %624 = vmatpush1.msra.mxu0 0.0
      %625 = vmatprep.subr.mxu0 0.0
      %626 = vmatpush1.msra.mxu0 0.0
      %627 = vmatprep.subr.mxu0 0.0
      %628 = vmatpush1.msra.mxu0 0.0
      %629 = vmatprep.subr.mxu0 0.0
      %630 = vmatpush1.msra.mxu0 0.0
      %631 = vmatprep.subr.mxu0 0.0
      %632 = vmatpush1.msra.mxu0 0.0
      %633 = vmatprep.subr.mxu0 0.0
      %634 = vmatpush1.msra.mxu0 0.0
      %635 = vmatprep.subr.mxu0 0.0
      %636 = vmatpush1.msra.mxu0 0.0
      %637 = vmatprep.subr.mxu0 0.0
      %638 = vmatpush1.msra.mxu0 0.0
      %639 = vmatprep.subr.mxu0 0.0
      %640 = vmatpush1.msra.mxu0 0.0
      %641 = vmatprep.subr.mxu0 0.0
      %642 = vmatpush1.msra.mxu0 0.0
      %643 = vmatprep.subr.mxu0 0.0
      %644 = vmatpush1.msra.mxu0 0.0
      %645 = vmatprep.subr.mxu0 0.0
      %646 = vmatpush1.msra.mxu0 0.0
      %647 = vmatprep.subr.mxu0 0.0
      %648 = vmatpush1.msra.mxu0 0.0
      %649 = vmatprep.subr.mxu0 0.0
      %650 = vmatpush1.msra.mxu0 0.0
      %651 = vmatprep.subr.mxu0 0.0
      %652 = vmatpush1.msra.mxu0 0.0
      %653 = vmatprep.subr.mxu0 0.0
      %654 = vmatpush1.msra.mxu0 0.0
      %655 = vmatprep.subr.mxu0 0.0
      %656 = vmatpush1.msra.mxu0 0.0
      %657 = vmatprep.subr.mxu0 0.0
      %658 = vmatpush1.msra.mxu0 0.0
      %659 = vmatprep.mubr.f32.mxu0 0.0
      %660 = vmatmul.mubr.f32.gmra.mrb[0].mxu0 %v593
      %v661 = vpop.f32.mrb[0].mxu0
      %v662 = vadd.f32 0.0, %v661
      %v663 = vpop.f32.mrb[0].mxu0
      %664 = vdwg.mxu0
      %v665 = vld [vmem:[%s4] sm:$0xff]
      %vm666 = vcmask 64512
      %v668 = vsel %vm666, %v662, 0
      %670 = vmatprep.subr.mxu0 0.0
      %671 = vmatpush1.msra.mxu0 %v665
      %672 = vmatprep.subr.mxu0 0.0
      %673 = vmatpush1.msra.mxu0 0.0
      %674 = vmatprep.subr.mxu0 0.0
      %675 = vmatpush1.msra.mxu0 0.0
      %676 = vmatprep.subr.mxu0 0.0
      %677 = vmatpush1.msra.mxu0 0.0
      %678 = vmatprep.subr.mxu0 0.0
      %679 = vmatpush1.msra.mxu0 0.0
      %680 = vmatprep.subr.mxu0 0.0
      %681 = vmatpush1.msra.mxu0 0.0
      %682 = vmatprep.subr.mxu0 0.0
      %683 = vmatpush1.msra.mxu0 0.0
      %684 = vmatprep.subr.mxu0 0.0
      %685 = vmatpush1.msra.mxu0 0.0
      %686 = vmatprep.subr.mxu0 0.0
      %687 = vmatpush1.msra.mxu0 0.0
      %688 = vmatprep.subr.mxu0 0.0
      %689 = vmatpush1.msra.mxu0 0.0
      %690 = vmatprep.subr.mxu0 0.0
      %691 = vmatpush1.msra.mxu0 0.0
      %692 = vmatprep.subr.mxu0 0.0
      %693 = vmatpush1.msra.mxu0 0.0
      %694 = vmatprep.subr.mxu0 0.0
      %695 = vmatpush1.msra.mxu0 0.0
      %696 = vmatprep.subr.mxu0 0.0
      %697 = vmatpush1.msra.mxu0 0.0
      %698 = vmatprep.subr.mxu0 0.0
      %699 = vmatpush1.msra.mxu0 0.0
      %700 = vmatprep.subr.mxu0 0.0
      %701 = vmatpush1.msra.mxu0 0.0
      %702 = vmatprep.subr.mxu0 0.0
      %703 = vmatpush1.msra.mxu0 0.0
      %704 = vmatprep.subr.mxu0 0.0
      %705 = vmatpush1.msra.mxu0 0.0
      %706 = vmatprep.subr.mxu0 0.0
      %707 = vmatpush1.msra.mxu0 0.0
      %708 = vmatprep.subr.mxu0 0.0
      %709 = vmatpush1.msra.mxu0 0.0
      %710 = vmatprep.subr.mxu0 0.0
      %711 = vmatpush1.msra.mxu0 0.0
      %712 = vmatprep.subr.mxu0 0.0
      %713 = vmatpush1.msra.mxu0 0.0
      %714 = vmatprep.subr.mxu0 0.0
      %715 = vmatpush1.msra.mxu0 0.0
      %716 = vmatprep.subr.mxu0 0.0
      %717 = vmatpush1.msra.mxu0 0.0
      %718 = vmatprep.subr.mxu0 0.0
      %719 = vmatpush1.msra.mxu0 0.0
      %720 = vmatprep.subr.mxu0 0.0
      %721 = vmatpush1.msra.mxu0 0.0
      %722 = vmatprep.subr.mxu0 0.0
      %723 = vmatpush1.msra.mxu0 0.0
      %724 = vmatprep.subr.mxu0 0.0
      %725 = vmatpush1.msra.mxu0 0.0
      %726 = vmatprep.subr.mxu0 0.0
      %727 = vmatpush1.msra.mxu0 0.0
      %728 = vmatprep.subr.mxu0 0.0
      %729 = vmatpush1.msra.mxu0 0.0
      %730 = vmatprep.subr.mxu0 0.0
      %731 = vmatpush1.msra.mxu0 0.0
      %732 = vmatprep.subr.mxu0 0.0
      %733 = vmatpush1.msra.mxu0 0.0
      %734 = vmatprep.mubr.f32.mxu0 0.0
      %735 = vmatmul.mubr.f32.gmra.mrb[0].mxu0 %v668
      %v736 = vpop.f32.mrb[0].mxu0
      %v737 = vadd.f32 0.0, %v736
      %v738 = vpop.f32.mrb[0].mxu0
      %739 = vdwg.mxu0
      %v741 = vsel %vm501, %v525, 0
      %743 = vmatprep.subr.mxu0 0.0
      %744 = vmatpush1.msra.mxu0 %v588
      %745 = vmatprep.subr.mxu0 0.0
      %746 = vmatpush1.msra.mxu0 %v589
      %747 = vmatprep.subr.mxu0 0.0
      %748 = vmatpush1.msra.mxu0 %v590
      %749 = vmatprep.subr.mxu0 0.0
      %750 = vmatpush1.msra.mxu0 %v591
      %751 = vmatprep.subr.mxu0 0.0
      %752 = vmatpush1.msra.mxu0 0.0
      %753 = vmatprep.subr.mxu0 0.0
      %754 = vmatpush1.msra.mxu0 0.0
      %755 = vmatprep.subr.mxu0 0.0
      %756 = vmatpush1.msra.mxu0 0.0
      %757 = vmatprep.subr.mxu0 0.0
      %758 = vmatpush1.msra.mxu0 0.0
      %759 = vmatprep.subr.mxu0 0.0
      %760 = vmatpush1.msra.mxu0 0.0
      %761 = vmatprep.subr.mxu0 0.0
      %762 = vmatpush1.msra.mxu0 0.0
      %763 = vmatprep.subr.mxu0 0.0
      %764 = vmatpush1.msra.mxu0 0.0
      %765 = vmatprep.subr.mxu0 0.0
      %766 = vmatpush1.msra.mxu0 0.0
      %767 = vmatprep.subr.mxu0 0.0
      %768 = vmatpush1.msra.mxu0 0.0
      %769 = vmatprep.subr.mxu0 0.0
      %770 = vmatpush1.msra.mxu0 0.0
      %771 = vmatprep.subr.mxu0 0.0
      %772 = vmatpush1.msra.mxu0 0.0
      %773 = vmatprep.subr.mxu0 0.0
      %774 = vmatpush1.msra.mxu0 0.0
      %775 = vmatprep.subr.mxu0 0.0
      %776 = vmatpush1.msra.mxu0 0.0
      %777 = vmatprep.subr.mxu0 0.0
      %778 = vmatpush1.msra.mxu0 0.0
      %779 = vmatprep.subr.mxu0 0.0
      %780 = vmatpush1.msra.mxu0 0.0
      %781 = vmatprep.subr.mxu0 0.0
      %782 = vmatpush1.msra.mxu0 0.0
      %783 = vmatprep.subr.mxu0 0.0
      %784 = vmatpush1.msra.mxu0 0.0
      %785 = vmatprep.subr.mxu0 0.0
      %786 = vmatpush1.msra.mxu0 0.0
      %787 = vmatprep.subr.mxu0 0.0
      %788 = vmatpush1.msra.mxu0 0.0
      %789 = vmatprep.subr.mxu0 0.0
      %790 = vmatpush1.msra.mxu0 0.0
      %791 = vmatprep.subr.mxu0 0.0
      %792 = vmatpush1.msra.mxu0 0.0
      %793 = vmatprep.subr.mxu0 0.0
      %794 = vmatpush1.msra.mxu0 0.0
      %795 = vmatprep.subr.mxu0 0.0
      %796 = vmatpush1.msra.mxu0 0.0
      %797 = vmatprep.subr.mxu0 0.0
      %798 = vmatpush1.msra.mxu0 0.0
      %799 = vmatprep.subr.mxu0 0.0
      %800 = vmatpush1.msra.mxu0 0.0
      %801 = vmatprep.subr.mxu0 0.0
      %802 = vmatpush1.msra.mxu0 0.0
      %803 = vmatprep.subr.mxu0 0.0
      %804 = vmatpush1.msra.mxu0 0.0
      %805 = vmatprep.subr.mxu0 0.0
      %806 = vmatpush1.msra.mxu0 0.0
      %807 = vmatprep.mubr.f32.mxu0 0.0
      %808 = vmatmul.mubr.f32.gmra.mrb[0].mxu0 %v741
      %v809 = vpop.f32.mrb[0].mxu0
      %v810 = vadd.f32 0.0, %v809
      %v811 = vpop.f32.mrb[0].mxu0
      %812 = vdwg.mxu0
      %v814 = vsel %vm666, %v810, 0
      %816 = vmatprep.subr.mxu0 0.0
      %817 = vmatpush1.msra.mxu0 %v665
      %818 = vmatprep.subr.mxu0 0.0
      %819 = vmatpush1.msra.mxu0 0.0
      %820 = vmatprep.subr.mxu0 0.0
      %821 = vmatpush1.msra.mxu0 0.0
      %822 = vmatprep.subr.mxu0 0.0
      %823 = vmatpush1.msra.mxu0 0.0
      %824 = vmatprep.subr.mxu0 0.0
      %825 = vmatpush1.msra.mxu0 0.0
      %826 = vmatprep.subr.mxu0 0.0
      %827 = vmatpush1.msra.mxu0 0.0
      %828 = vmatprep.subr.mxu0 0.0
      %829 = vmatpush1.msra.mxu0 0.0
      %830 = vmatprep.subr.mxu0 0.0
      %831 = vmatpush1.msra.mxu0 0.0
      %832 = vmatprep.subr.mxu0 0.0
      %833 = vmatpush1.msra.mxu0 0.0
      %834 = vmatprep.subr.mxu0 0.0
      %835 = vmatpush1.msra.mxu0 0.0
      %836 = vmatprep.subr.mxu0 0.0
      %837 = vmatpush1.msra.mxu0 0.0
      %838 = vmatprep.subr.mxu0 0.0
      %839 = vmatpush1.msra.mxu0 0.0
      %840 = vmatprep.subr.mxu0 0.0
      %841 = vmatpush1.msra.mxu0 0.0
      %842 = vmatprep.subr.mxu0 0.0
      %843 = vmatpush1.msra.mxu0 0.0
      %844 = vmatprep.subr.mxu0 0.0
      %845 = vmatpush1.msra.mxu0 0.0
      %846 = vmatprep.subr.mxu0 0.0
      %847 = vmatpush1.msra.mxu0 0.0
      %848 = vmatprep.subr.mxu0 0.0
      %849 = vmatpush1.msra.mxu0 0.0
      %850 = vmatprep.subr.mxu0 0.0
      %851 = vmatpush1.msra.mxu0 0.0
      %852 = vmatprep.subr.mxu0 0.0
      %853 = vmatpush1.msra.mxu0 0.0
      %854 = vmatprep.subr.mxu0 0.0
      %855 = vmatpush1.msra.mxu0 0.0
      %856 = vmatprep.subr.mxu0 0.0
      %857 = vmatpush1.msra.mxu0 0.0
      %858 = vmatprep.subr.mxu0 0.0
      %859 = vmatpush1.msra.mxu0 0.0
      %860 = vmatprep.subr.mxu0 0.0
      %861 = vmatpush1.msra.mxu0 0.0
      %862 = vmatprep.subr.mxu0 0.0
      %863 = vmatpush1.msra.mxu0 0.0
      %864 = vmatprep.subr.mxu0 0.0
      %865 = vmatpush1.msra.mxu0 0.0
      %866 = vmatprep.subr.mxu0 0.0
      %867 = vmatpush1.msra.mxu0 0.0
      %868 = vmatprep.subr.mxu0 0.0
      %869 = vmatpush1.msra.mxu0 0.0
      %870 = vmatprep.subr.mxu0 0.0
      %871 = vmatpush1.msra.mxu0 0.0
      %872 = vmatprep.subr.mxu0 0.0
      %873 = vmatpush1.msra.mxu0 0.0
      %874 = vmatprep.subr.mxu0 0.0
      %875 = vmatpush1.msra.mxu0 0.0
      %876 = vmatprep.subr.mxu0 0.0
      %877 = vmatpush1.msra.mxu0 0.0
      %878 = vmatprep.subr.mxu0 0.0
      %879 = vmatpush1.msra.mxu0 0.0
      %880 = vmatprep.mubr.f32.mxu0 0.0
      %881 = vmatmul.mubr.f32.gmra.mrb[0].mxu0 %v814
      %v882 = vpop.f32.mrb[0].mxu0
      %v883 = vadd.f32 0.0, %v882
      %v884 = vpop.f32.mrb[0].mxu0
      %885 = vdwg.mxu0
      %v886 = vmul.f32 %v737, %v737
      %v887 = vsub.f32 %v883, %v886
      %v888 = vadd.f32 %v887, 1e-06
      %v889 = vrsqrt.pop %v888
      %v890 = vld [vmem:[%s1] sm:$0x1]
      %v891 = vmul.f32 %v889, %v890
      %v892 = vld [vmem:[%s2] sm:$0x1]
      %v893 = vmul.f32 %v737, %v891
      %v894 = vsub.f32 %v892, %v893
      loop: start=0, step=1, limit=4
      $region88: #{resnet_block_2d.1} parent=79 // loop_pre_header
        _
      $region89: #{resnet_block_2d.1} parent=79 // loop_header
        %s896 = sphi 0, %s900
        %p897 = scmp.ge.s32.totalorder %s896, 4
      $region90: #{resnet_block_2d.1} parent=79 // loop_header_branch
        %899 = sbr.rel (%p897) target = $region94
      $region91: #{resnet_block_2d.1} parent=79 // loop_body
        %s901 = smul.u32 %s896, 64
        %s902 = scalar_lea.vmem %s492, %s901
        %v903 = vld [vmem:[%s902] sm:$0xff]
        %v904 = vld [vmem:[%s902 + $0x8] sm:$0xff]
        %v905 = vld [vmem:[%s902 + $0x10] sm:$0xff]
        %v906 = vld [vmem:[%s902 + $0x18] sm:$0xff]
        %v907 = vld [vmem:[%s902 + $0x20] sm:$0xff]
        %v908 = vld [vmem:[%s902 + $0x28] sm:$0xff]
        %v909 = vld [vmem:[%s902 + $0x30] sm:$0xff]
        %v910 = vld [vmem:[%s902 + $0x38] sm:$0xff]
        %v911 = vlaneseq
        %v912 = vshrl.u32 %v911, 7
        %v913 = vsub.s32 0, %v912
        %v914 = vrot.slane %v891, %v913
        %v915 = vmul.f32 %v903, %v914
        %v916 = vmul.f32 %v904, %v914
        %v917 = vmul.f32 %v905, %v914
        %v918 = vmul.f32 %v906, %v914
        %v919 = vmul.f32 %v907, %v914
        %v920 = vmul.f32 %v908, %v914
        %v921 = vmul.f32 %v909, %v914
        %v922 = vmul.f32 %v910, %v914
        %v924 = vlaneseq
        %v925 = vshrl.u32 %v924, 7
        %v926 = vsub.s32 0, %v925
        %v927 = vrot.slane %v894, %v926
        %v929 = vadd.f32 %v915, %v927
        %v930 = vadd.f32 %v916, %v927
        %v931 = vadd.f32 %v917, %v927
        %v932 = vadd.f32 %v918, %v927
        %v933 = vadd.f32 %v919, %v927
        %v934 = vadd.f32 %v920, %v927
        %v935 = vadd.f32 %v921, %v927
        %v936 = vadd.f32 %v922, %v927
        %v937 = vmul.f32 %v929, 0.5
        %v938 = vmul.f32 %v930, 0.5
        %v939 = vmul.f32 %v931, 0.5
        %v940 = vmul.f32 %v932, 0.5
        %v941 = vmul.f32 %v933, 0.5
        %v942 = vmul.f32 %v934, 0.5
        %v943 = vmul.f32 %v935, 0.5
        %v944 = vmul.f32 %v936, 0.5
        %v945 = vtanh.pop %v937
        %v946 = vtanh.pop %v938
        %v947 = vtanh.pop %v939
        %v948 = vtanh.pop %v940
        %v949 = vtanh.pop %v941
        %v950 = vtanh.pop %v942
        %v951 = vtanh.pop %v943
        %v952 = vtanh.pop %v944
        %v953 = vadd.f32 %v945, 1.0
        %v954 = vadd.f32 %v946, 1.0
        %v955 = vadd.f32 %v947, 1.0
        %v956 = vadd.f32 %v948, 1.0
        %v957 = vadd.f32 %v949, 1.0
        %v958 = vadd.f32 %v950, 1.0
        %v959 = vadd.f32 %v951, 1.0
        %v960 = vadd.f32 %v952, 1.0
        %v961 = vmul.f32 %v937, %v953
        %v962 = vmul.f32 %v938, %v954
        %v963 = vmul.f32 %v939, %v955
        %v964 = vmul.f32 %v940, %v956
        %v965 = vmul.f32 %v941, %v957
        %v966 = vmul.f32 %v942, %v958
        %v967 = vmul.f32 %v943, %v959
        %v968 = vmul.f32 %v944, %v960
        %s969 = smul.u32 %s896, 4
        %s970 = sadd.s32 %s969, 1
        %s971 = smul.u32 %s970, 24
        %s972 = sadd.s32 %s971, 8
        %s973 = scalar_lea.vmem [#allocation2], %s972
        %974 = vst.msk [vmem:[%s973] sm:$0xff] %vm501, %v961
        %975 = vst.msk [vmem:[%s973 + $0x8] sm:$0xff] %vm501, %v962
        %s976 = sadd.s32 %s971, 24
        %s977 = scalar_lea.vmem [#allocation2], %s976
        %978 = vst.msk [vmem:[%s977] sm:$0xff] %vm501, 0.0
        %s979 = sadd.s32 %s969, 2
        %s980 = smul.u32 %s979, 24
        %s981 = sadd.s32 %s980, 8
        %s982 = scalar_lea.vmem [#allocation2], %s981
        %983 = vst.msk [vmem:[%s982] sm:$0xff] %vm501, %v963
        %984 = vst.msk [vmem:[%s982 + $0x8] sm:$0xff] %vm501, %v964
        %s985 = sadd.s32 %s980, 24
        %s986 = scalar_lea.vmem [#allocation2], %s985
        %987 = vst.msk [vmem:[%s986] sm:$0xff] %vm501, 0.0
        %s988 = sadd.s32 %s969, 3
        %s989 = smul.u32 %s988, 24
        %s990 = sadd.s32 %s989, 8
        %s991 = scalar_lea.vmem [#allocation2], %s990
        %992 = vst.msk [vmem:[%s991] sm:$0xff] %vm501, %v965
        %993 = vst.msk [vmem:[%s991 + $0x8] sm:$0xff] %vm501, %v966
        %s994 = sadd.s32 %s989, 24
        %s995 = scalar_lea.vmem [#allocation2], %s994
        %996 = vst.msk [vmem:[%s995] sm:$0xff] %vm501, 0.0
        %s997 = sadd.s32 %s969, 4
        %s998 = smul.u32 %s997, 24
        %s999 = sadd.s32 %s998, 8
        %s1000 = scalar_lea.vmem [#allocation2], %s999
        %1001 = vst.msk [vmem:[%s1000] sm:$0xff] %vm501, %v967
        %1002 = vst.msk [vmem:[%s1000 + $0x8] sm:$0xff] %vm501, %v968
        %s1003 = sadd.s32 %s998, 24
        %s1004 = scalar_lea.vmem [#allocation2], %s1003
        %1005 = vst.msk [vmem:[%s1004] sm:$0xff] %vm501, 0.0
      $region92: #{resnet_block_2d.1} parent=79 // loop_footer
        %s900 = sadd.s32 1, %s896
      $region93: #{resnet_block_2d.1} parent=79 // loop_footer_branch
        %895 = sbr.rel target = $region89
      $region94: #{resnet_block_2d.1} parent=79 // loop_exit
        _
      %v1006 = vld [vmem:[%s6] sm:$0x1]
      loop: start=0, step=1, limit=4
      $region95: #{resnet_block_2d.1} parent=79 // loop_pre_header
        _
      $region96: #{resnet_block_2d.1} parent=79 // loop_header
        %s1008 = sphi 0, %s1012
        %p1009 = scmp.ge.s32.totalorder %s1008, 4
        %v1013 = vphi 0.0, %v2576
        %v1014 = vphi 0.0, %v2606
      $region97: #{resnet_block_2d.1} parent=79 // loop_header_branch
        %1011 = sbr.rel (%p1009) target = $region101
      $region98: #{resnet_block_2d.1} parent=79 // loop_body
        %s1015 = smul.u32 %s1008, 96
        %s1016 = sadd.s32 %s1015, 7
        %s1017 = scalar_lea.vmem [#allocation2], %s1016
        %v1018 = vld [vmem:[%s1017] sm:$0xff]
        %v1019 = vld [vmem:[%s1017 + $0x8] sm:$0xff]
        %v1020 = vld [vmem:[%s1017 + $0x10] sm:$0xff]
        %v1021 = vld [vmem:[%s1017 + $0x18] sm:$0xff]
        %v1022 = vld [vmem:[%s1017 + $0x20] sm:$0xff]
        %v1023 = vld [vmem:[%s1017 + $0x28] sm:$0xff]
        %v1024 = vld [vmem:[%s1017 + $0x30] sm:$0xff]
        %v1025 = vld [vmem:[%s1017 + $0x38] sm:$0xff]
        %v1026 = vld [vmem:[%s1017 + $0x40] sm:$0xff]
        %v1027 = vld [vmem:[%s1017 + $0x48] sm:$0xff]
        %v1028 = vld [vmem:[%s1017 + $0x50] sm:$0xff]
        %v1029 = vld [vmem:[%s1017 + $0x58] sm:$0xff]
        %v1030 = vpack.c.bf16 %v1019, %v1018
        %v1031 = vpack.c.bf16 %v1021, %v1020
        %v1032 = vpack.c.bf16 %v1023, %v1022
        %v1033 = vpack.c.bf16 %v1025, %v1024
        %v1034 = vpack.c.bf16 %v1027, %v1026
        %v1035 = vpack.c.bf16 %v1029, %v1028
        %v1036 = vld [vmem:[%s5] sm:$0xf]
        %v1037 = vld [vmem:[%s5 + $0x4] sm:$0xf]
        %v1038 = vld [vmem:[%s5 + $0x8] sm:$0xf]
        %v1039 = vld [vmem:[%s5 + $0xc] sm:$0xf]
        %s1040 = sadd.s32 %s1015, 8
        %s1041 = scalar_lea.vmem [#allocation2], %s1040
        %v1042 = vld [vmem:[%s1041] sm:$0xff]
        %v1043 = vld [vmem:[%s1041 + $0x8] sm:$0xff]
        %v1044 = vld [vmem:[%s1041 + $0x10] sm:$0xff]
        %v1045 = vld [vmem:[%s1041 + $0x18] sm:$0xff]
        %v1046 = vld [vmem:[%s1041 + $0x20] sm:$0xff]
        %v1047 = vld [vmem:[%s1041 + $0x28] sm:$0xff]
        %v1048 = vld [vmem:[%s1041 + $0x30] sm:$0xff]
        %v1049 = vld [vmem:[%s1041 + $0x38] sm:$0xff]
        %v1050 = vld [vmem:[%s1041 + $0x40] sm:$0xff]
        %v1051 = vld [vmem:[%s1041 + $0x48] sm:$0xff]
        %v1052 = vld [vmem:[%s1041 + $0x50] sm:$0xff]
        %v1053 = vld [vmem:[%s1041 + $0x58] sm:$0xff]
        %v1054 = vpack.c.bf16 %v1043, %v1042
        %v1055 = vpack.c.bf16 %v1045, %v1044
        %v1056 = vpack.c.bf16 %v1047, %v1046
        %v1057 = vpack.c.bf16 %v1049, %v1048
        %v1058 = vpack.c.bf16 %v1051, %v1050
        %v1059 = vpack.c.bf16 %v1053, %v1052
        %s1060 = scalar_lea.vmem %s5, 16
        %v1061 = vld [vmem:[%s1060] sm:$0xf]
        %v1062 = vld [vmem:[%s1060 + $0x4] sm:$0xf]
        %v1063 = vld [vmem:[%s1060 + $0x8] sm:$0xf]
        %v1064 = vld [vmem:[%s1060 + $0xc] sm:$0xf]
        %v1069 = vunpack.c.l.b16 %v1061
        %v1070 = vunpack.c.l.b16 %v1062
        %v1071 = vunpack.c.l.b16 %v1063
        %v1072 = vunpack.c.l.b16 %v1064
        %v1073 = vpack.c.b16 %v1070, %v1069
        %v1074 = vpack.c.b16 %v1072, %v1071
        %v1078 = vsel %vm501, %v1054, 0
        %v1081 = vsel %vm501, %v1055, 0
        %v1084 = vsel %vm501, %v1056, 0
        %v1087 = vsel %vm501, %v1057, 0
        %v1090 = vsel %vm501, %v1058, 0
        %v1093 = vsel %vm501, %v1059, 0
        %1095 = vmatprep.subr.bf16.mxu0 0
        %1096 = vmatpush1.bf16.msra.mxu0 %v1073
        %1097 = vmatprep.subr.bf16.mxu0 0
        %1098 = vmatpush1.bf16.msra.mxu0 %v1074
        %1099 = vmatprep.subr.bf16.mxu0 0
        %1100 = vmatpush1.bf16.msra.mxu0 0
        %1101 = vmatprep.subr.bf16.mxu0 0
        %1102 = vmatpush1.bf16.msra.mxu0 0
        %1103 = vmatprep.subr.bf16.mxu0 0
        %1104 = vmatpush1.bf16.msra.mxu0 0
        %1105 = vmatprep.subr.bf16.mxu0 0
        %1106 = vmatpush1.bf16.msra.mxu0 0
        %1107 = vmatprep.subr.bf16.mxu0 0
        %1108 = vmatpush1.bf16.msra.mxu0 0
        %1109 = vmatprep.subr.bf16.mxu0 0
        %1110 = vmatpush1.bf16.msra.mxu0 0
        %1111 = vmatprep.subr.bf16.mxu0 0
        %1112 = vmatpush1.bf16.msra.mxu0 0
        %1113 = vmatprep.subr.bf16.mxu0 0
        %1114 = vmatpush1.bf16.msra.mxu0 0
        %1115 = vmatprep.subr.bf16.mxu0 0
        %1116 = vmatpush1.bf16.msra.mxu0 0
        %1117 = vmatprep.subr.bf16.mxu0 0
        %1118 = vmatpush1.bf16.msra.mxu0 0
        %1119 = vmatprep.subr.bf16.mxu0 0
        %1120 = vmatpush1.bf16.msra.mxu0 0
        %1121 = vmatprep.subr.bf16.mxu0 0
        %1122 = vmatpush1.bf16.msra.mxu0 0
        %1123 = vmatprep.subr.bf16.mxu0 0
        %1124 = vmatpush1.bf16.msra.mxu0 0
        %1125 = vmatprep.subr.bf16.mxu0 0
        %1126 = vmatpush1.bf16.msra.mxu0 0
        %1127 = vmatprep.mubr.bf16.mxu0 0
        %1128 = vmatmul.mubr.bf16.gmra.mrb[0].mxu0 %v1078
        %v1129 = vpop.f32.mrb[0].mxu0
        %v1130 = vadd.f32 0.0, %v1129
        %v1131 = vpop.f32.mrb[0].mxu0
        %v1132 = vpop.f32.mrb[0].mxu0
        %v1133 = vadd.f32 0.0, %v1132
        %v1134 = vpop.f32.mrb[0].mxu0
        %1135 = vmatprep.mubr.bf16.mxu0 0
        %1136 = vmatmul.mubr.bf16.gmra.mrb[0].mxu0 %v1081
        %v1137 = vpop.f32.mrb[0].mxu0
        %v1138 = vadd.f32 0.0, %v1137
        %v1139 = vpop.f32.mrb[0].mxu0
        %v1140 = vpop.f32.mrb[0].mxu0
        %v1141 = vadd.f32 0.0, %v1140
        %v1142 = vpop.f32.mrb[0].mxu0
        %1143 = vmatprep.mubr.bf16.mxu0 0
        %1144 = vmatmul.mubr.bf16.gmra.mrb[0].mxu0 %v1084
        %v1145 = vpop.f32.mrb[0].mxu0
        %v1146 = vadd.f32 0.0, %v1145
        %v1147 = vpop.f32.mrb[0].mxu0
        %v1148 = vpop.f32.mrb[0].mxu0
        %v1149 = vadd.f32 0.0, %v1148
        %v1150 = vpop.f32.mrb[0].mxu0
        %1151 = vmatprep.mubr.bf16.mxu0 0
        %1152 = vmatmul.mubr.bf16.gmra.mrb[0].mxu0 %v1087
        %v1153 = vpop.f32.mrb[0].mxu0
        %v1154 = vadd.f32 0.0, %v1153
        %v1155 = vpop.f32.mrb[0].mxu0
        %v1156 = vpop.f32.mrb[0].mxu0
        %v1157 = vadd.f32 0.0, %v1156
        %v1158 = vpop.f32.mrb[0].mxu0
        %1159 = vmatprep.mubr.bf16.mxu0 0
        %1160 = vmatmul.mubr.bf16.gmra.mrb[0].mxu0 %v1090
        %v1161 = vpop.f32.mrb[0].mxu0
        %v1162 = vadd.f32 0.0, %v1161
        %v1163 = vpop.f32.mrb[0].mxu0
        %v1164 = vpop.f32.mrb[0].mxu0
        %v1165 = vadd.f32 0.0, %v1164
        %v1166 = vpop.f32.mrb[0].mxu0
        %1167 = vmatprep.mubr.bf16.mxu0 0
        %1168 = vmatmul.mubr.bf16.gmra.mrb[0].mxu0 %v1093
        %v1169 = vpop.f32.mrb[0].mxu0
        %v1170 = vadd.f32 0.0, %v1169
        %v1171 = vpop.f32.mrb[0].mxu0
        %v1172 = vpop.f32.mrb[0].mxu0
        %v1173 = vadd.f32 0.0, %v1172
        %v1174 = vpop.f32.mrb[0].mxu0
        %1175 = vdwg.mxu0
        %v1180 = vunpack.c.l.b16 %v1036
        %v1181 = vunpack.c.l.b16 %v1037
        %v1182 = vunpack.c.l.b16 %v1038
        %v1183 = vunpack.c.l.b16 %v1039
        %v1184 = vpack.c.b16 %v1181, %v1180
        %v1185 = vpack.c.b16 %v1183, %v1182
        %v1189 = vsel %vm501, %v1030, 0
        %v1192 = vsel %vm501, %v1031, 0
        %v1195 = vsel %vm501, %v1032, 0
        %v1198 = vsel %vm501, %v1033, 0
        %v1201 = vsel %vm501, %v1034, 0
        %v1204 = vsel %vm501, %v1035, 0
        %1206 = vmatprep.subr.bf16.mxu0 0
        %1207 = vmatpush1.bf16.msra.mxu0 %v1184
        %1208 = vmatprep.subr.bf16.mxu0 0
        %1209 = vmatpush1.bf16.msra.mxu0 %v1185
        %1210 = vmatprep.subr.bf16.mxu0 0
        %1211 = vmatpush1.bf16.msra.mxu0 0
        %1212 = vmatprep.subr.bf16.mxu0 0
        %1213 = vmatpush1.bf16.msra.mxu0 0
        %1214 = vmatprep.subr.bf16.mxu0 0
        %1215 = vmatpush1.bf16.msra.mxu0 0
        %1216 = vmatprep.subr.bf16.mxu0 0
        %1217 = vmatpush1.bf16.msra.mxu0 0
        %1218 = vmatprep.subr.bf16.mxu0 0
        %1219 = vmatpush1.bf16.msra.mxu0 0
        %1220 = vmatprep.subr.bf16.mxu0 0
        %1221 = vmatpush1.bf16.msra.mxu0 0
        %1222 = vmatprep.subr.bf16.mxu0 0
        %1223 = vmatpush1.bf16.msra.mxu0 0
        %1224 = vmatprep.subr.bf16.mxu0 0
        %1225 = vmatpush1.bf16.msra.mxu0 0
        %1226 = vmatprep.subr.bf16.mxu0 0
        %1227 = vmatpush1.bf16.msra.mxu0 0
        %1228 = vmatprep.subr.bf16.mxu0 0
        %1229 = vmatpush1.bf16.msra.mxu0 0
        %1230 = vmatprep.subr.bf16.mxu0 0
        %1231 = vmatpush1.bf16.msra.mxu0 0
        %1232 = vmatprep.subr.bf16.mxu0 0
        %1233 = vmatpush1.bf16.msra.mxu0 0
        %1234 = vmatprep.subr.bf16.mxu0 0
        %1235 = vmatpush1.bf16.msra.mxu0 0
        %1236 = vmatprep.subr.bf16.mxu0 0
        %1237 = vmatpush1.bf16.msra.mxu0 0
        %1238 = vmatprep.mubr.bf16.mxu0 0
        %1239 = vmatmul.mubr.bf16.gmra.mrb[0].mxu0 %v1189
        %v1240 = vpop.f32.mrb[0].mxu0
        %v1241 = vadd.f32 %v1130, %v1240
        %v1242 = vpop.f32.mrb[0].mxu0
        %v1243 = vpop.f32.mrb[0].mxu0
        %v1244 = vadd.f32 %v1133, %v1243
        %v1245 = vpop.f32.mrb[0].mxu0
        %1246 = vmatprep.mubr.bf16.mxu0 0
        %1247 = vmatmul.mubr.bf16.gmra.mrb[0].mxu0 %v1192
        %v1248 = vpop.f32.mrb[0].mxu0
        %v1249 = vadd.f32 %v1138, %v1248
        %v1250 = vpop.f32.mrb[0].mxu0
        %v1251 = vpop.f32.mrb[0].mxu0
        %v1252 = vadd.f32 %v1141, %v1251
        %v1253 = vpop.f32.mrb[0].mxu0
        %1254 = vmatprep.mubr.bf16.mxu0 0
        %1255 = vmatmul.mubr.bf16.gmra.mrb[0].mxu0 %v1195
        %v1256 = vpop.f32.mrb[0].mxu0
        %v1257 = vadd.f32 %v1146, %v1256
        %v1258 = vpop.f32.mrb[0].mxu0
        %v1259 = vpop.f32.mrb[0].mxu0
        %v1260 = vadd.f32 %v1149, %v1259
        %v1261 = vpop.f32.mrb[0].mxu0
        %1262 = vmatprep.mubr.bf16.mxu0 0
        %1263 = vmatmul.mubr.bf16.gmra.mrb[0].mxu0 %v1198
        %v1264 = vpop.f32.mrb[0].mxu0
        %v1265 = vadd.f32 %v1154, %v1264
        %v1266 = vpop.f32.mrb[0].mxu0
        %v1267 = vpop.f32.mrb[0].mxu0
        %v1268 = vadd.f32 %v1157, %v1267
        %v1269 = vpop.f32.mrb[0].mxu0
        %1270 = vmatprep.mubr.bf16.mxu0 0
        %1271 = vmatmul.mubr.bf16.gmra.mrb[0].mxu0 %v1201
        %v1272 = vpop.f32.mrb[0].mxu0
        %v1273 = vadd.f32 %v1162, %v1272
        %v1274 = vpop.f32.mrb[0].mxu0
        %v1275 = vpop.f32.mrb[0].mxu0
        %v1276 = vadd.f32 %v1165, %v1275
        %v1277 = vpop.f32.mrb[0].mxu0
        %1278 = vmatprep.mubr.bf16.mxu0 0
        %1279 = vmatmul.mubr.bf16.gmra.mrb[0].mxu0 %v1204
        %v1280 = vpop.f32.mrb[0].mxu0
        %v1281 = vadd.f32 %v1170, %v1280
        %v1282 = vpop.f32.mrb[0].mxu0
        %v1283 = vpop.f32.mrb[0].mxu0
        %v1284 = vadd.f32 %v1173, %v1283
        %v1285 = vpop.f32.mrb[0].mxu0
        %1286 = vdwg.mxu0
        %s1287 = sadd.s32 %s1015, 9
        %s1288 = scalar_lea.vmem [#allocation2], %s1287
        %v1289 = vld [vmem:[%s1288] sm:$0xff]
        %v1290 = vld [vmem:[%s1288 + $0x8] sm:$0xff]
        %v1291 = vld [vmem:[%s1288 + $0x10] sm:$0xff]
        %v1292 = vld [vmem:[%s1288 + $0x18] sm:$0xff]
        %v1293 = vld [vmem:[%s1288 + $0x20] sm:$0xff]
        %v1294 = vld [vmem:[%s1288 + $0x28] sm:$0xff]
        %v1295 = vld [vmem:[%s1288 + $0x30] sm:$0xff]
        %v1296 = vld [vmem:[%s1288 + $0x38] sm:$0xff]
        %v1297 = vld [vmem:[%s1288 + $0x40] sm:$0xff]
        %v1298 = vld [vmem:[%s1288 + $0x48] sm:$0xff]
        %v1299 = vld [vmem:[%s1288 + $0x50] sm:$0xff]
        %v1300 = vld [vmem:[%s1288 + $0x58] sm:$0xff]
        %v1301 = vpack.c.bf16 %v1290, %v1289
        %v1302 = vpack.c.bf16 %v1292, %v1291
        %v1303 = vpack.c.bf16 %v1294, %v1293
        %v1304 = vpack.c.bf16 %v1296, %v1295
        %v1305 = vpack.c.bf16 %v1298, %v1297
        %v1306 = vpack.c.bf16 %v1300, %v1299
        %s1307 = scalar_lea.vmem %s5, 32
        %v1308 = vld [vmem:[%s1307] sm:$0xf]
        %v1309 = vld [vmem:[%s1307 + $0x4] sm:$0xf]
        %v1310 = vld [vmem:[%s1307 + $0x8] sm:$0xf]
        %v1311 = vld [vmem:[%s1307 + $0xc] sm:$0xf]
        %v1316 = vunpack.c.l.b16 %v1308
        %v1317 = vunpack.c.l.b16 %v1309
        %v1318 = vunpack.c.l.b16 %v1310
        %v1319 = vunpack.c.l.b16 %v1311
        %v1320 = vpack.c.b16 %v1317, %v1316
        %v1321 = vpack.c.b16 %v1319, %v1318
        %v1325 = vsel %vm501, %v1301, 0
        %v1328 = vsel %vm501, %v1302, 0
        %v1331 = vsel %vm501, %v1303, 0
        %v1334 = vsel %vm501, %v1304, 0
        %v1337 = vsel %vm501, %v1305, 0
        %v1340 = vsel %vm501, %v1306, 0
        %1342 = vmatprep.subr.bf16.mxu0 0
        %1343 = vmatpush1.bf16.msra.mxu0 %v1320
        %1344 = vmatprep.subr.bf16.mxu0 0
        %1345 = vmatpush1.bf16.msra.mxu0 %v1321
        %1346 = vmatprep.subr.bf16.mxu0 0
        %1347 = vmatpush1.bf16.msra.mxu0 0
        %1348 = vmatprep.subr.bf16.mxu0 0
        %1349 = vmatpush1.bf16.msra.mxu0 0
        %1350 = vmatprep.subr.bf16.mxu0 0
        %1351 = vmatpush1.bf16.msra.mxu0 0
        %1352 = vmatprep.subr.bf16.mxu0 0
        %1353 = vmatpush1.bf16.msra.mxu0 0
        %1354 = vmatprep.subr.bf16.mxu0 0
        %1355 = vmatpush1.bf16.msra.mxu0 0
        %1356 = vmatprep.subr.bf16.mxu0 0
        %1357 = vmatpush1.bf16.msra.mxu0 0
        %1358 = vmatprep.subr.bf16.mxu0 0
        %1359 = vmatpush1.bf16.msra.mxu0 0
        %1360 = vmatprep.subr.bf16.mxu0 0
        %1361 = vmatpush1.bf16.msra.mxu0 0
        %1362 = vmatprep.subr.bf16.mxu0 0
        %1363 = vmatpush1.bf16.msra.mxu0 0
        %1364 = vmatprep.subr.bf16.mxu0 0
        %1365 = vmatpush1.bf16.msra.mxu0 0
        %1366 = vmatprep.subr.bf16.mxu0 0
        %1367 = vmatpush1.bf16.msra.mxu0 0
        %1368 = vmatprep.subr.bf16.mxu0 0
        %1369 = vmatpush1.bf16.msra.mxu0 0
        %1370 = vmatprep.subr.bf16.mxu0 0
        %1371 = vmatpush1.bf16.msra.mxu0 0
        %1372 = vmatprep.subr.bf16.mxu0 0
        %1373 = vmatpush1.bf16.msra.mxu0 0
        %1374 = vmatprep.mubr.bf16.mxu0 0
        %1375 = vmatmul.mubr.bf16.gmra.mrb[0].mxu0 %v1325
        %v1376 = vpop.f32.mrb[0].mxu0
        %v1377 = vadd.f32 0.0, %v1376
        %v1378 = vpop.f32.mrb[0].mxu0
        %v1379 = vpop.f32.mrb[0].mxu0
        %v1380 = vadd.f32 0.0, %v1379
        %v1381 = vpop.f32.mrb[0].mxu0
        %1382 = vmatprep.mubr.bf16.mxu0 0
        %1383 = vmatmul.mubr.bf16.gmra.mrb[0].mxu0 %v1328
        %v1384 = vpop.f32.mrb[0].mxu0
        %v1385 = vadd.f32 0.0, %v1384
        %v1386 = vpop.f32.mrb[0].mxu0
        %v1387 = vpop.f32.mrb[0].mxu0
        %v1388 = vadd.f32 0.0, %v1387
        %v1389 = vpop.f32.mrb[0].mxu0
        %1390 = vmatprep.mubr.bf16.mxu0 0
        %1391 = vmatmul.mubr.bf16.gmra.mrb[0].mxu0 %v1331
        %v1392 = vpop.f32.mrb[0].mxu0
        %v1393 = vadd.f32 0.0, %v1392
        %v1394 = vpop.f32.mrb[0].mxu0
        %v1395 = vpop.f32.mrb[0].mxu0
        %v1396 = vadd.f32 0.0, %v1395
        %v1397 = vpop.f32.mrb[0].mxu0
        %1398 = vmatprep.mubr.bf16.mxu0 0
        %1399 = vmatmul.mubr.bf16.gmra.mrb[0].mxu0 %v1334
        %v1400 = vpop.f32.mrb[0].mxu0
        %v1401 = vadd.f32 0.0, %v1400
        %v1402 = vpop.f32.mrb[0].mxu0
        %v1403 = vpop.f32.mrb[0].mxu0
        %v1404 = vadd.f32 0.0, %v1403
        %v1405 = vpop.f32.mrb[0].mxu0
        %1406 = vmatprep.mubr.bf16.mxu0 0
        %1407 = vmatmul.mubr.bf16.gmra.mrb[0].mxu0 %v1337
        %v1408 = vpop.f32.mrb[0].mxu0
        %v1409 = vadd.f32 0.0, %v1408
        %v1410 = vpop.f32.mrb[0].mxu0
        %v1411 = vpop.f32.mrb[0].mxu0
        %v1412 = vadd.f32 0.0, %v1411
        %v1413 = vpop.f32.mrb[0].mxu0
        %1414 = vmatprep.mubr.bf16.mxu0 0
        %1415 = vmatmul.mubr.bf16.gmra.mrb[0].mxu0 %v1340
        %v1416 = vpop.f32.mrb[0].mxu0
        %v1417 = vadd.f32 0.0, %v1416
        %v1418 = vpop.f32.mrb[0].mxu0
        %v1419 = vpop.f32.mrb[0].mxu0
        %v1420 = vadd.f32 0.0, %v1419
        %v1421 = vpop.f32.mrb[0].mxu0
        %1422 = vdwg.mxu0
        %v1423 = vadd.f32 %v1241, %v1377
        %v1424 = vadd.f32 %v1244, %v1380
        %v1425 = vadd.f32 %v1249, %v1385
        %v1426 = vadd.f32 %v1252, %v1388
        %v1427 = vadd.f32 %v1257, %v1393
        %v1428 = vadd.f32 %v1260, %v1396
        %v1429 = vadd.f32 %v1265, %v1401
        %v1430 = vadd.f32 %v1268, %v1404
        %v1431 = vadd.f32 %v1273, %v1409
        %v1432 = vadd.f32 %v1276, %v1412
        %v1433 = vadd.f32 %v1281, %v1417
        %v1434 = vadd.f32 %v1284, %v1420
        %s1435 = sadd.s32 %s1015, 31
        %s1436 = scalar_lea.vmem [#allocation2], %s1435
        %v1437 = vld [vmem:[%s1436] sm:$0xff]
        %v1438 = vld [vmem:[%s1436 + $0x8] sm:$0xff]
        %v1439 = vld [vmem:[%s1436 + $0x10] sm:$0xff]
        %v1440 = vld [vmem:[%s1436 + $0x18] sm:$0xff]
        %v1441 = vld [vmem:[%s1436 + $0x20] sm:$0xff]
        %v1442 = vld [vmem:[%s1436 + $0x28] sm:$0xff]
        %v1443 = vld [vmem:[%s1436 + $0x30] sm:$0xff]
        %v1444 = vld [vmem:[%s1436 + $0x38] sm:$0xff]
        %v1445 = vld [vmem:[%s1436 + $0x40] sm:$0xff]
        %v1446 = vld [vmem:[%s1436 + $0x48] sm:$0xff]
        %v1447 = vld [vmem:[%s1436 + $0x50] sm:$0xff]
        %v1448 = vld [vmem:[%s1436 + $0x58] sm:$0xff]
        %v1449 = vpack.c.bf16 %v1438, %v1437
        %v1450 = vpack.c.bf16 %v1440, %v1439
        %v1451 = vpack.c.bf16 %v1442, %v1441
        %v1452 = vpack.c.bf16 %v1444, %v1443
        %v1453 = vpack.c.bf16 %v1446, %v1445
        %v1454 = vpack.c.bf16 %v1448, %v1447
        %s1455 = scalar_lea.vmem %s5, 48
        %v1456 = vld [vmem:[%s1455] sm:$0xf]
        %v1457 = vld [vmem:[%s1455 + $0x4] sm:$0xf]
        %v1458 = vld [vmem:[%s1455 + $0x8] sm:$0xf]
        %v1459 = vld [vmem:[%s1455 + $0xc] sm:$0xf]
        %v1464 = vunpack.c.l.b16 %v1456
        %v1465 = vunpack.c.l.b16 %v1457
        %v1466 = vunpack.c.l.b16 %v1458
        %v1467 = vunpack.c.l.b16 %v1459
        %v1468 = vpack.c.b16 %v1465, %v1464
        %v1469 = vpack.c.b16 %v1467, %v1466
        %v1473 = vsel %vm501, %v1449, 0
        %v1476 = vsel %vm501, %v1450, 0
        %v1479 = vsel %vm501, %v1451, 0
        %v1482 = vsel %vm501, %v1452, 0
        %v1485 = vsel %vm501, %v1453, 0
        %v1488 = vsel %vm501, %v1454, 0
        %1490 = vmatprep.subr.bf16.mxu0 0
        %1491 = vmatpush1.bf16.msra.mxu0 %v1468
        %1492 = vmatprep.subr.bf16.mxu0 0
        %1493 = vmatpush1.bf16.msra.mxu0 %v1469
        %1494 = vmatprep.subr.bf16.mxu0 0
        %1495 = vmatpush1.bf16.msra.mxu0 0
        %1496 = vmatprep.subr.bf16.mxu0 0
        %1497 = vmatpush1.bf16.msra.mxu0 0
        %1498 = vmatprep.subr.bf16.mxu0 0
        %1499 = vmatpush1.bf16.msra.mxu0 0
        %1500 = vmatprep.subr.bf16.mxu0 0
        %1501 = vmatpush1.bf16.msra.mxu0 0
        %1502 = vmatprep.subr.bf16.mxu0 0
        %1503 = vmatpush1.bf16.msra.mxu0 0
        %1504 = vmatprep.subr.bf16.mxu0 0
        %1505 = vmatpush1.bf16.msra.mxu0 0
        %1506 = vmatprep.subr.bf16.mxu0 0
        %1507 = vmatpush1.bf16.msra.mxu0 0
        %1508 = vmatprep.subr.bf16.mxu0 0
        %1509 = vmatpush1.bf16.msra.mxu0 0
        %1510 = vmatprep.subr.bf16.mxu0 0
        %1511 = vmatpush1.bf16.msra.mxu0 0
        %1512 = vmatprep.subr.bf16.mxu0 0
        %1513 = vmatpush1.bf16.msra.mxu0 0
        %1514 = vmatprep.subr.bf16.mxu0 0
        %1515 = vmatpush1.bf16.msra.mxu0 0
        %1516 = vmatprep.subr.bf16.mxu0 0
        %1517 = vmatpush1.bf16.msra.mxu0 0
        %1518 = vmatprep.subr.bf16.mxu0 0
        %1519 = vmatpush1.bf16.msra.mxu0 0
        %1520 = vmatprep.subr.bf16.mxu0 0
        %1521 = vmatpush1.bf16.msra.mxu0 0
        %1522 = vmatprep.mubr.bf16.mxu0 0
        %1523 = vmatmul.mubr.bf16.gmra.mrb[0].mxu0 %v1473
        %v1524 = vpop.f32.mrb[0].mxu0
        %v1525 = vadd.f32 0.0, %v1524
        %v1526 = vpop.f32.mrb[0].mxu0
        %v1527 = vpop.f32.mrb[0].mxu0
        %v1528 = vadd.f32 0.0, %v1527
        %v1529 = vpop.f32.mrb[0].mxu0
        %1530 = vmatprep.mubr.bf16.mxu0 0
        %1531 = vmatmul.mubr.bf16.gmra.mrb[0].mxu0 %v1476
        %v1532 = vpop.f32.mrb[0].mxu0
        %v1533 = vadd.f32 0.0, %v1532
        %v1534 = vpop.f32.mrb[0].mxu0
        %v1535 = vpop.f32.mrb[0].mxu0
        %v1536 = vadd.f32 0.0, %v1535
        %v1537 = vpop.f32.mrb[0].mxu0
        %1538 = vmatprep.mubr.bf16.mxu0 0
        %1539 = vmatmul.mubr.bf16.gmra.mrb[0].mxu0 %v1479
        %v1540 = vpop.f32.mrb[0].mxu0
        %v1541 = vadd.f32 0.0, %v1540
        %v1542 = vpop.f32.mrb[0].mxu0
        %v1543 = vpop.f32.mrb[0].mxu0
        %v1544 = vadd.f32 0.0, %v1543
        %v1545 = vpop.f32.mrb[0].mxu0
        %1546 = vmatprep.mubr.bf16.mxu0 0
        %1547 = vmatmul.mubr.bf16.gmra.mrb[0].mxu0 %v1482
        %v1548 = vpop.f32.mrb[0].mxu0
        %v1549 = vadd.f32 0.0, %v1548
        %v1550 = vpop.f32.mrb[0].mxu0
        %v1551 = vpop.f32.mrb[0].mxu0
        %v1552 = vadd.f32 0.0, %v1551
        %v1553 = vpop.f32.mrb[0].mxu0
        %1554 = vmatprep.mubr.bf16.mxu0 0
        %1555 = vmatmul.mubr.bf16.gmra.mrb[0].mxu0 %v1485
        %v1556 = vpop.f32.mrb[0].mxu0
        %v1557 = vadd.f32 0.0, %v1556
        %v1558 = vpop.f32.mrb[0].mxu0
        %v1559 = vpop.f32.mrb[0].mxu0
        %v1560 = vadd.f32 0.0, %v1559
        %v1561 = vpop.f32.mrb[0].mxu0
        %1562 = vmatprep.mubr.bf16.mxu0 0
        %1563 = vmatmul.mubr.bf16.gmra.mrb[0].mxu0 %v1488
        %v1564 = vpop.f32.mrb[0].mxu0
        %v1565 = vadd.f32 0.0, %v1564
        %v1566 = vpop.f32.mrb[0].mxu0
        %v1567 = vpop.f32.mrb[0].mxu0
        %v1568 = vadd.f32 0.0, %v1567
        %v1569 = vpop.f32.mrb[0].mxu0
        %1570 = vdwg.mxu0
        %v1571 = vadd.f32 %v1423, %v1525
        %v1572 = vadd.f32 %v1424, %v1528
        %v1573 = vadd.f32 %v1425, %v1533
        %v1574 = vadd.f32 %v1426, %v1536
        %v1575 = vadd.f32 %v1427, %v1541
        %v1576 = vadd.f32 %v1428, %v1544
        %v1577 = vadd.f32 %v1429, %v1549
        %v1578 = vadd.f32 %v1430, %v1552
        %v1579 = vadd.f32 %v1431, %v1557
        %v1580 = vadd.f32 %v1432, %v1560
        %v1581 = vadd.f32 %v1433, %v1565
        %v1582 = vadd.f32 %v1434, %v1568
        %s1583 = sadd.s32 %s1015, 32
        %s1584 = scalar_lea.vmem [#allocation2], %s1583
        %v1585 = vld [vmem:[%s1584] sm:$0xff]
        %v1586 = vld [vmem:[%s1584 + $0x8] sm:$0xff]
        %v1587 = vld [vmem:[%s1584 + $0x10] sm:$0xff]
        %v1588 = vld [vmem:[%s1584 + $0x18] sm:$0xff]
        %v1589 = vld [vmem:[%s1584 + $0x20] sm:$0xff]
        %v1590 = vld [vmem:[%s1584 + $0x28] sm:$0xff]
        %v1591 = vld [vmem:[%s1584 + $0x30] sm:$0xff]
        %v1592 = vld [vmem:[%s1584 + $0x38] sm:$0xff]
        %v1593 = vld [vmem:[%s1584 + $0x40] sm:$0xff]
        %v1594 = vld [vmem:[%s1584 + $0x48] sm:$0xff]
        %v1595 = vld [vmem:[%s1584 + $0x50] sm:$0xff]
        %v1596 = vld [vmem:[%s1584 + $0x58] sm:$0xff]
        %v1597 = vpack.c.bf16 %v1586, %v1585
        %v1598 = vpack.c.bf16 %v1588, %v1587
        %v1599 = vpack.c.bf16 %v1590, %v1589
        %v1600 = vpack.c.bf16 %v1592, %v1591
        %v1601 = vpack.c.bf16 %v1594, %v1593
        %v1602 = vpack.c.bf16 %v1596, %v1595
        %s1603 = scalar_lea.vmem %s5, 64
        %v1604 = vld [vmem:[%s1603] sm:$0xf]
        %v1605 = vld [vmem:[%s1603 + $0x4] sm:$0xf]
        %v1606 = vld [vmem:[%s1603 + $0x8] sm:$0xf]
        %v1607 = vld [vmem:[%s1603 + $0xc] sm:$0xf]
        %v1612 = vunpack.c.l.b16 %v1604
        %v1613 = vunpack.c.l.b16 %v1605
        %v1614 = vunpack.c.l.b16 %v1606
        %v1615 = vunpack.c.l.b16 %v1607
        %v1616 = vpack.c.b16 %v1613, %v1612
        %v1617 = vpack.c.b16 %v1615, %v1614
        %v1621 = vsel %vm501, %v1597, 0
        %v1624 = vsel %vm501, %v1598, 0
        %v1627 = vsel %vm501, %v1599, 0
        %v1630 = vsel %vm501, %v1600, 0
        %v1633 = vsel %vm501, %v1601, 0
        %v1636 = vsel %vm501, %v1602, 0
        %1638 = vmatprep.subr.bf16.mxu0 0
        %1639 = vmatpush1.bf16.msra.mxu0 %v1616
        %1640 = vmatprep.subr.bf16.mxu0 0
        %1641 = vmatpush1.bf16.msra.mxu0 %v1617
        %1642 = vmatprep.subr.bf16.mxu0 0
        %1643 = vmatpush1.bf16.msra.mxu0 0
        %1644 = vmatprep.subr.bf16.mxu0 0
        %1645 = vmatpush1.bf16.msra.mxu0 0
        %1646 = vmatprep.subr.bf16.mxu0 0
        %1647 = vmatpush1.bf16.msra.mxu0 0
        %1648 = vmatprep.subr.bf16.mxu0 0
        %1649 = vmatpush1.bf16.msra.mxu0 0
        %1650 = vmatprep.subr.bf16.mxu0 0
        %1651 = vmatpush1.bf16.msra.mxu0 0
        %1652 = vmatprep.subr.bf16.mxu0 0
        %1653 = vmatpush1.bf16.msra.mxu0 0
        %1654 = vmatprep.subr.bf16.mxu0 0
        %1655 = vmatpush1.bf16.msra.mxu0 0
        %1656 = vmatprep.subr.bf16.mxu0 0
        %1657 = vmatpush1.bf16.msra.mxu0 0
        %1658 = vmatprep.subr.bf16.mxu0 0
        %1659 = vmatpush1.bf16.msra.mxu0 0
        %1660 = vmatprep.subr.bf16.mxu0 0
        %1661 = vmatpush1.bf16.msra.mxu0 0
        %1662 = vmatprep.subr.bf16.mxu0 0
        %1663 = vmatpush1.bf16.msra.mxu0 0
        %1664 = vmatprep.subr.bf16.mxu0 0
        %1665 = vmatpush1.bf16.msra.mxu0 0
        %1666 = vmatprep.subr.bf16.mxu0 0
        %1667 = vmatpush1.bf16.msra.mxu0 0
        %1668 = vmatprep.subr.bf16.mxu0 0
        %1669 = vmatpush1.bf16.msra.mxu0 0
        %1670 = vmatprep.mubr.bf16.mxu0 0
        %1671 = vmatmul.mubr.bf16.gmra.mrb[0].mxu0 %v1621
        %v1672 = vpop.f32.mrb[0].mxu0
        %v1673 = vadd.f32 0.0, %v1672
        %v1674 = vpop.f32.mrb[0].mxu0
        %v1675 = vpop.f32.mrb[0].mxu0
        %v1676 = vadd.f32 0.0, %v1675
        %v1677 = vpop.f32.mrb[0].mxu0
        %1678 = vmatprep.mubr.bf16.mxu0 0
        %1679 = vmatmul.mubr.bf16.gmra.mrb[0].mxu0 %v1624
        %v1680 = vpop.f32.mrb[0].mxu0
        %v1681 = vadd.f32 0.0, %v1680
        %v1682 = vpop.f32.mrb[0].mxu0
        %v1683 = vpop.f32.mrb[0].mxu0
        %v1684 = vadd.f32 0.0, %v1683
        %v1685 = vpop.f32.mrb[0].mxu0
        %1686 = vmatprep.mubr.bf16.mxu0 0
        %1687 = vmatmul.mubr.bf16.gmra.mrb[0].mxu0 %v1627
        %v1688 = vpop.f32.mrb[0].mxu0
        %v1689 = vadd.f32 0.0, %v1688
        %v1690 = vpop.f32.mrb[0].mxu0
        %v1691 = vpop.f32.mrb[0].mxu0
        %v1692 = vadd.f32 0.0, %v1691
        %v1693 = vpop.f32.mrb[0].mxu0
        %1694 = vmatprep.mubr.bf16.mxu0 0
        %1695 = vmatmul.mubr.bf16.gmra.mrb[0].mxu0 %v1630
        %v1696 = vpop.f32.mrb[0].mxu0
        %v1697 = vadd.f32 0.0, %v1696
        %v1698 = vpop.f32.mrb[0].mxu0
        %v1699 = vpop.f32.mrb[0].mxu0
        %v1700 = vadd.f32 0.0, %v1699
        %v1701 = vpop.f32.mrb[0].mxu0
        %1702 = vmatprep.mubr.bf16.mxu0 0
        %1703 = vmatmul.mubr.bf16.gmra.mrb[0].mxu0 %v1633
        %v1704 = vpop.f32.mrb[0].mxu0
        %v1705 = vadd.f32 0.0, %v1704
        %v1706 = vpop.f32.mrb[0].mxu0
        %v1707 = vpop.f32.mrb[0].mxu0
        %v1708 = vadd.f32 0.0, %v1707
        %v1709 = vpop.f32.mrb[0].mxu0
        %1710 = vmatprep.mubr.bf16.mxu0 0
        %1711 = vmatmul.mubr.bf16.gmra.mrb[0].mxu0 %v1636
        %v1712 = vpop.f32.mrb[0].mxu0
        %v1713 = vadd.f32 0.0, %v1712
        %v1714 = vpop.f32.mrb[0].mxu0
        %v1715 = vpop.f32.mrb[0].mxu0
        %v1716 = vadd.f32 0.0, %v1715
        %v1717 = vpop.f32.mrb[0].mxu0
        %1718 = vdwg.mxu0
        %v1719 = vadd.f32 %v1571, %v1673
        %v1720 = vadd.f32 %v1572, %v1676
        %v1721 = vadd.f32 %v1573, %v1681
        %v1722 = vadd.f32 %v1574, %v1684
        %v1723 = vadd.f32 %v1575, %v1689
        %v1724 = vadd.f32 %v1576, %v1692
        %v1725 = vadd.f32 %v1577, %v1697
        %v1726 = vadd.f32 %v1578, %v1700
        %v1727 = vadd.f32 %v1579, %v1705
        %v1728 = vadd.f32 %v1580, %v1708
        %v1729 = vadd.f32 %v1581, %v1713
        %v1730 = vadd.f32 %v1582, %v1716
        %s1731 = sadd.s32 %s1015, 33
        %s1732 = scalar_lea.vmem [#allocation2], %s1731
        %v1733 = vld [vmem:[%s1732] sm:$0xff]
        %v1734 = vld [vmem:[%s1732 + $0x8] sm:$0xff]
        %v1735 = vld [vmem:[%s1732 + $0x10] sm:$0xff]
        %v1736 = vld [vmem:[%s1732 + $0x18] sm:$0xff]
        %v1737 = vld [vmem:[%s1732 + $0x20] sm:$0xff]
        %v1738 = vld [vmem:[%s1732 + $0x28] sm:$0xff]
        %v1739 = vld [vmem:[%s1732 + $0x30] sm:$0xff]
        %v1740 = vld [vmem:[%s1732 + $0x38] sm:$0xff]
        %v1741 = vld [vmem:[%s1732 + $0x40] sm:$0xff]
        %v1742 = vld [vmem:[%s1732 + $0x48] sm:$0xff]
        %v1743 = vld [vmem:[%s1732 + $0x50] sm:$0xff]
        %v1744 = vld [vmem:[%s1732 + $0x58] sm:$0xff]
        %v1745 = vpack.c.bf16 %v1734, %v1733
        %v1746 = vpack.c.bf16 %v1736, %v1735
        %v1747 = vpack.c.bf16 %v1738, %v1737
        %v1748 = vpack.c.bf16 %v1740, %v1739
        %v1749 = vpack.c.bf16 %v1742, %v1741
        %v1750 = vpack.c.bf16 %v1744, %v1743
        %s1751 = scalar_lea.vmem %s5, 80
        %v1752 = vld [vmem:[%s1751] sm:$0xf]
        %v1753 = vld [vmem:[%s1751 + $0x4] sm:$0xf]
        %v1754 = vld [vmem:[%s1751 + $0x8] sm:$0xf]
        %v1755 = vld [vmem:[%s1751 + $0xc] sm:$0xf]
        %v1760 = vunpack.c.l.b16 %v1752
        %v1761 = vunpack.c.l.b16 %v1753
        %v1762 = vunpack.c.l.b16 %v1754
        %v1763 = vunpack.c.l.b16 %v1755
        %v1764 = vpack.c.b16 %v1761, %v1760
        %v1765 = vpack.c.b16 %v1763, %v1762
        %v1769 = vsel %vm501, %v1745, 0
        %v1772 = vsel %vm501, %v1746, 0
        %v1775 = vsel %vm501, %v1747, 0
        %v1778 = vsel %vm501, %v1748, 0
        %v1781 = vsel %vm501, %v1749, 0
        %v1784 = vsel %vm501, %v1750, 0
        %1786 = vmatprep.subr.bf16.mxu0 0
        %1787 = vmatpush1.bf16.msra.mxu0 %v1764
        %1788 = vmatprep.subr.bf16.mxu0 0
        %1789 = vmatpush1.bf16.msra.mxu0 %v1765
        %1790 = vmatprep.subr.bf16.mxu0 0
        %1791 = vmatpush1.bf16.msra.mxu0 0
        %1792 = vmatprep.subr.bf16.mxu0 0
        %1793 = vmatpush1.bf16.msra.mxu0 0
        %1794 = vmatprep.subr.bf16.mxu0 0
        %1795 = vmatpush1.bf16.msra.mxu0 0
        %1796 = vmatprep.subr.bf16.mxu0 0
        %1797 = vmatpush1.bf16.msra.mxu0 0
        %1798 = vmatprep.subr.bf16.mxu0 0
        %1799 = vmatpush1.bf16.msra.mxu0 0
        %1800 = vmatprep.subr.bf16.mxu0 0
        %1801 = vmatpush1.bf16.msra.mxu0 0
        %1802 = vmatprep.subr.bf16.mxu0 0
        %1803 = vmatpush1.bf16.msra.mxu0 0
        %1804 = vmatprep.subr.bf16.mxu0 0
        %1805 = vmatpush1.bf16.msra.mxu0 0
        %1806 = vmatprep.subr.bf16.mxu0 0
        %1807 = vmatpush1.bf16.msra.mxu0 0
        %1808 = vmatprep.subr.bf16.mxu0 0
        %1809 = vmatpush1.bf16.msra.mxu0 0
        %1810 = vmatprep.subr.bf16.mxu0 0
        %1811 = vmatpush1.bf16.msra.mxu0 0
        %1812 = vmatprep.subr.bf16.mxu0 0
        %1813 = vmatpush1.bf16.msra.mxu0 0
        %1814 = vmatprep.subr.bf16.mxu0 0
        %1815 = vmatpush1.bf16.msra.mxu0 0
        %1816 = vmatprep.subr.bf16.mxu0 0
        %1817 = vmatpush1.bf16.msra.mxu0 0
        %1818 = vmatprep.mubr.bf16.mxu0 0
        %1819 = vmatmul.mubr.bf16.gmra.mrb[0].mxu0 %v1769
        %v1820 = vpop.f32.mrb[0].mxu0
        %v1821 = vadd.f32 0.0, %v1820
        %v1822 = vpop.f32.mrb[0].mxu0
        %v1823 = vpop.f32.mrb[0].mxu0
        %v1824 = vadd.f32 0.0, %v1823
        %v1825 = vpop.f32.mrb[0].mxu0
        %1826 = vmatprep.mubr.bf16.mxu0 0
        %1827 = vmatmul.mubr.bf16.gmra.mrb[0].mxu0 %v1772
        %v1828 = vpop.f32.mrb[0].mxu0
        %v1829 = vadd.f32 0.0, %v1828
        %v1830 = vpop.f32.mrb[0].mxu0
        %v1831 = vpop.f32.mrb[0].mxu0
        %v1832 = vadd.f32 0.0, %v1831
        %v1833 = vpop.f32.mrb[0].mxu0
        %1834 = vmatprep.mubr.bf16.mxu0 0
        %1835 = vmatmul.mubr.bf16.gmra.mrb[0].mxu0 %v1775
        %v1836 = vpop.f32.mrb[0].mxu0
        %v1837 = vadd.f32 0.0, %v1836
        %v1838 = vpop.f32.mrb[0].mxu0
        %v1839 = vpop.f32.mrb[0].mxu0
        %v1840 = vadd.f32 0.0, %v1839
        %v1841 = vpop.f32.mrb[0].mxu0
        %1842 = vmatprep.mubr.bf16.mxu0 0
        %1843 = vmatmul.mubr.bf16.gmra.mrb[0].mxu0 %v1778
        %v1844 = vpop.f32.mrb[0].mxu0
        %v1845 = vadd.f32 0.0, %v1844
        %v1846 = vpop.f32.mrb[0].mxu0
        %v1847 = vpop.f32.mrb[0].mxu0
        %v1848 = vadd.f32 0.0, %v1847
        %v1849 = vpop.f32.mrb[0].mxu0
        %1850 = vmatprep.mubr.bf16.mxu0 0
        %1851 = vmatmul.mubr.bf16.gmra.mrb[0].mxu0 %v1781
        %v1852 = vpop.f32.mrb[0].mxu0
        %v1853 = vadd.f32 0.0, %v1852
        %v1854 = vpop.f32.mrb[0].mxu0
        %v1855 = vpop.f32.mrb[0].mxu0
        %v1856 = vadd.f32 0.0, %v1855
        %v1857 = vpop.f32.mrb[0].mxu0
        %1858 = vmatprep.mubr.bf16.mxu0 0
        %1859 = vmatmul.mubr.bf16.gmra.mrb[0].mxu0 %v1784
        %v1860 = vpop.f32.mrb[0].mxu0
        %v1861 = vadd.f32 0.0, %v1860
        %v1862 = vpop.f32.mrb[0].mxu0
        %v1863 = vpop.f32.mrb[0].mxu0
        %v1864 = vadd.f32 0.0, %v1863
        %v1865 = vpop.f32.mrb[0].mxu0
        %1866 = vdwg.mxu0
        %v1867 = vadd.f32 %v1719, %v1821
        %v1868 = vadd.f32 %v1720, %v1824
        %v1869 = vadd.f32 %v1721, %v1829
        %v1870 = vadd.f32 %v1722, %v1832
        %v1871 = vadd.f32 %v1723, %v1837
        %v1872 = vadd.f32 %v1724, %v1840
        %v1873 = vadd.f32 %v1725, %v1845
        %v1874 = vadd.f32 %v1726, %v1848
        %v1875 = vadd.f32 %v1727, %v1853
        %v1876 = vadd.f32 %v1728, %v1856
        %v1877 = vadd.f32 %v1729, %v1861
        %v1878 = vadd.f32 %v1730, %v1864
        %s1879 = sadd.s32 %s1015, 55
        %s1880 = scalar_lea.vmem [#allocation2], %s1879
        %v1881 = vld [vmem:[%s1880] sm:$0xff]
        %v1882 = vld [vmem:[%s1880 + $0x8] sm:$0xff]
        %v1883 = vld [vmem:[%s1880 + $0x10] sm:$0xff]
        %v1884 = vld [vmem:[%s1880 + $0x18] sm:$0xff]
        %v1885 = vld [vmem:[%s1880 + $0x20] sm:$0xff]
        %v1886 = vld [vmem:[%s1880 + $0x28] sm:$0xff]
        %v1887 = vld [vmem:[%s1880 + $0x30] sm:$0xff]
        %v1888 = vld [vmem:[%s1880 + $0x38] sm:$0xff]
        %v1889 = vld [vmem:[%s1880 + $0x40] sm:$0xff]
        %v1890 = vld [vmem:[%s1880 + $0x48] sm:$0xff]
        %v1891 = vld [vmem:[%s1880 + $0x50] sm:$0xff]
        %v1892 = vld [vmem:[%s1880 + $0x58] sm:$0xff]
        %v1893 = vpack.c.bf16 %v1882, %v1881
        %v1894 = vpack.c.bf16 %v1884, %v1883
        %v1895 = vpack.c.bf16 %v1886, %v1885
        %v1896 = vpack.c.bf16 %v1888, %v1887
        %v1897 = vpack.c.bf16 %v1890, %v1889
        %v1898 = vpack.c.bf16 %v1892, %v1891
        %s1899 = scalar_lea.vmem %s5, 96
        %v1900 = vld [vmem:[%s1899] sm:$0xf]
        %v1901 = vld [vmem:[%s1899 + $0x4] sm:$0xf]
        %v1902 = vld [vmem:[%s1899 + $0x8] sm:$0xf]
        %v1903 = vld [vmem:[%s1899 + $0xc] sm:$0xf]
        %v1908 = vunpack.c.l.b16 %v1900
        %v1909 = vunpack.c.l.b16 %v1901
        %v1910 = vunpack.c.l.b16 %v1902
        %v1911 = vunpack.c.l.b16 %v1903
        %v1912 = vpack.c.b16 %v1909, %v1908
        %v1913 = vpack.c.b16 %v1911, %v1910
        %v1917 = vsel %vm501, %v1893, 0
        %v1920 = vsel %vm501, %v1894, 0
        %v1923 = vsel %vm501, %v1895, 0
        %v1926 = vsel %vm501, %v1896, 0
        %v1929 = vsel %vm501, %v1897, 0
        %v1932 = vsel %vm501, %v1898, 0
        %1934 = vmatprep.subr.bf16.mxu0 0
        %1935 = vmatpush1.bf16.msra.mxu0 %v1912
        %1936 = vmatprep.subr.bf16.mxu0 0
        %1937 = vmatpush1.bf16.msra.mxu0 %v1913
        %1938 = vmatprep.subr.bf16.mxu0 0
        %1939 = vmatpush1.bf16.msra.mxu0 0
        %1940 = vmatprep.subr.bf16.mxu0 0
        %1941 = vmatpush1.bf16.msra.mxu0 0
        %1942 = vmatprep.subr.bf16.mxu0 0
        %1943 = vmatpush1.bf16.msra.mxu0 0
        %1944 = vmatprep.subr.bf16.mxu0 0
        %1945 = vmatpush1.bf16.msra.mxu0 0
        %1946 = vmatprep.subr.bf16.mxu0 0
        %1947 = vmatpush1.bf16.msra.mxu0 0
        %1948 = vmatprep.subr.bf16.mxu0 0
        %1949 = vmatpush1.bf16.msra.mxu0 0
        %1950 = vmatprep.subr.bf16.mxu0 0
        %1951 = vmatpush1.bf16.msra.mxu0 0
        %1952 = vmatprep.subr.bf16.mxu0 0
        %1953 = vmatpush1.bf16.msra.mxu0 0
        %1954 = vmatprep.subr.bf16.mxu0 0
        %1955 = vmatpush1.bf16.msra.mxu0 0
        %1956 = vmatprep.subr.bf16.mxu0 0
        %1957 = vmatpush1.bf16.msra.mxu0 0
        %1958 = vmatprep.subr.bf16.mxu0 0
        %1959 = vmatpush1.bf16.msra.mxu0 0
        %1960 = vmatprep.subr.bf16.mxu0 0
        %1961 = vmatpush1.bf16.msra.mxu0 0
        %1962 = vmatprep.subr.bf16.mxu0 0
        %1963 = vmatpush1.bf16.msra.mxu0 0
        %1964 = vmatprep.subr.bf16.mxu0 0
        %1965 = vmatpush1.bf16.msra.mxu0 0
        %1966 = vmatprep.mubr.bf16.mxu0 0
        %1967 = vmatmul.mubr.bf16.gmra.mrb[0].mxu0 %v1917
        %v1968 = vpop.f32.mrb[0].mxu0
        %v1969 = vadd.f32 0.0, %v1968
        %v1970 = vpop.f32.mrb[0].mxu0
        %v1971 = vpop.f32.mrb[0].mxu0
        %v1972 = vadd.f32 0.0, %v1971
        %v1973 = vpop.f32.mrb[0].mxu0
        %1974 = vmatprep.mubr.bf16.mxu0 0
        %1975 = vmatmul.mubr.bf16.gmra.mrb[0].mxu0 %v1920
        %v1976 = vpop.f32.mrb[0].mxu0
        %v1977 = vadd.f32 0.0, %v1976
        %v1978 = vpop.f32.mrb[0].mxu0
        %v1979 = vpop.f32.mrb[0].mxu0
        %v1980 = vadd.f32 0.0, %v1979
        %v1981 = vpop.f32.mrb[0].mxu0
        %1982 = vmatprep.mubr.bf16.mxu0 0
        %1983 = vmatmul.mubr.bf16.gmra.mrb[0].mxu0 %v1923
        %v1984 = vpop.f32.mrb[0].mxu0
        %v1985 = vadd.f32 0.0, %v1984
        %v1986 = vpop.f32.mrb[0].mxu0
        %v1987 = vpop.f32.mrb[0].mxu0
        %v1988 = vadd.f32 0.0, %v1987
        %v1989 = vpop.f32.mrb[0].mxu0
        %1990 = vmatprep.mubr.bf16.mxu0 0
        %1991 = vmatmul.mubr.bf16.gmra.mrb[0].mxu0 %v1926
        %v1992 = vpop.f32.mrb[0].mxu0
        %v1993 = vadd.f32 0.0, %v1992
        %v1994 = vpop.f32.mrb[0].mxu0
        %v1995 = vpop.f32.mrb[0].mxu0
        %v1996 = vadd.f32 0.0, %v1995
        %v1997 = vpop.f32.mrb[0].mxu0
        %1998 = vmatprep.mubr.bf16.mxu0 0
        %1999 = vmatmul.mubr.bf16.gmra.mrb[0].mxu0 %v1929
        %v2000 = vpop.f32.mrb[0].mxu0
        %v2001 = vadd.f32 0.0, %v2000
        %v2002 = vpop.f32.mrb[0].mxu0
        %v2003 = vpop.f32.mrb[0].mxu0
        %v2004 = vadd.f32 0.0, %v2003
        %v2005 = vpop.f32.mrb[0].mxu0
        %2006 = vmatprep.mubr.bf16.mxu0 0
        %2007 = vmatmul.mubr.bf16.gmra.mrb[0].mxu0 %v1932
        %v2008 = vpop.f32.mrb[0].mxu0
        %v2009 = vadd.f32 0.0, %v2008
        %v2010 = vpop.f32.mrb[0].mxu0
        %v2011 = vpop.f32.mrb[0].mxu0
        %v2012 = vadd.f32 0.0, %v2011
        %v2013 = vpop.f32.mrb[0].mxu0
        %2014 = vdwg.mxu0
        %v2015 = vadd.f32 %v1867, %v1969
        %v2016 = vadd.f32 %v1868, %v1972
        %v2017 = vadd.f32 %v1869, %v1977
        %v2018 = vadd.f32 %v1870, %v1980
        %v2019 = vadd.f32 %v1871, %v1985
        %v2020 = vadd.f32 %v1872, %v1988
        %v2021 = vadd.f32 %v1873, %v1993
        %v2022 = vadd.f32 %v1874, %v1996
        %v2023 = vadd.f32 %v1875, %v2001
        %v2024 = vadd.f32 %v1876, %v2004
        %v2025 = vadd.f32 %v1877, %v2009
        %v2026 = vadd.f32 %v1878, %v2012
        %s2027 = sadd.s32 %s1015, 56
        %s2028 = scalar_lea.vmem [#allocation2], %s2027
        %v2029 = vld [vmem:[%s2028] sm:$0xff]
        %v2030 = vld [vmem:[%s2028 + $0x8] sm:$0xff]
        %v2031 = vld [vmem:[%s2028 + $0x10] sm:$0xff]
        %v2032 = vld [vmem:[%s2028 + $0x18] sm:$0xff]
        %v2033 = vld [vmem:[%s2028 + $0x20] sm:$0xff]
        %v2034 = vld [vmem:[%s2028 + $0x28] sm:$0xff]
        %v2035 = vld [vmem:[%s2028 + $0x30] sm:$0xff]
        %v2036 = vld [vmem:[%s2028 + $0x38] sm:$0xff]
        %v2037 = vld [vmem:[%s2028 + $0x40] sm:$0xff]
        %v2038 = vld [vmem:[%s2028 + $0x48] sm:$0xff]
        %v2039 = vld [vmem:[%s2028 + $0x50] sm:$0xff]
        %v2040 = vld [vmem:[%s2028 + $0x58] sm:$0xff]
        %v2041 = vpack.c.bf16 %v2030, %v2029
        %v2042 = vpack.c.bf16 %v2032, %v2031
        %v2043 = vpack.c.bf16 %v2034, %v2033
        %v2044 = vpack.c.bf16 %v2036, %v2035
        %v2045 = vpack.c.bf16 %v2038, %v2037
        %v2046 = vpack.c.bf16 %v2040, %v2039
        %s2047 = scalar_lea.vmem %s5, 112
        %v2048 = vld [vmem:[%s2047] sm:$0xf]
        %v2049 = vld [vmem:[%s2047 + $0x4] sm:$0xf]
        %v2050 = vld [vmem:[%s2047 + $0x8] sm:$0xf]
        %v2051 = vld [vmem:[%s2047 + $0xc] sm:$0xf]
        %v2056 = vunpack.c.l.b16 %v2048
        %v2057 = vunpack.c.l.b16 %v2049
        %v2058 = vunpack.c.l.b16 %v2050
        %v2059 = vunpack.c.l.b16 %v2051
        %v2060 = vpack.c.b16 %v2057, %v2056
        %v2061 = vpack.c.b16 %v2059, %v2058
        %v2065 = vsel %vm501, %v2041, 0
        %v2068 = vsel %vm501, %v2042, 0
        %v2071 = vsel %vm501, %v2043, 0
        %v2074 = vsel %vm501, %v2044, 0
        %v2077 = vsel %vm501, %v2045, 0
        %v2080 = vsel %vm501, %v2046, 0
        %2082 = vmatprep.subr.bf16.mxu0 0
        %2083 = vmatpush1.bf16.msra.mxu0 %v2060
        %2084 = vmatprep.subr.bf16.mxu0 0
        %2085 = vmatpush1.bf16.msra.mxu0 %v2061
        %2086 = vmatprep.subr.bf16.mxu0 0
        %2087 = vmatpush1.bf16.msra.mxu0 0
        %2088 = vmatprep.subr.bf16.mxu0 0
        %2089 = vmatpush1.bf16.msra.mxu0 0
        %2090 = vmatprep.subr.bf16.mxu0 0
        %2091 = vmatpush1.bf16.msra.mxu0 0
        %2092 = vmatprep.subr.bf16.mxu0 0
        %2093 = vmatpush1.bf16.msra.mxu0 0
        %2094 = vmatprep.subr.bf16.mxu0 0
        %2095 = vmatpush1.bf16.msra.mxu0 0
        %2096 = vmatprep.subr.bf16.mxu0 0
        %2097 = vmatpush1.bf16.msra.mxu0 0
        %2098 = vmatprep.subr.bf16.mxu0 0
        %2099 = vmatpush1.bf16.msra.mxu0 0
        %2100 = vmatprep.subr.bf16.mxu0 0
        %2101 = vmatpush1.bf16.msra.mxu0 0
        %2102 = vmatprep.subr.bf16.mxu0 0
        %2103 = vmatpush1.bf16.msra.mxu0 0
        %2104 = vmatprep.subr.bf16.mxu0 0
        %2105 = vmatpush1.bf16.msra.mxu0 0
        %2106 = vmatprep.subr.bf16.mxu0 0
        %2107 = vmatpush1.bf16.msra.mxu0 0
        %2108 = vmatprep.subr.bf16.mxu0 0
        %2109 = vmatpush1.bf16.msra.mxu0 0
        %2110 = vmatprep.subr.bf16.mxu0 0
        %2111 = vmatpush1.bf16.msra.mxu0 0
        %2112 = vmatprep.subr.bf16.mxu0 0
        %2113 = vmatpush1.bf16.msra.mxu0 0
        %2114 = vmatprep.mubr.bf16.mxu0 0
        %2115 = vmatmul.mubr.bf16.gmra.mrb[0].mxu0 %v2065
        %v2116 = vpop.f32.mrb[0].mxu0
        %v2117 = vadd.f32 0.0, %v2116
        %v2118 = vpop.f32.mrb[0].mxu0
        %v2119 = vpop.f32.mrb[0].mxu0
        %v2120 = vadd.f32 0.0, %v2119
        %v2121 = vpop.f32.mrb[0].mxu0
        %2122 = vmatprep.mubr.bf16.mxu0 0
        %2123 = vmatmul.mubr.bf16.gmra.mrb[0].mxu0 %v2068
        %v2124 = vpop.f32.mrb[0].mxu0
        %v2125 = vadd.f32 0.0, %v2124
        %v2126 = vpop.f32.mrb[0].mxu0
        %v2127 = vpop.f32.mrb[0].mxu0
        %v2128 = vadd.f32 0.0, %v2127
        %v2129 = vpop.f32.mrb[0].mxu0
        %2130 = vmatprep.mubr.bf16.mxu0 0
        %2131 = vmatmul.mubr.bf16.gmra.mrb[0].mxu0 %v2071
        %v2132 = vpop.f32.mrb[0].mxu0
        %v2133 = vadd.f32 0.0, %v2132
        %v2134 = vpop.f32.mrb[0].mxu0
        %v2135 = vpop.f32.mrb[0].mxu0
        %v2136 = vadd.f32 0.0, %v2135
        %v2137 = vpop.f32.mrb[0].mxu0
        %2138 = vmatprep.mubr.bf16.mxu0 0
        %2139 = vmatmul.mubr.bf16.gmra.mrb[0].mxu0 %v2074
        %v2140 = vpop.f32.mrb[0].mxu0
        %v2141 = vadd.f32 0.0, %v2140
        %v2142 = vpop.f32.mrb[0].mxu0
        %v2143 = vpop.f32.mrb[0].mxu0
        %v2144 = vadd.f32 0.0, %v2143
        %v2145 = vpop.f32.mrb[0].mxu0
        %2146 = vmatprep.mubr.bf16.mxu0 0
        %2147 = vmatmul.mubr.bf16.gmra.mrb[0].mxu0 %v2077
        %v2148 = vpop.f32.mrb[0].mxu0
        %v2149 = vadd.f32 0.0, %v2148
        %v2150 = vpop.f32.mrb[0].mxu0
        %v2151 = vpop.f32.mrb[0].mxu0
        %v2152 = vadd.f32 0.0, %v2151
        %v2153 = vpop.f32.mrb[0].mxu0
        %2154 = vmatprep.mubr.bf16.mxu0 0
        %2155 = vmatmul.mubr.bf16.gmra.mrb[0].mxu0 %v2080
        %v2156 = vpop.f32.mrb[0].mxu0
        %v2157 = vadd.f32 0.0, %v2156
        %v2158 = vpop.f32.mrb[0].mxu0
        %v2159 = vpop.f32.mrb[0].mxu0
        %v2160 = vadd.f32 0.0, %v2159
        %v2161 = vpop.f32.mrb[0].mxu0
        %2162 = vdwg.mxu0
        %v2163 = vadd.f32 %v2015, %v2117
        %v2164 = vadd.f32 %v2016, %v2120
        %v2165 = vadd.f32 %v2017, %v2125
        %v2166 = vadd.f32 %v2018, %v2128
        %v2167 = vadd.f32 %v2019, %v2133
        %v2168 = vadd.f32 %v2020, %v2136
        %v2169 = vadd.f32 %v2021, %v2141
        %v2170 = vadd.f32 %v2022, %v2144
        %v2171 = vadd.f32 %v2023, %v2149
        %v2172 = vadd.f32 %v2024, %v2152
        %v2173 = vadd.f32 %v2025, %v2157
        %v2174 = vadd.f32 %v2026, %v2160
        %s2175 = sadd.s32 %s1015, 57
        %s2176 = scalar_lea.vmem [#allocation2], %s2175
        %v2177 = vld [vmem:[%s2176] sm:$0xff]
        %v2178 = vld [vmem:[%s2176 + $0x8] sm:$0xff]
        %v2179 = vld [vmem:[%s2176 + $0x10] sm:$0xff]
        %v2180 = vld [vmem:[%s2176 + $0x18] sm:$0xff]
        %v2181 = vld [vmem:[%s2176 + $0x20] sm:$0xff]
        %v2182 = vld [vmem:[%s2176 + $0x28] sm:$0xff]
        %v2183 = vld [vmem:[%s2176 + $0x30] sm:$0xff]
        %v2184 = vld [vmem:[%s2176 + $0x38] sm:$0xff]
        %v2185 = vld [vmem:[%s2176 + $0x40] sm:$0xff]
        %v2186 = vld [vmem:[%s2176 + $0x48] sm:$0xff]
        %v2187 = vld [vmem:[%s2176 + $0x50] sm:$0xff]
        %v2188 = vld [vmem:[%s2176 + $0x58] sm:$0xff]
        %v2189 = vpack.c.bf16 %v2178, %v2177
        %v2190 = vpack.c.bf16 %v2180, %v2179
        %v2191 = vpack.c.bf16 %v2182, %v2181
        %v2192 = vpack.c.bf16 %v2184, %v2183
        %v2193 = vpack.c.bf16 %v2186, %v2185
        %v2194 = vpack.c.bf16 %v2188, %v2187
        %s2195 = scalar_lea.vmem %s5, 128
        %v2196 = vld [vmem:[%s2195] sm:$0xf]
        %v2197 = vld [vmem:[%s2195 + $0x4] sm:$0xf]
        %v2198 = vld [vmem:[%s2195 + $0x8] sm:$0xf]
        %v2199 = vld [vmem:[%s2195 + $0xc] sm:$0xf]
        %v2204 = vunpack.c.l.b16 %v2196
        %v2205 = vunpack.c.l.b16 %v2197
        %v2206 = vunpack.c.l.b16 %v2198
        %v2207 = vunpack.c.l.b16 %v2199
        %v2208 = vpack.c.b16 %v2205, %v2204
        %v2209 = vpack.c.b16 %v2207, %v2206
        %v2213 = vsel %vm501, %v2189, 0
        %v2216 = vsel %vm501, %v2190, 0
        %v2219 = vsel %vm501, %v2191, 0
        %v2222 = vsel %vm501, %v2192, 0
        %v2225 = vsel %vm501, %v2193, 0
        %v2228 = vsel %vm501, %v2194, 0
        %2230 = vmatprep.subr.bf16.mxu0 0
        %2231 = vmatpush1.bf16.msra.mxu0 %v2208
        %2232 = vmatprep.subr.bf16.mxu0 0
        %2233 = vmatpush1.bf16.msra.mxu0 %v2209
        %2234 = vmatprep.subr.bf16.mxu0 0
        %2235 = vmatpush1.bf16.msra.mxu0 0
        %2236 = vmatprep.subr.bf16.mxu0 0
        %2237 = vmatpush1.bf16.msra.mxu0 0
        %2238 = vmatprep.subr.bf16.mxu0 0
        %2239 = vmatpush1.bf16.msra.mxu0 0
        %2240 = vmatprep.subr.bf16.mxu0 0
        %2241 = vmatpush1.bf16.msra.mxu0 0
        %2242 = vmatprep.subr.bf16.mxu0 0
        %2243 = vmatpush1.bf16.msra.mxu0 0
        %2244 = vmatprep.subr.bf16.mxu0 0
        %2245 = vmatpush1.bf16.msra.mxu0 0
        %2246 = vmatprep.subr.bf16.mxu0 0
        %2247 = vmatpush1.bf16.msra.mxu0 0
        %2248 = vmatprep.subr.bf16.mxu0 0
        %2249 = vmatpush1.bf16.msra.mxu0 0
        %2250 = vmatprep.subr.bf16.mxu0 0
        %2251 = vmatpush1.bf16.msra.mxu0 0
        %2252 = vmatprep.subr.bf16.mxu0 0
        %2253 = vmatpush1.bf16.msra.mxu0 0
        %2254 = vmatprep.subr.bf16.mxu0 0
        %2255 = vmatpush1.bf16.msra.mxu0 0
        %2256 = vmatprep.subr.bf16.mxu0 0
        %2257 = vmatpush1.bf16.msra.mxu0 0
        %2258 = vmatprep.subr.bf16.mxu0 0
        %2259 = vmatpush1.bf16.msra.mxu0 0
        %2260 = vmatprep.subr.bf16.mxu0 0
        %2261 = vmatpush1.bf16.msra.mxu0 0
        %2262 = vmatprep.mubr.bf16.mxu0 0
        %2263 = vmatmul.mubr.bf16.gmra.mrb[0].mxu0 %v2213
        %v2264 = vpop.f32.mrb[0].mxu0
        %v2265 = vadd.f32 0.0, %v2264
        %v2266 = vpop.f32.mrb[0].mxu0
        %v2267 = vpop.f32.mrb[0].mxu0
        %v2268 = vadd.f32 0.0, %v2267
        %v2269 = vpop.f32.mrb[0].mxu0
        %2270 = vmatprep.mubr.bf16.mxu0 0
        %2271 = vmatmul.mubr.bf16.gmra.mrb[0].mxu0 %v2216
        %v2272 = vpop.f32.mrb[0].mxu0
        %v2273 = vadd.f32 0.0, %v2272
        %v2274 = vpop.f32.mrb[0].mxu0
        %v2275 = vpop.f32.mrb[0].mxu0
        %v2276 = vadd.f32 0.0, %v2275
        %v2277 = vpop.f32.mrb[0].mxu0
        %2278 = vmatprep.mubr.bf16.mxu0 0
        %2279 = vmatmul.mubr.bf16.gmra.mrb[0].mxu0 %v2219
        %v2280 = vpop.f32.mrb[0].mxu0
        %v2281 = vadd.f32 0.0, %v2280
        %v2282 = vpop.f32.mrb[0].mxu0
        %v2283 = vpop.f32.mrb[0].mxu0
        %v2284 = vadd.f32 0.0, %v2283
        %v2285 = vpop.f32.mrb[0].mxu0
        %2286 = vmatprep.mubr.bf16.mxu0 0
        %2287 = vmatmul.mubr.bf16.gmra.mrb[0].mxu0 %v2222
        %v2288 = vpop.f32.mrb[0].mxu0
        %v2289 = vadd.f32 0.0, %v2288
        %v2290 = vpop.f32.mrb[0].mxu0
        %v2291 = vpop.f32.mrb[0].mxu0
        %v2292 = vadd.f32 0.0, %v2291
        %v2293 = vpop.f32.mrb[0].mxu0
        %2294 = vmatprep.mubr.bf16.mxu0 0
        %2295 = vmatmul.mubr.bf16.gmra.mrb[0].mxu0 %v2225
        %v2296 = vpop.f32.mrb[0].mxu0
        %v2297 = vadd.f32 0.0, %v2296
        %v2298 = vpop.f32.mrb[0].mxu0
        %v2299 = vpop.f32.mrb[0].mxu0
        %v2300 = vadd.f32 0.0, %v2299
        %v2301 = vpop.f32.mrb[0].mxu0
        %2302 = vmatprep.mubr.bf16.mxu0 0
        %2303 = vmatmul.mubr.bf16.gmra.mrb[0].mxu0 %v2228
        %v2304 = vpop.f32.mrb[0].mxu0
        %v2305 = vadd.f32 0.0, %v2304
        %v2306 = vpop.f32.mrb[0].mxu0
        %v2307 = vpop.f32.mrb[0].mxu0
        %v2308 = vadd.f32 0.0, %v2307
        %v2309 = vpop.f32.mrb[0].mxu0
        %2310 = vdwg.mxu0
        %v2311 = vadd.f32 %v2163, %v2265
        %v2312 = vadd.f32 %v2164, %v2268
        %v2313 = vadd.f32 %v2165, %v2273
        %v2314 = vadd.f32 %v2166, %v2276
        %v2315 = vadd.f32 %v2167, %v2281
        %v2316 = vadd.f32 %v2168, %v2284
        %v2317 = vadd.f32 %v2169, %v2289
        %v2318 = vadd.f32 %v2170, %v2292
        %v2319 = vadd.f32 %v2171, %v2297
        %v2320 = vadd.f32 %v2172, %v2300
        %v2321 = vadd.f32 %v2173, %v2305
        %v2322 = vadd.f32 %v2174, %v2308
        %v2323 = vlaneseq
        %v2324 = vshrl.u32 %v2323, 7
        %v2325 = vadd.s32 %v2324, 8
        %v2326 = vadd.s32 %v2324, 16
        %v2327 = vadd.s32 %v2324, 24
        %v2328 = vadd.s32 %v2324, 32
        %v2329 = vadd.s32 %v2324, 40
        %v2330 = vadd.s32 %v2324, 48
        %v2331 = vadd.s32 %v2324, 56
        %v2332 = vadd.s32 %v2324, 64
        %v2333 = vadd.s32 %v2324, 72
        %v2334 = vadd.s32 %v2324, 80
        %v2335 = vadd.s32 %v2324, 88
        %vm2336 = vcmp.ge.s32.totalorder %v2324, 0
        %vm2337 = vcmp.ge.s32.totalorder %v2325, 0
        %vm2338 = vcmp.ge.s32.totalorder %v2326, 0
        %vm2339 = vcmp.ge.s32.totalorder %v2327, 0
        %vm2340 = vcmp.ge.s32.totalorder %v2328, 0
        %vm2341 = vcmp.ge.s32.totalorder %v2329, 0
        %vm2342 = vcmp.ge.s32.totalorder %v2330, 0
        %vm2343 = vcmp.ge.s32.totalorder %v2331, 0
        %vm2344 = vcmp.ge.s32.totalorder %v2332, 0
        %vm2345 = vcmp.ge.s32.totalorder %v2333, 0
        %vm2346 = vcmp.ge.s32.totalorder %v2334, 0
        %vm2347 = vcmp.ge.s32.totalorder %v2335, 0
        %vm2348 = vcmp.lt.s32.totalorder %v2324, 16
        %vm2349 = vcmp.lt.s32.totalorder %v2325, 16
        %vm2350 = vcmp.lt.s32.totalorder %v2326, 16
        %vm2351 = vcmp.lt.s32.totalorder %v2327, 16
        %vm2352 = vcmp.lt.s32.totalorder %v2328, 16
        %vm2353 = vcmp.lt.s32.totalorder %v2329, 16
        %vm2354 = vcmp.lt.s32.totalorder %v2330, 16
        %vm2355 = vcmp.lt.s32.totalorder %v2331, 16
        %vm2356 = vcmp.lt.s32.totalorder %v2332, 16
        %vm2357 = vcmp.lt.s32.totalorder %v2333, 16
        %vm2358 = vcmp.lt.s32.totalorder %v2334, 16
        %vm2359 = vcmp.lt.s32.totalorder %v2335, 16
        %vm2360 = vmand %vm2336, %vm2348
        %vm2361 = vmand %vm2337, %vm2349
        %vm2362 = vmand %vm2338, %vm2350
        %vm2363 = vmand %vm2339, %vm2351
        %vm2364 = vmand %vm2340, %vm2352
        %vm2365 = vmand %vm2341, %vm2353
        %vm2366 = vmand %vm2342, %vm2354
        %vm2367 = vmand %vm2343, %vm2355
        %vm2368 = vmand %vm2344, %vm2356
        %vm2369 = vmand %vm2345, %vm2357
        %vm2370 = vmand %vm2346, %vm2358
        %vm2371 = vmand %vm2347, %vm2359
        %vm2372 = vcmp.ge.s32.totalorder %v2324, 24
        %vm2373 = vcmp.ge.s32.totalorder %v2325, 24
        %vm2374 = vcmp.ge.s32.totalorder %v2326, 24
        %vm2375 = vcmp.ge.s32.totalorder %v2327, 24
        %vm2376 = vcmp.ge.s32.totalorder %v2328, 24
        %vm2377 = vcmp.ge.s32.totalorder %v2329, 24
        %vm2378 = vcmp.ge.s32.totalorder %v2330, 24
        %vm2379 = vcmp.ge.s32.totalorder %v2331, 24
        %vm2380 = vcmp.ge.s32.totalorder %v2332, 24
        %vm2381 = vcmp.ge.s32.totalorder %v2333, 24
        %vm2382 = vcmp.ge.s32.totalorder %v2334, 24
        %vm2383 = vcmp.ge.s32.totalorder %v2335, 24
        %vm2384 = vcmp.lt.s32.totalorder %v2324, 40
        %vm2385 = vcmp.lt.s32.totalorder %v2325, 40
        %vm2386 = vcmp.lt.s32.totalorder %v2326, 40
        %vm2387 = vcmp.lt.s32.totalorder %v2327, 40
        %vm2388 = vcmp.lt.s32.totalorder %v2328, 40
        %vm2389 = vcmp.lt.s32.totalorder %v2329, 40
        %vm2390 = vcmp.lt.s32.totalorder %v2330, 40
        %vm2391 = vcmp.lt.s32.totalorder %v2331, 40
        %vm2392 = vcmp.lt.s32.totalorder %v2332, 40
        %vm2393 = vcmp.lt.s32.totalorder %v2333, 40
        %vm2394 = vcmp.lt.s32.totalorder %v2334, 40
        %vm2395 = vcmp.lt.s32.totalorder %v2335, 40
        %vm2396 = vmand %vm2372, %vm2384
        %vm2397 = vmand %vm2373, %vm2385
        %vm2398 = vmand %vm2374, %vm2386
        %vm2399 = vmand %vm2375, %vm2387
        %vm2400 = vmand %vm2376, %vm2388
        %vm2401 = vmand %vm2377, %vm2389
        %vm2402 = vmand %vm2378, %vm2390
        %vm2403 = vmand %vm2379, %vm2391
        %vm2404 = vmand %vm2380, %vm2392
        %vm2405 = vmand %vm2381, %vm2393
        %vm2406 = vmand %vm2382, %vm2394
        %vm2407 = vmand %vm2383, %vm2395
        %vm2408 = vcmp.ge.s32.totalorder %v2324, 48
        %vm2409 = vcmp.ge.s32.totalorder %v2325, 48
        %vm2410 = vcmp.ge.s32.totalorder %v2326, 48
        %vm2411 = vcmp.ge.s32.totalorder %v2327, 48
        %vm2412 = vcmp.ge.s32.totalorder %v2328, 48
        %vm2413 = vcmp.ge.s32.totalorder %v2329, 48
        %vm2414 = vcmp.ge.s32.totalorder %v2330, 48
        %vm2415 = vcmp.ge.s32.totalorder %v2331, 48
        %vm2416 = vcmp.ge.s32.totalorder %v2332, 48
        %vm2417 = vcmp.ge.s32.totalorder %v2333, 48
        %vm2418 = vcmp.ge.s32.totalorder %v2334, 48
        %vm2419 = vcmp.ge.s32.totalorder %v2335, 48
        %vm2420 = vcmp.lt.s32.totalorder %v2324, 64
        %vm2421 = vcmp.lt.s32.totalorder %v2325, 64
        %vm2422 = vcmp.lt.s32.totalorder %v2326, 64
        %vm2423 = vcmp.lt.s32.totalorder %v2327, 64
        %vm2424 = vcmp.lt.s32.totalorder %v2328, 64
        %vm2425 = vcmp.lt.s32.totalorder %v2329, 64
        %vm2426 = vcmp.lt.s32.totalorder %v2330, 64
        %vm2427 = vcmp.lt.s32.totalorder %v2331, 64
        %vm2428 = vcmp.lt.s32.totalorder %v2332, 64
        %vm2429 = vcmp.lt.s32.totalorder %v2333, 64
        %vm2430 = vcmp.lt.s32.totalorder %v2334, 64
        %vm2431 = vcmp.lt.s32.totalorder %v2335, 64
        %vm2432 = vmand %vm2408, %vm2420
        %vm2433 = vmand %vm2409, %vm2421
        %vm2434 = vmand %vm2410, %vm2422
        %vm2435 = vmand %vm2411, %vm2423
        %vm2436 = vmand %vm2412, %vm2424
        %vm2437 = vmand %vm2413, %vm2425
        %vm2438 = vmand %vm2414, %vm2426
        %vm2439 = vmand %vm2415, %vm2427
        %vm2440 = vmand %vm2416, %vm2428
        %vm2441 = vmand %vm2417, %vm2429
        %vm2442 = vmand %vm2418, %vm2430
        %vm2443 = vmand %vm2419, %vm2431
        %vm2444 = vcmp.ge.s32.totalorder %v2324, 72
        %vm2445 = vcmp.ge.s32.totalorder %v2325, 72
        %vm2446 = vcmp.ge.s32.totalorder %v2326, 72
        %vm2447 = vcmp.ge.s32.totalorder %v2327, 72
        %vm2448 = vcmp.ge.s32.totalorder %v2328, 72
        %vm2449 = vcmp.ge.s32.totalorder %v2329, 72
        %vm2450 = vcmp.ge.s32.totalorder %v2330, 72
        %vm2451 = vcmp.ge.s32.totalorder %v2331, 72
        %vm2452 = vcmp.ge.s32.totalorder %v2332, 72
        %vm2453 = vcmp.ge.s32.totalorder %v2333, 72
        %vm2454 = vcmp.ge.s32.totalorder %v2334, 72
        %vm2455 = vcmp.ge.s32.totalorder %v2335, 72
        %vm2456 = vcmp.lt.s32.totalorder %v2324, 88
        %vm2457 = vcmp.lt.s32.totalorder %v2325, 88
        %vm2458 = vcmp.lt.s32.totalorder %v2326, 88
        %vm2459 = vcmp.lt.s32.totalorder %v2327, 88
        %vm2460 = vcmp.lt.s32.totalorder %v2328, 88
        %vm2461 = vcmp.lt.s32.totalorder %v2329, 88
        %vm2462 = vcmp.lt.s32.totalorder %v2330, 88
        %vm2463 = vcmp.lt.s32.totalorder %v2331, 88
        %vm2464 = vcmp.lt.s32.totalorder %v2332, 88
        %vm2465 = vcmp.lt.s32.totalorder %v2333, 88
        %vm2466 = vcmp.lt.s32.totalorder %v2334, 88
        %vm2467 = vcmp.lt.s32.totalorder %v2335, 88
        %vm2468 = vmand %vm2444, %vm2456
        %vm2469 = vmand %vm2445, %vm2457
        %vm2470 = vmand %vm2446, %vm2458
        %vm2471 = vmand %vm2447, %vm2459
        %vm2472 = vmand %vm2448, %vm2460
        %vm2473 = vmand %vm2449, %vm2461
        %vm2474 = vmand %vm2450, %vm2462
        %vm2475 = vmand %vm2451, %vm2463
        %vm2476 = vmand %vm2452, %vm2464
        %vm2477 = vmand %vm2453, %vm2465
        %vm2478 = vmand %vm2454, %vm2466
        %vm2479 = vmand %vm2455, %vm2467
        %vm2480 = vmor %vm2360, %vm2396
        %vm2481 = vmor %vm2361, %vm2397
        %vm2482 = vmor %vm2362, %vm2398
        %vm2483 = vmor %vm2363, %vm2399
        %vm2484 = vmor %vm2364, %vm2400
        %vm2485 = vmor %vm2365, %vm2401
        %vm2486 = vmor %vm2366, %vm2402
        %vm2487 = vmor %vm2367, %vm2403
        %vm2488 = vmor %vm2368, %vm2404
        %vm2489 = vmor %vm2369, %vm2405
        %vm2490 = vmor %vm2370, %vm2406
        %vm2491 = vmor %vm2371, %vm2407
        %vm2492 = vmor %vm2480, %vm2432
        %vm2493 = vmor %vm2481, %vm2433
        %vm2494 = vmor %vm2482, %vm2434
        %vm2495 = vmor %vm2483, %vm2435
        %vm2496 = vmor %vm2484, %vm2436
        %vm2497 = vmor %vm2485, %vm2437
        %vm2498 = vmor %vm2486, %vm2438
        %vm2499 = vmor %vm2487, %vm2439
        %vm2500 = vmor %vm2488, %vm2440
        %vm2501 = vmor %vm2489, %vm2441
        %vm2502 = vmor %vm2490, %vm2442
        %vm2503 = vmor %vm2491, %vm2443
        %vm2504 = vmor %vm2492, %vm2468
        %vm2505 = vmor %vm2493, %vm2469
        %vm2506 = vmor %vm2494, %vm2470
        %vm2507 = vmor %vm2495, %vm2471
        %vm2508 = vmor %vm2496, %vm2472
        %vm2509 = vmor %vm2497, %vm2473
        %vm2510 = vmor %vm2498, %vm2474
        %vm2511 = vmor %vm2499, %vm2475
        %vm2512 = vmor %vm2500, %vm2476
        %vm2513 = vmor %vm2501, %vm2477
        %vm2514 = vmor %vm2502, %vm2478
        %vm2515 = vmor %vm2503, %vm2479
        %v2517 = vlaneseq
        %v2518 = vshrl.u32 %v2517, 7
        %v2519 = vsub.s32 0, %v2518
        %v2520 = vrot.slane %v1006, %v2519
        %v2522 = vadd.f32 %v2311, %v2520
        %v2523 = vadd.f32 %v2312, %v2520
        %v2524 = vadd.f32 %v2313, %v2520
        %v2525 = vadd.f32 %v2314, %v2520
        %v2526 = vadd.f32 %v2315, %v2520
        %v2527 = vadd.f32 %v2316, %v2520
        %v2528 = vadd.f32 %v2317, %v2520
        %v2529 = vadd.f32 %v2318, %v2520
        %v2530 = vadd.f32 %v2319, %v2520
        %v2531 = vadd.f32 %v2320, %v2520
        %v2532 = vadd.f32 %v2321, %v2520
        %v2533 = vadd.f32 %v2322, %v2520
        %v2534 = vsel %vm2504, %v2522, 0.0
        %v2535 = vsel %vm2505, %v2523, 0.0
        %v2536 = vsel %vm2506, %v2524, 0.0
        %v2537 = vsel %vm2507, %v2525, 0.0
        %v2538 = vsel %vm2508, %v2526, 0.0
        %v2539 = vsel %vm2509, %v2527, 0.0
        %v2540 = vsel %vm2510, %v2528, 0.0
        %v2541 = vsel %vm2511, %v2529, 0.0
        %v2542 = vsel %vm2512, %v2530, 0.0
        %v2543 = vsel %vm2513, %v2531, 0.0
        %v2544 = vsel %vm2514, %v2532, 0.0
        %v2545 = vsel %vm2515, %v2533, 0.0
        %s2546 = scalar_lea.vmem [#allocation3], %s1583
        %2547 = vst [vmem:[%s2546] sm:$0xff] %v2534
        %2548 = vst [vmem:[%s2546 + $0x8] sm:$0xff] %v2535
        %2549 = vst [vmem:[%s2546 + $0x10] sm:$0xff] %v2536
        %2550 = vst [vmem:[%s2546 + $0x18] sm:$0xff] %v2537
        %2551 = vst [vmem:[%s2546 + $0x20] sm:$0xff] %v2538
        %2552 = vst [vmem:[%s2546 + $0x28] sm:$0xff] %v2539
        %2553 = vst [vmem:[%s2546 + $0x30] sm:$0xff] %v2540
        %2554 = vst [vmem:[%s2546 + $0x38] sm:$0xff] %v2541
        %2555 = vst [vmem:[%s2546 + $0x40] sm:$0xff] %v2542
        %2556 = vst [vmem:[%s2546 + $0x48] sm:$0xff] %v2543
        %2557 = vst [vmem:[%s2546 + $0x50] sm:$0xff] %v2544
        %2558 = vst [vmem:[%s2546 + $0x58] sm:$0xff] %v2545
        %v2559 = vadd.f32 %v2534, %v2535
        %v2560 = vadd.f32 %v2559, %v2536
        %v2561 = vadd.f32 %v2560, %v2537
        %v2562 = vadd.f32 %v2561, %v2538
        %v2563 = vadd.f32 %v2562, %v2539
        %v2564 = vadd.f32 %v2563, %v2540
        %v2565 = vadd.f32 %v2564, %v2541
        %v2566 = vadd.f32 %v2565, %v2542
        %v2567 = vadd.f32 %v2566, %v2543
        %v2568 = vadd.f32 %v2567, %v2544
        %v2569 = vadd.f32 %v2568, %v2545
        %v2570 = vrot.slane %v2569, 4
        %v2571 = vadd.f32 %v2569, %v2570
        %v2572 = vrot.slane %v2571, 2
        %v2573 = vadd.f32 %v2571, %v2572
        %v2574 = vrot.slane %v2573, 1
        %v2575 = vadd.f32 %v2573, %v2574
        %v2576 = vadd.f32 %v1013, %v2575
        %v2577 = vmul.f32 %v2534, %v2534
        %v2578 = vmul.f32 %v2535, %v2535
        %v2579 = vmul.f32 %v2536, %v2536
        %v2580 = vmul.f32 %v2537, %v2537
        %v2581 = vmul.f32 %v2538, %v2538
        %v2582 = vmul.f32 %v2539, %v2539
        %v2583 = vmul.f32 %v2540, %v2540
        %v2584 = vmul.f32 %v2541, %v2541
        %v2585 = vmul.f32 %v2542, %v2542
        %v2586 = vmul.f32 %v2543, %v2543
        %v2587 = vmul.f32 %v2544, %v2544
        %v2588 = vmul.f32 %v2545, %v2545
        %v2589 = vadd.f32 %v2577, %v2578
        %v2590 = vadd.f32 %v2589, %v2579
        %v2591 = vadd.f32 %v2590, %v2580
        %v2592 = vadd.f32 %v2591, %v2581
        %v2593 = vadd.f32 %v2592, %v2582
        %v2594 = vadd.f32 %v2593, %v2583
        %v2595 = vadd.f32 %v2594, %v2584
        %v2596 = vadd.f32 %v2595, %v2585
        %v2597 = vadd.f32 %v2596, %v2586
        %v2598 = vadd.f32 %v2597, %v2587
        %v2599 = vadd.f32 %v2598, %v2588
        %v2600 = vrot.slane %v2599, 4
        %v2601 = vadd.f32 %v2599, %v2600
        %v2602 = vrot.slane %v2601, 2
        %v2603 = vadd.f32 %v2601, %v2602
        %v2604 = vrot.slane %v2603, 1
        %v2605 = vadd.f32 %v2603, %v2604
        %v2606 = vadd.f32 %v1014, %v2605
      $region99: #{resnet_block_2d.1} parent=79 // loop_footer
        %s1012 = sadd.s32 1, %s1008
      $region100: #{resnet_block_2d.1} parent=79 // loop_footer_branch
        %1007 = sbr.rel target = $region96
      $region101: #{resnet_block_2d.1} parent=79 // loop_exit
        _
      %v2607 = vld [vmem:[%s9] sm:$0xff]
      %v2608 = vld [vmem:[%s9 + $0x8] sm:$0xff]
      %v2609 = vld [vmem:[%s9 + $0x10] sm:$0xff]
      %v2610 = vld [vmem:[%s9 + $0x18] sm:$0xff]
      %v2611 = vld [vmem:[%s9 + $0x20] sm:$0xff]
      %v2612 = vld [vmem:[%s9 + $0x28] sm:$0xff]
      %v2613 = vld [vmem:[%s9 + $0x30] sm:$0xff]
      %v2614 = vld [vmem:[%s9 + $0x38] sm:$0xff]
      %v2615 = vld [vmem:[%s9 + $0x40] sm:$0xff]
      %v2616 = vld [vmem:[%s9 + $0x48] sm:$0xff]
      %v2617 = vld [vmem:[%s9 + $0x50] sm:$0xff]
      %v2618 = vld [vmem:[%s9 + $0x58] sm:$0xff]
      %v2619 = vld [vmem:[%s9 + $0x60] sm:$0xff]
      %v2620 = vld [vmem:[%s9 + $0x68] sm:$0xff]
      %v2621 = vld [vmem:[%s9 + $0x70] sm:$0xff]
      %v2622 = vld [vmem:[%s9 + $0x78] sm:$0xff]
      %2623 = vmatprep.subr.mxu0 0.0
      %2624 = vmatpush1.msra.mxu0 %v2607
      %2625 = vmatprep.subr.mxu0 0.0
      %2626 = vmatpush1.msra.mxu0 %v2608
      %2627 = vmatprep.subr.mxu0 0.0
      %2628 = vmatpush1.msra.mxu0 %v2609
      %2629 = vmatprep.subr.mxu0 0.0
      %2630 = vmatpush1.msra.mxu0 %v2610
      %2631 = vmatprep.subr.mxu0 0.0
      %2632 = vmatpush1.msra.mxu0 %v2611
      %2633 = vmatprep.subr.mxu0 0.0
      %2634 = vmatpush1.msra.mxu0 %v2612
      %2635 = vmatprep.subr.mxu0 0.0
      %2636 = vmatpush1.msra.mxu0 %v2613
      %2637 = vmatprep.subr.mxu0 0.0
      %2638 = vmatpush1.msra.mxu0 %v2614
      %2639 = vmatprep.subr.mxu0 0.0
      %2640 = vmatpush1.msra.mxu0 %v2615
      %2641 = vmatprep.subr.mxu0 0.0
      %2642 = vmatpush1.msra.mxu0 %v2616
      %2643 = vmatprep.subr.mxu0 0.0
      %2644 = vmatpush1.msra.mxu0 %v2617
      %2645 = vmatprep.subr.mxu0 0.0
      %2646 = vmatpush1.msra.mxu0 %v2618
      %2647 = vmatprep.subr.mxu0 0.0
      %2648 = vmatpush1.msra.mxu0 %v2619
      %2649 = vmatprep.subr.mxu0 0.0
      %2650 = vmatpush1.msra.mxu0 %v2620
      %2651 = vmatprep.subr.mxu0 0.0
      %2652 = vmatpush1.msra.mxu0 %v2621
      %2653 = vmatprep.subr.mxu0 0.0
      %2654 = vmatpush1.msra.mxu0 %v2622
      %2655 = vmatprep.subr.mxu0 0.0
      %2656 = vmatpush1.msra.mxu0 0.0
      %2657 = vmatprep.subr.mxu0 0.0
      %2658 = vmatpush1.msra.mxu0 0.0
      %2659 = vmatprep.subr.mxu0 0.0
      %2660 = vmatpush1.msra.mxu0 0.0
      %2661 = vmatprep.subr.mxu0 0.0
      %2662 = vmatpush1.msra.mxu0 0.0
      %2663 = vmatprep.subr.mxu0 0.0
      %2664 = vmatpush1.msra.mxu0 0.0
      %2665 = vmatprep.subr.mxu0 0.0
      %2666 = vmatpush1.msra.mxu0 0.0
      %2667 = vmatprep.subr.mxu0 0.0
      %2668 = vmatpush1.msra.mxu0 0.0
      %2669 = vmatprep.subr.mxu0 0.0
      %2670 = vmatpush1.msra.mxu0 0.0
      %2671 = vmatprep.subr.mxu0 0.0
      %2672 = vmatpush1.msra.mxu0 0.0
      %2673 = vmatprep.subr.mxu0 0.0
      %2674 = vmatpush1.msra.mxu0 0.0
      %2675 = vmatprep.subr.mxu0 0.0
      %2676 = vmatpush1.msra.mxu0 0.0
      %2677 = vmatprep.subr.mxu0 0.0
      %2678 = vmatpush1.msra.mxu0 0.0
      %2679 = vmatprep.subr.mxu0 0.0
      %2680 = vmatpush1.msra.mxu0 0.0
      %2681 = vmatprep.subr.mxu0 0.0
      %2682 = vmatpush1.msra.mxu0 0.0
      %2683 = vmatprep.subr.mxu0 0.0
      %2684 = vmatpush1.msra.mxu0 0.0
      %2685 = vmatprep.subr.mxu0 0.0
      %2686 = vmatpush1.msra.mxu0 0.0
      %2687 = vmatprep.mubr.f32.mxu0 0.0
      %2688 = vmatmul.mubr.f32.gmra.mrb[0].mxu0 %v1013
      %v2689 = vpop.f32.mrb[0].mxu0
      %v2690 = vadd.f32 0.0, %v2689
      %v2691 = vpop.f32.mrb[0].mxu0
      %2692 = vdwg.mxu0
      %v2693 = vld [vmem:[%s10] sm:$0xff]
      %v2695 = vsel %vm666, %v2690, 0
      %2697 = vmatprep.subr.mxu0 0.0
      %2698 = vmatpush1.msra.mxu0 %v2693
      %2699 = vmatprep.subr.mxu0 0.0
      %2700 = vmatpush1.msra.mxu0 0.0
      %2701 = vmatprep.subr.mxu0 0.0
      %2702 = vmatpush1.msra.mxu0 0.0
      %2703 = vmatprep.subr.mxu0 0.0
      %2704 = vmatpush1.msra.mxu0 0.0
      %2705 = vmatprep.subr.mxu0 0.0
      %2706 = vmatpush1.msra.mxu0 0.0
      %2707 = vmatprep.subr.mxu0 0.0
      %2708 = vmatpush1.msra.mxu0 0.0
      %2709 = vmatprep.subr.mxu0 0.0
      %2710 = vmatpush1.msra.mxu0 0.0
      %2711 = vmatprep.subr.mxu0 0.0
      %2712 = vmatpush1.msra.mxu0 0.0
      %2713 = vmatprep.subr.mxu0 0.0
      %2714 = vmatpush1.msra.mxu0 0.0
      %2715 = vmatprep.subr.mxu0 0.0
      %2716 = vmatpush1.msra.mxu0 0.0
      %2717 = vmatprep.subr.mxu0 0.0
      %2718 = vmatpush1.msra.mxu0 0.0
      %2719 = vmatprep.subr.mxu0 0.0
      %2720 = vmatpush1.msra.mxu0 0.0
      %2721 = vmatprep.subr.mxu0 0.0
      %2722 = vmatpush1.msra.mxu0 0.0
      %2723 = vmatprep.subr.mxu0 0.0
      %2724 = vmatpush1.msra.mxu0 0.0
      %2725 = vmatprep.subr.mxu0 0.0
      %2726 = vmatpush1.msra.mxu0 0.0
      %2727 = vmatprep.subr.mxu0 0.0
      %2728 = vmatpush1.msra.mxu0 0.0
      %2729 = vmatprep.subr.mxu0 0.0
      %2730 = vmatpush1.msra.mxu0 0.0
      %2731 = vmatprep.subr.mxu0 0.0
      %2732 = vmatpush1.msra.mxu0 0.0
      %2733 = vmatprep.subr.mxu0 0.0
      %2734 = vmatpush1.msra.mxu0 0.0
      %2735 = vmatprep.subr.mxu0 0.0
      %2736 = vmatpush1.msra.mxu0 0.0
      %2737 = vmatprep.subr.mxu0 0.0
      %2738 = vmatpush1.msra.mxu0 0.0
      %2739 = vmatprep.subr.mxu0 0.0
      %2740 = vmatpush1.msra.mxu0 0.0
      %2741 = vmatprep.subr.mxu0 0.0
      %2742 = vmatpush1.msra.mxu0 0.0
      %2743 = vmatprep.subr.mxu0 0.0
      %2744 = vmatpush1.msra.mxu0 0.0
      %2745 = vmatprep.subr.mxu0 0.0
      %2746 = vmatpush1.msra.mxu0 0.0
      %2747 = vmatprep.subr.mxu0 0.0
      %2748 = vmatpush1.msra.mxu0 0.0
      %2749 = vmatprep.subr.mxu0 0.0
      %2750 = vmatpush1.msra.mxu0 0.0
      %2751 = vmatprep.subr.mxu0 0.0
      %2752 = vmatpush1.msra.mxu0 0.0
      %2753 = vmatprep.subr.mxu0 0.0
      %2754 = vmatpush1.msra.mxu0 0.0
      %2755 = vmatprep.subr.mxu0 0.0
      %2756 = vmatpush1.msra.mxu0 0.0
      %2757 = vmatprep.subr.mxu0 0.0
      %2758 = vmatpush1.msra.mxu0 0.0
      %2759 = vmatprep.subr.mxu0 0.0
      %2760 = vmatpush1.msra.mxu0 0.0
      %2761 = vmatprep.mubr.f32.mxu0 0.0
      %2762 = vmatmul.mubr.f32.gmra.mrb[0].mxu0 %v2695
      %v2763 = vpop.f32.mrb[0].mxu0
      %v2764 = vadd.f32 0.0, %v2763
      %v2765 = vpop.f32.mrb[0].mxu0
      %2766 = vdwg.mxu0
      %2767 = vmatprep.subr.mxu0 0.0
      %2768 = vmatpush1.msra.mxu0 %v2607
      %2769 = vmatprep.subr.mxu0 0.0
      %2770 = vmatpush1.msra.mxu0 %v2608
      %2771 = vmatprep.subr.mxu0 0.0
      %2772 = vmatpush1.msra.mxu0 %v2609
      %2773 = vmatprep.subr.mxu0 0.0
      %2774 = vmatpush1.msra.mxu0 %v2610
      %2775 = vmatprep.subr.mxu0 0.0
      %2776 = vmatpush1.msra.mxu0 %v2611
      %2777 = vmatprep.subr.mxu0 0.0
      %2778 = vmatpush1.msra.mxu0 %v2612
      %2779 = vmatprep.subr.mxu0 0.0
      %2780 = vmatpush1.msra.mxu0 %v2613
      %2781 = vmatprep.subr.mxu0 0.0
      %2782 = vmatpush1.msra.mxu0 %v2614
      %2783 = vmatprep.subr.mxu0 0.0
      %2784 = vmatpush1.msra.mxu0 %v2615
      %2785 = vmatprep.subr.mxu0 0.0
      %2786 = vmatpush1.msra.mxu0 %v2616
      %2787 = vmatprep.subr.mxu0 0.0
      %2788 = vmatpush1.msra.mxu0 %v2617
      %2789 = vmatprep.subr.mxu0 0.0
      %2790 = vmatpush1.msra.mxu0 %v2618
      %2791 = vmatprep.subr.mxu0 0.0
      %2792 = vmatpush1.msra.mxu0 %v2619
      %2793 = vmatprep.subr.mxu0 0.0
      %2794 = vmatpush1.msra.mxu0 %v2620
      %2795 = vmatprep.subr.mxu0 0.0
      %2796 = vmatpush1.msra.mxu0 %v2621
      %2797 = vmatprep.subr.mxu0 0.0
      %2798 = vmatpush1.msra.mxu0 %v2622
      %2799 = vmatprep.subr.mxu0 0.0
      %2800 = vmatpush1.msra.mxu0 0.0
      %2801 = vmatprep.subr.mxu0 0.0
      %2802 = vmatpush1.msra.mxu0 0.0
      %2803 = vmatprep.subr.mxu0 0.0
      %2804 = vmatpush1.msra.mxu0 0.0
      %2805 = vmatprep.subr.mxu0 0.0
      %2806 = vmatpush1.msra.mxu0 0.0
      %2807 = vmatprep.subr.mxu0 0.0
      %2808 = vmatpush1.msra.mxu0 0.0
      %2809 = vmatprep.subr.mxu0 0.0
      %2810 = vmatpush1.msra.mxu0 0.0
      %2811 = vmatprep.subr.mxu0 0.0
      %2812 = vmatpush1.msra.mxu0 0.0
      %2813 = vmatprep.subr.mxu0 0.0
      %2814 = vmatpush1.msra.mxu0 0.0
      %2815 = vmatprep.subr.mxu0 0.0
      %2816 = vmatpush1.msra.mxu0 0.0
      %2817 = vmatprep.subr.mxu0 0.0
      %2818 = vmatpush1.msra.mxu0 0.0
      %2819 = vmatprep.subr.mxu0 0.0
      %2820 = vmatpush1.msra.mxu0 0.0
      %2821 = vmatprep.subr.mxu0 0.0
      %2822 = vmatpush1.msra.mxu0 0.0
      %2823 = vmatprep.subr.mxu0 0.0
      %2824 = vmatpush1.msra.mxu0 0.0
      %2825 = vmatprep.subr.mxu0 0.0
      %2826 = vmatpush1.msra.mxu0 0.0
      %2827 = vmatprep.subr.mxu0 0.0
      %2828 = vmatpush1.msra.mxu0 0.0
      %2829 = vmatprep.subr.mxu0 0.0
      %2830 = vmatpush1.msra.mxu0 0.0
      %2831 = vmatprep.mubr.f32.mxu0 0.0
      %2832 = vmatmul.mubr.f32.gmra.mrb[0].mxu0 %v1014
      %v2833 = vpop.f32.mrb[0].mxu0
      %v2834 = vadd.f32 0.0, %v2833
      %v2835 = vpop.f32.mrb[0].mxu0
      %2836 = vdwg.mxu0
      %v2838 = vsel %vm666, %v2834, 0
      %2840 = vmatprep.subr.mxu0 0.0
      %2841 = vmatpush1.msra.mxu0 %v2693
      %2842 = vmatprep.subr.mxu0 0.0
      %2843 = vmatpush1.msra.mxu0 0.0
      %2844 = vmatprep.subr.mxu0 0.0
      %2845 = vmatpush1.msra.mxu0 0.0
      %2846 = vmatprep.subr.mxu0 0.0
      %2847 = vmatpush1.msra.mxu0 0.0
      %2848 = vmatprep.subr.mxu0 0.0
      %2849 = vmatpush1.msra.mxu0 0.0
      %2850 = vmatprep.subr.mxu0 0.0
      %2851 = vmatpush1.msra.mxu0 0.0
      %2852 = vmatprep.subr.mxu0 0.0
      %2853 = vmatpush1.msra.mxu0 0.0
      %2854 = vmatprep.subr.mxu0 0.0
      %2855 = vmatpush1.msra.mxu0 0.0
      %2856 = vmatprep.subr.mxu0 0.0
      %2857 = vmatpush1.msra.mxu0 0.0
      %2858 = vmatprep.subr.mxu0 0.0
      %2859 = vmatpush1.msra.mxu0 0.0
      %2860 = vmatprep.subr.mxu0 0.0
      %2861 = vmatpush1.msra.mxu0 0.0
      %2862 = vmatprep.subr.mxu0 0.0
      %2863 = vmatpush1.msra.mxu0 0.0
      %2864 = vmatprep.subr.mxu0 0.0
      %2865 = vmatpush1.msra.mxu0 0.0
      %2866 = vmatprep.subr.mxu0 0.0
      %2867 = vmatpush1.msra.mxu0 0.0
      %2868 = vmatprep.subr.mxu0 0.0
      %2869 = vmatpush1.msra.mxu0 0.0
      %2870 = vmatprep.subr.mxu0 0.0
      %2871 = vmatpush1.msra.mxu0 0.0
      %2872 = vmatprep.subr.mxu0 0.0
      %2873 = vmatpush1.msra.mxu0 0.0
      %2874 = vmatprep.subr.mxu0 0.0
      %2875 = vmatpush1.msra.mxu0 0.0
      %2876 = vmatprep.subr.mxu0 0.0
      %2877 = vmatpush1.msra.mxu0 0.0
      %2878 = vmatprep.subr.mxu0 0.0
      %2879 = vmatpush1.msra.mxu0 0.0
      %2880 = vmatprep.subr.mxu0 0.0
      %2881 = vmatpush1.msra.mxu0 0.0
      %2882 = vmatprep.subr.mxu0 0.0
      %2883 = vmatpush1.msra.mxu0 0.0
      %2884 = vmatprep.subr.mxu0 0.0
      %2885 = vmatpush1.msra.mxu0 0.0
      %2886 = vmatprep.subr.mxu0 0.0
      %2887 = vmatpush1.msra.mxu0 0.0
      %2888 = vmatprep.subr.mxu0 0.0
      %2889 = vmatpush1.msra.mxu0 0.0
      %2890 = vmatprep.subr.mxu0 0.0
      %2891 = vmatpush1.msra.mxu0 0.0
      %2892 = vmatprep.subr.mxu0 0.0
      %2893 = vmatpush1.msra.mxu0 0.0
      %2894 = vmatprep.subr.mxu0 0.0
      %2895 = vmatpush1.msra.mxu0 0.0
      %2896 = vmatprep.subr.mxu0 0.0
      %2897 = vmatpush1.msra.mxu0 0.0
      %2898 = vmatprep.subr.mxu0 0.0
      %2899 = vmatpush1.msra.mxu0 0.0
      %2900 = vmatprep.subr.mxu0 0.0
      %2901 = vmatpush1.msra.mxu0 0.0
      %2902 = vmatprep.subr.mxu0 0.0
      %2903 = vmatpush1.msra.mxu0 0.0
      %2904 = vmatprep.mubr.f32.mxu0 0.0
      %2905 = vmatmul.mubr.f32.gmra.mrb[0].mxu0 %v2838
      %v2906 = vpop.f32.mrb[0].mxu0
      %v2907 = vadd.f32 0.0, %v2906
      %v2908 = vpop.f32.mrb[0].mxu0
      %2909 = vdwg.mxu0
      %v2910 = vmul.f32 %v2764, %v2764
      %v2911 = vsub.f32 %v2907, %v2910
      %v2912 = vadd.f32 %v2911, 1e-06
      %v2913 = vrsqrt.pop %v2912
      %v2914 = vld [vmem:[%s7] sm:$0x1]
      %v2915 = vmul.f32 %v2913, %v2914
      %v2916 = vld [vmem:[%s8] sm:$0x1]
      %v2917 = vmul.f32 %v2764, %v2915
      %v2918 = vsub.f32 %v2916, %v2917
      loop: start=0, step=1, limit=4
      $region102: #{resnet_block_2d.1} parent=79 // loop_pre_header
        _
      $region103: #{resnet_block_2d.1} parent=79 // loop_header
        %s2920 = sphi 0, %s2924
        %p2921 = scmp.ge.s32.totalorder %s2920, 4
      $region104: #{resnet_block_2d.1} parent=79 // loop_header_branch
        %2923 = sbr.rel (%p2921) target = $region108
      $region105: #{resnet_block_2d.1} parent=79 // loop_body
        %s2925 = smul.u32 %s2920, 4
        %s2926 = sadd.s32 %s2925, 1
        %s2927 = smul.u32 %s2926, 24
        %s2928 = sadd.s32 %s2927, 8
        %s2929 = scalar_lea.vmem [#allocation3], %s2928
        %v2930 = vld [vmem:[%s2929] sm:$0xff]
        %v2931 = vld [vmem:[%s2929 + $0x8] sm:$0xff]
        %v2932 = vlaneseq
        %v2933 = vshrl.u32 %v2932, 7
        %v2934 = vsub.s32 0, %v2933
        %v2935 = vrot.slane %v2915, %v2934
        %v2936 = vmul.f32 %v2930, %v2935
        %v2937 = vmul.f32 %v2931, %v2935
        %v2939 = vlaneseq
        %v2940 = vshrl.u32 %v2939, 7
        %v2941 = vsub.s32 0, %v2940
        %v2942 = vrot.slane %v2918, %v2941
        %v2944 = vadd.f32 %v2936, %v2942
        %v2945 = vadd.f32 %v2937, %v2942
        %v2946 = vmul.f32 %v2944, 0.5
        %v2947 = vmul.f32 %v2945, 0.5
        %v2948 = vtanh.pop %v2946
        %v2949 = vtanh.pop %v2947
        %v2950 = vadd.f32 %v2948, 1.0
        %v2951 = vadd.f32 %v2949, 1.0
        %v2952 = vmul.f32 %v2946, %v2950
        %v2953 = vmul.f32 %v2947, %v2951
        %2954 = vst [vmem:[%s2929] sm:$0xff] %v2952
        %2955 = vst [vmem:[%s2929 + $0x8] sm:$0xff] %v2953
        %s2956 = sadd.s32 %s2925, 2
        %s2957 = smul.u32 %s2956, 24
        %s2958 = sadd.s32 %s2957, 8
        %s2959 = scalar_lea.vmem [#allocation3], %s2958
        %v2960 = vld [vmem:[%s2959] sm:$0xff]
        %v2961 = vld [vmem:[%s2959 + $0x8] sm:$0xff]
        %v2962 = vmul.f32 %v2960, %v2935
        %v2963 = vmul.f32 %v2961, %v2935
        %v2964 = vadd.f32 %v2962, %v2942
        %v2965 = vadd.f32 %v2963, %v2942
        %v2966 = vmul.f32 %v2964, 0.5
        %v2967 = vmul.f32 %v2965, 0.5
        %v2968 = vtanh.pop %v2966
        %v2969 = vtanh.pop %v2967
        %v2970 = vadd.f32 %v2968, 1.0
        %v2971 = vadd.f32 %v2969, 1.0
        %v2972 = vmul.f32 %v2966, %v2970
        %v2973 = vmul.f32 %v2967, %v2971
        %2974 = vst [vmem:[%s2959] sm:$0xff] %v2972
        %2975 = vst [vmem:[%s2959 + $0x8] sm:$0xff] %v2973
        %s2976 = sadd.s32 %s2925, 3
        %s2977 = smul.u32 %s2976, 24
        %s2978 = sadd.s32 %s2977, 8
        %s2979 = scalar_lea.vmem [#allocation3], %s2978
        %v2980 = vld [vmem:[%s2979] sm:$0xff]
        %v2981 = vld [vmem:[%s2979 + $0x8] sm:$0xff]
        %v2982 = vmul.f32 %v2980, %v2935
        %v2983 = vmul.f32 %v2981, %v2935
        %v2984 = vadd.f32 %v2982, %v2942
        %v2985 = vadd.f32 %v2983, %v2942
        %v2986 = vmul.f32 %v2984, 0.5
        %v2987 = vmul.f32 %v2985, 0.5
        %v2988 = vtanh.pop %v2986
        %v2989 = vtanh.pop %v2987
        %v2990 = vadd.f32 %v2988, 1.0
        %v2991 = vadd.f32 %v2989, 1.0
        %v2992 = vmul.f32 %v2986, %v2990
        %v2993 = vmul.f32 %v2987, %v2991
        %2994 = vst [vmem:[%s2979] sm:$0xff] %v2992
        %2995 = vst [vmem:[%s2979 + $0x8] sm:$0xff] %v2993
        %s2996 = sadd.s32 %s2925, 4
        %s2997 = smul.u32 %s2996, 24
        %s2998 = sadd.s32 %s2997, 8
        %s2999 = scalar_lea.vmem [#allocation3], %s2998
        %v3000 = vld [vmem:[%s2999] sm:$0xff]
        %v3001 = vld [vmem:[%s2999 + $0x8] sm:$0xff]
        %v3002 = vmul.f32 %v3000, %v2935
        %v3003 = vmul.f32 %v3001, %v2935
        %v3004 = vadd.f32 %v3002, %v2942
        %v3005 = vadd.f32 %v3003, %v2942
        %v3006 = vmul.f32 %v3004, 0.5
        %v3007 = vmul.f32 %v3005, 0.5
        %v3008 = vtanh.pop %v3006
        %v3009 = vtanh.pop %v3007
        %v3010 = vadd.f32 %v3008, 1.0
        %v3011 = vadd.f32 %v3009, 1.0
        %v3012 = vmul.f32 %v3006, %v3010
        %v3013 = vmul.f32 %v3007, %v3011
        %3014 = vst [vmem:[%s2999] sm:$0xff] %v3012
        %3015 = vst [vmem:[%s2999 + $0x8] sm:$0xff] %v3013
      $region106: #{resnet_block_2d.1} parent=79 // loop_footer
        %s2924 = sadd.s32 1, %s2920
      $region107: #{resnet_block_2d.1} parent=79 // loop_footer_branch
        %2919 = sbr.rel target = $region103
      $region108: #{resnet_block_2d.1} parent=79 // loop_exit
        _
      %v3016 = vld [vmem:[%s12] sm:$0x1]
      %v3017 = vld [vmem:[#allocation4] sm:$0x1]
      loop: start=0, step=1, limit=4
      $region109: #{resnet_block_2d.1} parent=79 // loop_pre_header
        _
      $region110: #{resnet_block_2d.1} parent=79 // loop_header
        %s3019 = sphi 0, %s3023
        %p3020 = scmp.ge.s32.totalorder %s3019, 4
      $region111: #{resnet_block_2d.1} parent=79 // loop_header_branch
        %3022 = sbr.rel (%p3020) target = $region115
      $region112: #{resnet_block_2d.1} parent=79 // loop_body
        %s3024 = smul.u32 %s3019, 96
        %s3025 = sadd.s32 %s3024, 7
        %s3026 = scalar_lea.vmem [#allocation3], %s3025
        %v3027 = vld [vmem:[%s3026] sm:$0xff]
        %v3028 = vld [vmem:[%s3026 + $0x8] sm:$0xff]
        %v3029 = vld [vmem:[%s3026 + $0x10] sm:$0xff]
        %v3030 = vld [vmem:[%s3026 + $0x18] sm:$0xff]
        %v3031 = vld [vmem:[%s3026 + $0x20] sm:$0xff]
        %v3032 = vld [vmem:[%s3026 + $0x28] sm:$0xff]
        %v3033 = vld [vmem:[%s3026 + $0x30] sm:$0xff]
        %v3034 = vld [vmem:[%s3026 + $0x38] sm:$0xff]
        %v3035 = vld [vmem:[%s3026 + $0x40] sm:$0xff]
        %v3036 = vld [vmem:[%s3026 + $0x48] sm:$0xff]
        %v3037 = vld [vmem:[%s3026 + $0x50] sm:$0xff]
        %v3038 = vld [vmem:[%s3026 + $0x58] sm:$0xff]
        %v3039 = vpack.c.bf16 %v3028, %v3027
        %v3040 = vpack.c.bf16 %v3030, %v3029
        %v3041 = vpack.c.bf16 %v3032, %v3031
        %v3042 = vpack.c.bf16 %v3034, %v3033
        %v3043 = vpack.c.bf16 %v3036, %v3035
        %v3044 = vpack.c.bf16 %v3038, %v3037
        %v3045 = vld [vmem:[%s11] sm:$0xf]
        %v3046 = vld [vmem:[%s11 + $0x4] sm:$0xf]
        %v3047 = vld [vmem:[%s11 + $0x8] sm:$0xf]
        %v3048 = vld [vmem:[%s11 + $0xc] sm:$0xf]
        %v3049 = vld [vmem:[%s11 + $0x10] sm:$0xf]
        %v3050 = vld [vmem:[%s11 + $0x14] sm:$0xf]
        %v3051 = vld [vmem:[%s11 + $0x18] sm:$0xf]
        %v3052 = vld [vmem:[%s11 + $0x1c] sm:$0xf]
        %v3053 = vld [vmem:[%s11 + $0x20] sm:$0xf]
        %v3054 = vld [vmem:[%s11 + $0x24] sm:$0xf]
        %v3055 = vld [vmem:[%s11 + $0x28] sm:$0xf]
        %v3056 = vld [vmem:[%s11 + $0x2c] sm:$0xf]
        %v3057 = vld [vmem:[%s11 + $0x30] sm:$0xf]
        %v3058 = vld [vmem:[%s11 + $0x34] sm:$0xf]
        %v3059 = vld [vmem:[%s11 + $0x38] sm:$0xf]
        %v3060 = vld [vmem:[%s11 + $0x3c] sm:$0xf]
        %s3061 = sadd.s32 %s3024, 8
        %s3062 = scalar_lea.vmem [#allocation3], %s3061
        %v3063 = vld [vmem:[%s3062] sm:$0xff]
        %v3064 = vld [vmem:[%s3062 + $0x8] sm:$0xff]
        %v3065 = vld [vmem:[%s3062 + $0x10] sm:$0xff]
        %v3066 = vld [vmem:[%s3062 + $0x18] sm:$0xff]
        %v3067 = vld [vmem:[%s3062 + $0x20] sm:$0xff]
        %v3068 = vld [vmem:[%s3062 + $0x28] sm:$0xff]
        %v3069 = vld [vmem:[%s3062 + $0x30] sm:$0xff]
        %v3070 = vld [vmem:[%s3062 + $0x38] sm:$0xff]
        %v3071 = vld [vmem:[%s3062 + $0x40] sm:$0xff]
        %v3072 = vld [vmem:[%s3062 + $0x48] sm:$0xff]
        %v3073 = vld [vmem:[%s3062 + $0x50] sm:$0xff]
        %v3074 = vld [vmem:[%s3062 + $0x58] sm:$0xff]
        %v3075 = vpack.c.bf16 %v3064, %v3063
        %v3076 = vpack.c.bf16 %v3066, %v3065
        %v3077 = vpack.c.bf16 %v3068, %v3067
        %v3078 = vpack.c.bf16 %v3070, %v3069
        %v3079 = vpack.c.bf16 %v3072, %v3071
        %v3080 = vpack.c.bf16 %v3074, %v3073
        %s3081 = scalar_lea.vmem %s11, 64
        %v3082 = vld [vmem:[%s3081] sm:$0xf]
        %v3083 = vld [vmem:[%s3081 + $0x4] sm:$0xf]
        %v3084 = vld [vmem:[%s3081 + $0x8] sm:$0xf]
        %v3085 = vld [vmem:[%s3081 + $0xc] sm:$0xf]
        %v3086 = vld [vmem:[%s3081 + $0x10] sm:$0xf]
        %v3087 = vld [vmem:[%s3081 + $0x14] sm:$0xf]
        %v3088 = vld [vmem:[%s3081 + $0x18] sm:$0xf]
        %v3089 = vld [vmem:[%s3081 + $0x1c] sm:$0xf]
        %v3090 = vld [vmem:[%s3081 + $0x20] sm:$0xf]
        %v3091 = vld [vmem:[%s3081 + $0x24] sm:$0xf]
        %v3092 = vld [vmem:[%s3081 + $0x28] sm:$0xf]
        %v3093 = vld [vmem:[%s3081 + $0x2c] sm:$0xf]
        %v3094 = vld [vmem:[%s3081 + $0x30] sm:$0xf]
        %v3095 = vld [vmem:[%s3081 + $0x34] sm:$0xf]
        %v3096 = vld [vmem:[%s3081 + $0x38] sm:$0xf]
        %v3097 = vld [vmem:[%s3081 + $0x3c] sm:$0xf]
        %v3114 = vunpack.c.l.b16 %v3082
        %v3115 = vunpack.c.l.b16 %v3083
        %v3116 = vunpack.c.l.b16 %v3084
        %v3117 = vunpack.c.l.b16 %v3085
        %v3118 = vunpack.c.l.b16 %v3086
        %v3119 = vunpack.c.l.b16 %v3087
        %v3120 = vunpack.c.l.b16 %v3088
        %v3121 = vunpack.c.l.b16 %v3089
        %v3122 = vunpack.c.l.b16 %v3090
        %v3123 = vunpack.c.l.b16 %v3091
        %v3124 = vunpack.c.l.b16 %v3092
        %v3125 = vunpack.c.l.b16 %v3093
        %v3126 = vunpack.c.l.b16 %v3094
        %v3127 = vunpack.c.l.b16 %v3095
        %v3128 = vunpack.c.l.b16 %v3096
        %v3129 = vunpack.c.l.b16 %v3097
        %v3130 = vpack.c.b16 %v3115, %v3114
        %v3131 = vpack.c.b16 %v3117, %v3116
        %v3132 = vpack.c.b16 %v3119, %v3118
        %v3133 = vpack.c.b16 %v3121, %v3120
        %v3134 = vpack.c.b16 %v3123, %v3122
        %v3135 = vpack.c.b16 %v3125, %v3124
        %v3136 = vpack.c.b16 %v3127, %v3126
        %v3137 = vpack.c.b16 %v3129, %v3128
        %3146 = vmatprep.subr.bf16.mxu0 0
        %3147 = vmatpush1.bf16.msra.mxu0 %v3130
        %3148 = vmatprep.subr.bf16.mxu0 0
        %3149 = vmatpush1.bf16.msra.mxu0 %v3131
        %3150 = vmatprep.subr.bf16.mxu0 0
        %3151 = vmatpush1.bf16.msra.mxu0 %v3132
        %3152 = vmatprep.subr.bf16.mxu0 0
        %3153 = vmatpush1.bf16.msra.mxu0 %v3133
        %3154 = vmatprep.subr.bf16.mxu0 0
        %3155 = vmatpush1.bf16.msra.mxu0 %v3134
        %3156 = vmatprep.subr.bf16.mxu0 0
        %3157 = vmatpush1.bf16.msra.mxu0 %v3135
        %3158 = vmatprep.subr.bf16.mxu0 0
        %3159 = vmatpush1.bf16.msra.mxu0 %v3136
        %3160 = vmatprep.subr.bf16.mxu0 0
        %3161 = vmatpush1.bf16.msra.mxu0 %v3137
        %3162 = vmatprep.subr.bf16.mxu0 0
        %3163 = vmatpush1.bf16.msra.mxu0 0
        %3164 = vmatprep.subr.bf16.mxu0 0
        %3165 = vmatpush1.bf16.msra.mxu0 0
        %3166 = vmatprep.subr.bf16.mxu0 0
        %3167 = vmatpush1.bf16.msra.mxu0 0
        %3168 = vmatprep.subr.bf16.mxu0 0
        %3169 = vmatpush1.bf16.msra.mxu0 0
        %3170 = vmatprep.subr.bf16.mxu0 0
        %3171 = vmatpush1.bf16.msra.mxu0 0
        %3172 = vmatprep.subr.bf16.mxu0 0
        %3173 = vmatpush1.bf16.msra.mxu0 0
        %3174 = vmatprep.subr.bf16.mxu0 0
        %3175 = vmatpush1.bf16.msra.mxu0 0
        %3176 = vmatprep.subr.bf16.mxu0 0
        %3177 = vmatpush1.bf16.msra.mxu0 0
        %3178 = vmatprep.mubr.bf16.mxu0 0
        %3179 = vmatmul.mubr.bf16.gmra.mrb[0].mxu0 %v3075
        %v3180 = vpop.f32.mrb[0].mxu0
        %v3181 = vadd.f32 0.0, %v3180
        %v3182 = vpop.f32.mrb[0].mxu0
        %v3183 = vpop.f32.mrb[0].mxu0
        %v3184 = vadd.f32 0.0, %v3183
        %v3185 = vpop.f32.mrb[0].mxu0
        %3186 = vmatprep.mubr.bf16.mxu0 0
        %3187 = vmatmul.mubr.bf16.gmra.mrb[0].mxu0 %v3076
        %v3188 = vpop.f32.mrb[0].mxu0
        %v3189 = vpop.f32.mrb[0].mxu0
        %v3190 = vpop.f32.mrb[0].mxu0
        %v3191 = vadd.f32 0.0, %v3190
        %v3192 = vpop.f32.mrb[0].mxu0
        %3193 = vmatprep.mubr.bf16.mxu0 0
        %3194 = vmatmul.mubr.bf16.gmra.mrb[0].mxu0 %v3077
        %v3195 = vpop.f32.mrb[0].mxu0
        %v3196 = vadd.f32 0.0, %v3195
        %v3197 = vpop.f32.mrb[0].mxu0
        %v3198 = vpop.f32.mrb[0].mxu0
        %v3199 = vpop.f32.mrb[0].mxu0
        %3200 = vmatprep.mubr.bf16.mxu0 0
        %3201 = vmatmul.mubr.bf16.gmra.mrb[0].mxu0 %v3078
        %v3202 = vpop.f32.mrb[0].mxu0
        %v3203 = vadd.f32 0.0, %v3202
        %v3204 = vpop.f32.mrb[0].mxu0
        %v3205 = vpop.f32.mrb[0].mxu0
        %v3206 = vadd.f32 0.0, %v3205
        %v3207 = vpop.f32.mrb[0].mxu0
        %3208 = vmatprep.mubr.bf16.mxu0 0
        %3209 = vmatmul.mubr.bf16.gmra.mrb[0].mxu0 %v3079
        %v3210 = vpop.f32.mrb[0].mxu0
        %v3211 = vpop.f32.mrb[0].mxu0
        %v3212 = vpop.f32.mrb[0].mxu0
        %v3213 = vadd.f32 0.0, %v3212
        %v3214 = vpop.f32.mrb[0].mxu0
        %3215 = vmatprep.mubr.bf16.mxu0 0
        %3216 = vmatmul.mubr.bf16.gmra.mrb[0].mxu0 %v3080
        %v3217 = vpop.f32.mrb[0].mxu0
        %v3218 = vadd.f32 0.0, %v3217
        %v3219 = vpop.f32.mrb[0].mxu0
        %v3220 = vpop.f32.mrb[0].mxu0
        %v3221 = vpop.f32.mrb[0].mxu0
        %3222 = vdwg.mxu0
        %v3239 = vunpack.c.l.b16 %v3045
        %v3240 = vunpack.c.l.b16 %v3046
        %v3241 = vunpack.c.l.b16 %v3047
        %v3242 = vunpack.c.l.b16 %v3048
        %v3243 = vunpack.c.l.b16 %v3049
        %v3244 = vunpack.c.l.b16 %v3050
        %v3245 = vunpack.c.l.b16 %v3051
        %v3246 = vunpack.c.l.b16 %v3052
        %v3247 = vunpack.c.l.b16 %v3053
        %v3248 = vunpack.c.l.b16 %v3054
        %v3249 = vunpack.c.l.b16 %v3055
        %v3250 = vunpack.c.l.b16 %v3056
        %v3251 = vunpack.c.l.b16 %v3057
        %v3252 = vunpack.c.l.b16 %v3058
        %v3253 = vunpack.c.l.b16 %v3059
        %v3254 = vunpack.c.l.b16 %v3060
        %v3255 = vpack.c.b16 %v3240, %v3239
        %v3256 = vpack.c.b16 %v3242, %v3241
        %v3257 = vpack.c.b16 %v3244, %v3243
        %v3258 = vpack.c.b16 %v3246, %v3245
        %v3259 = vpack.c.b16 %v3248, %v3247
        %v3260 = vpack.c.b16 %v3250, %v3249
        %v3261 = vpack.c.b16 %v3252, %v3251
        %v3262 = vpack.c.b16 %v3254, %v3253
        %3271 = vmatprep.subr.bf16.mxu0 0
        %3272 = vmatpush1.bf16.msra.mxu0 %v3255
        %3273 = vmatprep.subr.bf16.mxu0 0
        %3274 = vmatpush1.bf16.msra.mxu0 %v3256
        %3275 = vmatprep.subr.bf16.mxu0 0
        %3276 = vmatpush1.bf16.msra.mxu0 %v3257
        %3277 = vmatprep.subr.bf16.mxu0 0
        %3278 = vmatpush1.bf16.msra.mxu0 %v3258
        %3279 = vmatprep.subr.bf16.mxu0 0
        %3280 = vmatpush1.bf16.msra.mxu0 %v3259
        %3281 = vmatprep.subr.bf16.mxu0 0
        %3282 = vmatpush1.bf16.msra.mxu0 %v3260
        %3283 = vmatprep.subr.bf16.mxu0 0
        %3284 = vmatpush1.bf16.msra.mxu0 %v3261
        %3285 = vmatprep.subr.bf16.mxu0 0
        %3286 = vmatpush1.bf16.msra.mxu0 %v3262
        %3287 = vmatprep.subr.bf16.mxu0 0
        %3288 = vmatpush1.bf16.msra.mxu0 0
        %3289 = vmatprep.subr.bf16.mxu0 0
        %3290 = vmatpush1.bf16.msra.mxu0 0
        %3291 = vmatprep.subr.bf16.mxu0 0
        %3292 = vmatpush1.bf16.msra.mxu0 0
        %3293 = vmatprep.subr.bf16.mxu0 0
        %3294 = vmatpush1.bf16.msra.mxu0 0
        %3295 = vmatprep.subr.bf16.mxu0 0
        %3296 = vmatpush1.bf16.msra.mxu0 0
        %3297 = vmatprep.subr.bf16.mxu0 0
        %3298 = vmatpush1.bf16.msra.mxu0 0
        %3299 = vmatprep.subr.bf16.mxu0 0
        %3300 = vmatpush1.bf16.msra.mxu0 0
        %3301 = vmatprep.subr.bf16.mxu0 0
        %3302 = vmatpush1.bf16.msra.mxu0 0
        %3303 = vmatprep.mubr.bf16.mxu0 0
        %3304 = vmatmul.mubr.bf16.gmra.mrb[0].mxu0 %v3039
        %v3305 = vpop.f32.mrb[0].mxu0
        %v3306 = vadd.f32 %v3181, %v3305
        %v3307 = vpop.f32.mrb[0].mxu0
        %v3308 = vpop.f32.mrb[0].mxu0
        %v3309 = vadd.f32 %v3184, %v3308
        %v3310 = vpop.f32.mrb[0].mxu0
        %3311 = vmatprep.mubr.bf16.mxu0 0
        %3312 = vmatmul.mubr.bf16.gmra.mrb[0].mxu0 %v3040
        %v3313 = vpop.f32.mrb[0].mxu0
        %v3314 = vpop.f32.mrb[0].mxu0
        %v3315 = vpop.f32.mrb[0].mxu0
        %v3316 = vadd.f32 %v3191, %v3315
        %v3317 = vpop.f32.mrb[0].mxu0
        %3318 = vmatprep.mubr.bf16.mxu0 0
        %3319 = vmatmul.mubr.bf16.gmra.mrb[0].mxu0 %v3041
        %v3320 = vpop.f32.mrb[0].mxu0
        %v3321 = vadd.f32 %v3196, %v3320
        %v3322 = vpop.f32.mrb[0].mxu0
        %v3323 = vpop.f32.mrb[0].mxu0
        %v3324 = vpop.f32.mrb[0].mxu0
        %3325 = vmatprep.mubr.bf16.mxu0 0
        %3326 = vmatmul.mubr.bf16.gmra.mrb[0].mxu0 %v3042
        %v3327 = vpop.f32.mrb[0].mxu0
        %v3328 = vadd.f32 %v3203, %v3327
        %v3329 = vpop.f32.mrb[0].mxu0
        %v3330 = vpop.f32.mrb[0].mxu0
        %v3331 = vadd.f32 %v3206, %v3330
        %v3332 = vpop.f32.mrb[0].mxu0
        %3333 = vmatprep.mubr.bf16.mxu0 0
        %3334 = vmatmul.mubr.bf16.gmra.mrb[0].mxu0 %v3043
        %v3335 = vpop.f32.mrb[0].mxu0
        %v3336 = vpop.f32.mrb[0].mxu0
        %v3337 = vpop.f32.mrb[0].mxu0
        %v3338 = vadd.f32 %v3213, %v3337
        %v3339 = vpop.f32.mrb[0].mxu0
        %3340 = vmatprep.mubr.bf16.mxu0 0
        %3341 = vmatmul.mubr.bf16.gmra.mrb[0].mxu0 %v3044
        %v3342 = vpop.f32.mrb[0].mxu0
        %v3343 = vadd.f32 %v3218, %v3342
        %v3344 = vpop.f32.mrb[0].mxu0
        %v3345 = vpop.f32.mrb[0].mxu0
        %v3346 = vpop.f32.mrb[0].mxu0
        %3347 = vdwg.mxu0
        %s3348 = sadd.s32 %s3024, 9
        %s3349 = scalar_lea.vmem [#allocation3], %s3348
        %v3350 = vld [vmem:[%s3349] sm:$0xff]
        %v3351 = vld [vmem:[%s3349 + $0x8] sm:$0xff]
        %v3352 = vld [vmem:[%s3349 + $0x10] sm:$0xff]
        %v3353 = vld [vmem:[%s3349 + $0x18] sm:$0xff]
        %v3354 = vld [vmem:[%s3349 + $0x20] sm:$0xff]
        %v3355 = vld [vmem:[%s3349 + $0x28] sm:$0xff]
        %v3356 = vld [vmem:[%s3349 + $0x30] sm:$0xff]
        %v3357 = vld [vmem:[%s3349 + $0x38] sm:$0xff]
        %v3358 = vld [vmem:[%s3349 + $0x40] sm:$0xff]
        %v3359 = vld [vmem:[%s3349 + $0x48] sm:$0xff]
        %v3360 = vld [vmem:[%s3349 + $0x50] sm:$0xff]
        %v3361 = vld [vmem:[%s3349 + $0x58] sm:$0xff]
        %v3362 = vpack.c.bf16 %v3351, %v3350
        %v3363 = vpack.c.bf16 %v3353, %v3352
        %v3364 = vpack.c.bf16 %v3355, %v3354
        %v3365 = vpack.c.bf16 %v3357, %v3356
        %v3366 = vpack.c.bf16 %v3359, %v3358
        %v3367 = vpack.c.bf16 %v3361, %v3360
        %s3368 = scalar_lea.vmem %s11, 128
        %v3369 = vld [vmem:[%s3368] sm:$0xf]
        %v3370 = vld [vmem:[%s3368 + $0x4] sm:$0xf]
        %v3371 = vld [vmem:[%s3368 + $0x8] sm:$0xf]
        %v3372 = vld [vmem:[%s3368 + $0xc] sm:$0xf]
        %v3373 = vld [vmem:[%s3368 + $0x10] sm:$0xf]
        %v3374 = vld [vmem:[%s3368 + $0x14] sm:$0xf]
        %v3375 = vld [vmem:[%s3368 + $0x18] sm:$0xf]
        %v3376 = vld [vmem:[%s3368 + $0x1c] sm:$0xf]
        %v3377 = vld [vmem:[%s3368 + $0x20] sm:$0xf]
        %v3378 = vld [vmem:[%s3368 + $0x24] sm:$0xf]
        %v3379 = vld [vmem:[%s3368 + $0x28] sm:$0xf]
        %v3380 = vld [vmem:[%s3368 + $0x2c] sm:$0xf]
        %v3381 = vld [vmem:[%s3368 + $0x30] sm:$0xf]
        %v3382 = vld [vmem:[%s3368 + $0x34] sm:$0xf]
        %v3383 = vld [vmem:[%s3368 + $0x38] sm:$0xf]
        %v3384 = vld [vmem:[%s3368 + $0x3c] sm:$0xf]
        %v3401 = vunpack.c.l.b16 %v3369
        %v3402 = vunpack.c.l.b16 %v3370
        %v3403 = vunpack.c.l.b16 %v3371
        %v3404 = vunpack.c.l.b16 %v3372
        %v3405 = vunpack.c.l.b16 %v3373
        %v3406 = vunpack.c.l.b16 %v3374
        %v3407 = vunpack.c.l.b16 %v3375
        %v3408 = vunpack.c.l.b16 %v3376
        %v3409 = vunpack.c.l.b16 %v3377
        %v3410 = vunpack.c.l.b16 %v3378
        %v3411 = vunpack.c.l.b16 %v3379
        %v3412 = vunpack.c.l.b16 %v3380
        %v3413 = vunpack.c.l.b16 %v3381
        %v3414 = vunpack.c.l.b16 %v3382
        %v3415 = vunpack.c.l.b16 %v3383
        %v3416 = vunpack.c.l.b16 %v3384
        %v3417 = vpack.c.b16 %v3402, %v3401
        %v3418 = vpack.c.b16 %v3404, %v3403
        %v3419 = vpack.c.b16 %v3406, %v3405
        %v3420 = vpack.c.b16 %v3408, %v3407
        %v3421 = vpack.c.b16 %v3410, %v3409
        %v3422 = vpack.c.b16 %v3412, %v3411
        %v3423 = vpack.c.b16 %v3414, %v3413
        %v3424 = vpack.c.b16 %v3416, %v3415
        %3433 = vmatprep.subr.bf16.mxu0 0
        %3434 = vmatpush1.bf16.msra.mxu0 %v3417
        %3435 = vmatprep.subr.bf16.mxu0 0
        %3436 = vmatpush1.bf16.msra.mxu0 %v3418
        %3437 = vmatprep.subr.bf16.mxu0 0
        %3438 = vmatpush1.bf16.msra.mxu0 %v3419
        %3439 = vmatprep.subr.bf16.mxu0 0
        %3440 = vmatpush1.bf16.msra.mxu0 %v3420
        %3441 = vmatprep.subr.bf16.mxu0 0
        %3442 = vmatpush1.bf16.msra.mxu0 %v3421
        %3443 = vmatprep.subr.bf16.mxu0 0
        %3444 = vmatpush1.bf16.msra.mxu0 %v3422
        %3445 = vmatprep.subr.bf16.mxu0 0
        %3446 = vmatpush1.bf16.msra.mxu0 %v3423
        %3447 = vmatprep.subr.bf16.mxu0 0
        %3448 = vmatpush1.bf16.msra.mxu0 %v3424
        %3449 = vmatprep.subr.bf16.mxu0 0
        %3450 = vmatpush1.bf16.msra.mxu0 0
        %3451 = vmatprep.subr.bf16.mxu0 0
        %3452 = vmatpush1.bf16.msra.mxu0 0
        %3453 = vmatprep.subr.bf16.mxu0 0
        %3454 = vmatpush1.bf16.msra.mxu0 0
        %3455 = vmatprep.subr.bf16.mxu0 0
        %3456 = vmatpush1.bf16.msra.mxu0 0
        %3457 = vmatprep.subr.bf16.mxu0 0
        %3458 = vmatpush1.bf16.msra.mxu0 0
        %3459 = vmatprep.subr.bf16.mxu0 0
        %3460 = vmatpush1.bf16.msra.mxu0 0
        %3461 = vmatprep.subr.bf16.mxu0 0
        %3462 = vmatpush1.bf16.msra.mxu0 0
        %3463 = vmatprep.subr.bf16.mxu0 0
        %3464 = vmatpush1.bf16.msra.mxu0 0
        %3465 = vmatprep.mubr.bf16.mxu0 0
        %3466 = vmatmul.mubr.bf16.gmra.mrb[0].mxu0 %v3362
        %v3467 = vpop.f32.mrb[0].mxu0
        %v3468 = vadd.f32 0.0, %v3467
        %v3469 = vpop.f32.mrb[0].mxu0
        %v3470 = vpop.f32.mrb[0].mxu0
        %v3471 = vadd.f32 0.0, %v3470
        %v3472 = vpop.f32.mrb[0].mxu0
        %3473 = vmatprep.mubr.bf16.mxu0 0
        %3474 = vmatmul.mubr.bf16.gmra.mrb[0].mxu0 %v3363
        %v3475 = vpop.f32.mrb[0].mxu0
        %v3476 = vpop.f32.mrb[0].mxu0
        %v3477 = vpop.f32.mrb[0].mxu0
        %v3478 = vadd.f32 0.0, %v3477
        %v3479 = vpop.f32.mrb[0].mxu0
        %3480 = vmatprep.mubr.bf16.mxu0 0
        %3481 = vmatmul.mubr.bf16.gmra.mrb[0].mxu0 %v3364
        %v3482 = vpop.f32.mrb[0].mxu0
        %v3483 = vadd.f32 0.0, %v3482
        %v3484 = vpop.f32.mrb[0].mxu0
        %v3485 = vpop.f32.mrb[0].mxu0
        %v3486 = vpop.f32.mrb[0].mxu0
        %3487 = vmatprep.mubr.bf16.mxu0 0
        %3488 = vmatmul.mubr.bf16.gmra.mrb[0].mxu0 %v3365
        %v3489 = vpop.f32.mrb[0].mxu0
        %v3490 = vadd.f32 0.0, %v3489
        %v3491 = vpop.f32.mrb[0].mxu0
        %v3492 = vpop.f32.mrb[0].mxu0
        %v3493 = vadd.f32 0.0, %v3492
        %v3494 = vpop.f32.mrb[0].mxu0
        %3495 = vmatprep.mubr.bf16.mxu0 0
        %3496 = vmatmul.mubr.bf16.gmra.mrb[0].mxu0 %v3366
        %v3497 = vpop.f32.mrb[0].mxu0
        %v3498 = vpop.f32.mrb[0].mxu0
        %v3499 = vpop.f32.mrb[0].mxu0
        %v3500 = vadd.f32 0.0, %v3499
        %v3501 = vpop.f32.mrb[0].mxu0
        %3502 = vmatprep.mubr.bf16.mxu0 0
        %3503 = vmatmul.mubr.bf16.gmra.mrb[0].mxu0 %v3367
        %v3504 = vpop.f32.mrb[0].mxu0
        %v3505 = vadd.f32 0.0, %v3504
        %v3506 = vpop.f32.mrb[0].mxu0
        %v3507 = vpop.f32.mrb[0].mxu0
        %v3508 = vpop.f32.mrb[0].mxu0
        %3509 = vdwg.mxu0
        %v3510 = vadd.f32 %v3306, %v3468
        %v3511 = vadd.f32 %v3309, %v3471
        %v3512 = vadd.f32 %v3316, %v3478
        %v3513 = vadd.f32 %v3321, %v3483
        %v3514 = vadd.f32 %v3328, %v3490
        %v3515 = vadd.f32 %v3331, %v3493
        %v3516 = vadd.f32 %v3338, %v3500
        %v3517 = vadd.f32 %v3343, %v3505
        %s3518 = sadd.s32 %s3024, 31
        %s3519 = scalar_lea.vmem [#allocation3], %s3518
        %v3520 = vld [vmem:[%s3519] sm:$0xff]
        %v3521 = vld [vmem:[%s3519 + $0x8] sm:$0xff]
        %v3522 = vld [vmem:[%s3519 + $0x10] sm:$0xff]
        %v3523 = vld [vmem:[%s3519 + $0x18] sm:$0xff]
        %v3524 = vld [vmem:[%s3519 + $0x20] sm:$0xff]
        %v3525 = vld [vmem:[%s3519 + $0x28] sm:$0xff]
        %v3526 = vld [vmem:[%s3519 + $0x30] sm:$0xff]
        %v3527 = vld [vmem:[%s3519 + $0x38] sm:$0xff]
        %v3528 = vld [vmem:[%s3519 + $0x40] sm:$0xff]
        %v3529 = vld [vmem:[%s3519 + $0x48] sm:$0xff]
        %v3530 = vld [vmem:[%s3519 + $0x50] sm:$0xff]
        %v3531 = vld [vmem:[%s3519 + $0x58] sm:$0xff]
        %v3532 = vpack.c.bf16 %v3521, %v3520
        %v3533 = vpack.c.bf16 %v3523, %v3522
        %v3534 = vpack.c.bf16 %v3525, %v3524
        %v3535 = vpack.c.bf16 %v3527, %v3526
        %v3536 = vpack.c.bf16 %v3529, %v3528
        %v3537 = vpack.c.bf16 %v3531, %v3530
        %s3538 = scalar_lea.vmem %s11, 192
        %v3539 = vld [vmem:[%s3538] sm:$0xf]
        %v3540 = vld [vmem:[%s3538 + $0x4] sm:$0xf]
        %v3541 = vld [vmem:[%s3538 + $0x8] sm:$0xf]
        %v3542 = vld [vmem:[%s3538 + $0xc] sm:$0xf]
        %v3543 = vld [vmem:[%s3538 + $0x10] sm:$0xf]
        %v3544 = vld [vmem:[%s3538 + $0x14] sm:$0xf]
        %v3545 = vld [vmem:[%s3538 + $0x18] sm:$0xf]
        %v3546 = vld [vmem:[%s3538 + $0x1c] sm:$0xf]
        %v3547 = vld [vmem:[%s3538 + $0x20] sm:$0xf]
        %v3548 = vld [vmem:[%s3538 + $0x24] sm:$0xf]
        %v3549 = vld [vmem:[%s3538 + $0x28] sm:$0xf]
        %v3550 = vld [vmem:[%s3538 + $0x2c] sm:$0xf]
        %v3551 = vld [vmem:[%s3538 + $0x30] sm:$0xf]
        %v3552 = vld [vmem:[%s3538 + $0x34] sm:$0xf]
        %v3553 = vld [vmem:[%s3538 + $0x38] sm:$0xf]
        %v3554 = vld [vmem:[%s3538 + $0x3c] sm:$0xf]
        %v3571 = vunpack.c.l.b16 %v3539
        %v3572 = vunpack.c.l.b16 %v3540
        %v3573 = vunpack.c.l.b16 %v3541
        %v3574 = vunpack.c.l.b16 %v3542
        %v3575 = vunpack.c.l.b16 %v3543
        %v3576 = vunpack.c.l.b16 %v3544
        %v3577 = vunpack.c.l.b16 %v3545
        %v3578 = vunpack.c.l.b16 %v3546
        %v3579 = vunpack.c.l.b16 %v3547
        %v3580 = vunpack.c.l.b16 %v3548
        %v3581 = vunpack.c.l.b16 %v3549
        %v3582 = vunpack.c.l.b16 %v3550
        %v3583 = vunpack.c.l.b16 %v3551
        %v3584 = vunpack.c.l.b16 %v3552
        %v3585 = vunpack.c.l.b16 %v3553
        %v3586 = vunpack.c.l.b16 %v3554
        %v3587 = vpack.c.b16 %v3572, %v3571
        %v3588 = vpack.c.b16 %v3574, %v3573
        %v3589 = vpack.c.b16 %v3576, %v3575
        %v3590 = vpack.c.b16 %v3578, %v3577
        %v3591 = vpack.c.b16 %v3580, %v3579
        %v3592 = vpack.c.b16 %v3582, %v3581
        %v3593 = vpack.c.b16 %v3584, %v3583
        %v3594 = vpack.c.b16 %v3586, %v3585
        %3603 = vmatprep.subr.bf16.mxu0 0
        %3604 = vmatpush1.bf16.msra.mxu0 %v3587
        %3605 = vmatprep.subr.bf16.mxu0 0
        %3606 = vmatpush1.bf16.msra.mxu0 %v3588
        %3607 = vmatprep.subr.bf16.mxu0 0
        %3608 = vmatpush1.bf16.msra.mxu0 %v3589
        %3609 = vmatprep.subr.bf16.mxu0 0
        %3610 = vmatpush1.bf16.msra.mxu0 %v3590
        %3611 = vmatprep.subr.bf16.mxu0 0
        %3612 = vmatpush1.bf16.msra.mxu0 %v3591
        %3613 = vmatprep.subr.bf16.mxu0 0
        %3614 = vmatpush1.bf16.msra.mxu0 %v3592
        %3615 = vmatprep.subr.bf16.mxu0 0
        %3616 = vmatpush1.bf16.msra.mxu0 %v3593
        %3617 = vmatprep.subr.bf16.mxu0 0
        %3618 = vmatpush1.bf16.msra.mxu0 %v3594
        %3619 = vmatprep.subr.bf16.mxu0 0
        %3620 = vmatpush1.bf16.msra.mxu0 0
        %3621 = vmatprep.subr.bf16.mxu0 0
        %3622 = vmatpush1.bf16.msra.mxu0 0
        %3623 = vmatprep.subr.bf16.mxu0 0
        %3624 = vmatpush1.bf16.msra.mxu0 0
        %3625 = vmatprep.subr.bf16.mxu0 0
        %3626 = vmatpush1.bf16.msra.mxu0 0
        %3627 = vmatprep.subr.bf16.mxu0 0
        %3628 = vmatpush1.bf16.msra.mxu0 0
        %3629 = vmatprep.subr.bf16.mxu0 0
        %3630 = vmatpush1.bf16.msra.mxu0 0
        %3631 = vmatprep.subr.bf16.mxu0 0
        %3632 = vmatpush1.bf16.msra.mxu0 0
        %3633 = vmatprep.subr.bf16.mxu0 0
        %3634 = vmatpush1.bf16.msra.mxu0 0
        %3635 = vmatprep.mubr.bf16.mxu0 0
        %3636 = vmatmul.mubr.bf16.gmra.mrb[0].mxu0 %v3532
        %v3637 = vpop.f32.mrb[0].mxu0
        %v3638 = vadd.f32 0.0, %v3637
        %v3639 = vpop.f32.mrb[0].mxu0
        %v3640 = vpop.f32.mrb[0].mxu0
        %v3641 = vadd.f32 0.0, %v3640
        %v3642 = vpop.f32.mrb[0].mxu0
        %3643 = vmatprep.mubr.bf16.mxu0 0
        %3644 = vmatmul.mubr.bf16.gmra.mrb[0].mxu0 %v3533
        %v3645 = vpop.f32.mrb[0].mxu0
        %v3646 = vpop.f32.mrb[0].mxu0
        %v3647 = vpop.f32.mrb[0].mxu0
        %v3648 = vadd.f32 0.0, %v3647
        %v3649 = vpop.f32.mrb[0].mxu0
        %3650 = vmatprep.mubr.bf16.mxu0 0
        %3651 = vmatmul.mubr.bf16.gmra.mrb[0].mxu0 %v3534
        %v3652 = vpop.f32.mrb[0].mxu0
        %v3653 = vadd.f32 0.0, %v3652
        %v3654 = vpop.f32.mrb[0].mxu0
        %v3655 = vpop.f32.mrb[0].mxu0
        %v3656 = vpop.f32.mrb[0].mxu0
        %3657 = vmatprep.mubr.bf16.mxu0 0
        %3658 = vmatmul.mubr.bf16.gmra.mrb[0].mxu0 %v3535
        %v3659 = vpop.f32.mrb[0].mxu0
        %v3660 = vadd.f32 0.0, %v3659
        %v3661 = vpop.f32.mrb[0].mxu0
        %v3662 = vpop.f32.mrb[0].mxu0
        %v3663 = vadd.f32 0.0, %v3662
        %v3664 = vpop.f32.mrb[0].mxu0
        %3665 = vmatprep.mubr.bf16.mxu0 0
        %3666 = vmatmul.mubr.bf16.gmra.mrb[0].mxu0 %v3536
        %v3667 = vpop.f32.mrb[0].mxu0
        %v3668 = vpop.f32.mrb[0].mxu0
        %v3669 = vpop.f32.mrb[0].mxu0
        %v3670 = vadd.f32 0.0, %v3669
        %v3671 = vpop.f32.mrb[0].mxu0
        %3672 = vmatprep.mubr.bf16.mxu0 0
        %3673 = vmatmul.mubr.bf16.gmra.mrb[0].mxu0 %v3537
        %v3674 = vpop.f32.mrb[0].mxu0
        %v3675 = vadd.f32 0.0, %v3674
        %v3676 = vpop.f32.mrb[0].mxu0
        %v3677 = vpop.f32.mrb[0].mxu0
        %v3678 = vpop.f32.mrb[0].mxu0
        %3679 = vdwg.mxu0
        %v3680 = vadd.f32 %v3510, %v3638
        %v3681 = vadd.f32 %v3511, %v3641
        %v3682 = vadd.f32 %v3512, %v3648
        %v3683 = vadd.f32 %v3513, %v3653
        %v3684 = vadd.f32 %v3514, %v3660
        %v3685 = vadd.f32 %v3515, %v3663
        %v3686 = vadd.f32 %v3516, %v3670
        %v3687 = vadd.f32 %v3517, %v3675
        %s3688 = sadd.s32 %s3024, 32
        %s3689 = scalar_lea.vmem [#allocation3], %s3688
        %v3690 = vld [vmem:[%s3689] sm:$0xff]
        %v3691 = vld [vmem:[%s3689 + $0x8] sm:$0xff]
        %v3692 = vld [vmem:[%s3689 + $0x10] sm:$0xff]
        %v3693 = vld [vmem:[%s3689 + $0x18] sm:$0xff]
        %v3694 = vld [vmem:[%s3689 + $0x20] sm:$0xff]
        %v3695 = vld [vmem:[%s3689 + $0x28] sm:$0xff]
        %v3696 = vld [vmem:[%s3689 + $0x30] sm:$0xff]
        %v3697 = vld [vmem:[%s3689 + $0x38] sm:$0xff]
        %v3698 = vld [vmem:[%s3689 + $0x40] sm:$0xff]
        %v3699 = vld [vmem:[%s3689 + $0x48] sm:$0xff]
        %v3700 = vld [vmem:[%s3689 + $0x50] sm:$0xff]
        %v3701 = vld [vmem:[%s3689 + $0x58] sm:$0xff]
        %v3702 = vpack.c.bf16 %v3691, %v3690
        %v3703 = vpack.c.bf16 %v3693, %v3692
        %v3704 = vpack.c.bf16 %v3695, %v3694
        %v3705 = vpack.c.bf16 %v3697, %v3696
        %v3706 = vpack.c.bf16 %v3699, %v3698
        %v3707 = vpack.c.bf16 %v3701, %v3700
        %s3708 = scalar_lea.vmem %s11, 256
        %v3709 = vld [vmem:[%s3708] sm:$0xf]
        %v3710 = vld [vmem:[%s3708 + $0x4] sm:$0xf]
        %v3711 = vld [vmem:[%s3708 + $0x8] sm:$0xf]
        %v3712 = vld [vmem:[%s3708 + $0xc] sm:$0xf]
        %v3713 = vld [vmem:[%s3708 + $0x10] sm:$0xf]
        %v3714 = vld [vmem:[%s3708 + $0x14] sm:$0xf]
        %v3715 = vld [vmem:[%s3708 + $0x18] sm:$0xf]
        %v3716 = vld [vmem:[%s3708 + $0x1c] sm:$0xf]
        %v3717 = vld [vmem:[%s3708 + $0x20] sm:$0xf]
        %v3718 = vld [vmem:[%s3708 + $0x24] sm:$0xf]
        %v3719 = vld [vmem:[%s3708 + $0x28] sm:$0xf]
        %v3720 = vld [vmem:[%s3708 + $0x2c] sm:$0xf]
        %v3721 = vld [vmem:[%s3708 + $0x30] sm:$0xf]
        %v3722 = vld [vmem:[%s3708 + $0x34] sm:$0xf]
        %v3723 = vld [vmem:[%s3708 + $0x38] sm:$0xf]
        %v3724 = vld [vmem:[%s3708 + $0x3c] sm:$0xf]
        %v3741 = vunpack.c.l.b16 %v3709
        %v3742 = vunpack.c.l.b16 %v3710
        %v3743 = vunpack.c.l.b16 %v3711
        %v3744 = vunpack.c.l.b16 %v3712
        %v3745 = vunpack.c.l.b16 %v3713
        %v3746 = vunpack.c.l.b16 %v3714
        %v3747 = vunpack.c.l.b16 %v3715
        %v3748 = vunpack.c.l.b16 %v3716
        %v3749 = vunpack.c.l.b16 %v3717
        %v3750 = vunpack.c.l.b16 %v3718
        %v3751 = vunpack.c.l.b16 %v3719
        %v3752 = vunpack.c.l.b16 %v3720
        %v3753 = vunpack.c.l.b16 %v3721
        %v3754 = vunpack.c.l.b16 %v3722
        %v3755 = vunpack.c.l.b16 %v3723
        %v3756 = vunpack.c.l.b16 %v3724
        %v3757 = vpack.c.b16 %v3742, %v3741
        %v3758 = vpack.c.b16 %v3744, %v3743
        %v3759 = vpack.c.b16 %v3746, %v3745
        %v3760 = vpack.c.b16 %v3748, %v3747
        %v3761 = vpack.c.b16 %v3750, %v3749
        %v3762 = vpack.c.b16 %v3752, %v3751
        %v3763 = vpack.c.b16 %v3754, %v3753
        %v3764 = vpack.c.b16 %v3756, %v3755
        %3773 = vmatprep.subr.bf16.mxu0 0
        %3774 = vmatpush1.bf16.msra.mxu0 %v3757
        %3775 = vmatprep.subr.bf16.mxu0 0
        %3776 = vmatpush1.bf16.msra.mxu0 %v3758
        %3777 = vmatprep.subr.bf16.mxu0 0
        %3778 = vmatpush1.bf16.msra.mxu0 %v3759
        %3779 = vmatprep.subr.bf16.mxu0 0
        %3780 = vmatpush1.bf16.msra.mxu0 %v3760
        %3781 = vmatprep.subr.bf16.mxu0 0
        %3782 = vmatpush1.bf16.msra.mxu0 %v3761
        %3783 = vmatprep.subr.bf16.mxu0 0
        %3784 = vmatpush1.bf16.msra.mxu0 %v3762
        %3785 = vmatprep.subr.bf16.mxu0 0
        %3786 = vmatpush1.bf16.msra.mxu0 %v3763
        %3787 = vmatprep.subr.bf16.mxu0 0
        %3788 = vmatpush1.bf16.msra.mxu0 %v3764
        %3789 = vmatprep.subr.bf16.mxu0 0
        %3790 = vmatpush1.bf16.msra.mxu0 0
        %3791 = vmatprep.subr.bf16.mxu0 0
        %3792 = vmatpush1.bf16.msra.mxu0 0
        %3793 = vmatprep.subr.bf16.mxu0 0
        %3794 = vmatpush1.bf16.msra.mxu0 0
        %3795 = vmatprep.subr.bf16.mxu0 0
        %3796 = vmatpush1.bf16.msra.mxu0 0
        %3797 = vmatprep.subr.bf16.mxu0 0
        %3798 = vmatpush1.bf16.msra.mxu0 0
        %3799 = vmatprep.subr.bf16.mxu0 0
        %3800 = vmatpush1.bf16.msra.mxu0 0
        %3801 = vmatprep.subr.bf16.mxu0 0
        %3802 = vmatpush1.bf16.msra.mxu0 0
        %3803 = vmatprep.subr.bf16.mxu0 0
        %3804 = vmatpush1.bf16.msra.mxu0 0
        %3805 = vmatprep.mubr.bf16.mxu0 0
        %3806 = vmatmul.mubr.bf16.gmra.mrb[0].mxu0 %v3702
        %v3807 = vpop.f32.mrb[0].mxu0
        %v3808 = vadd.f32 0.0, %v3807
        %v3809 = vpop.f32.mrb[0].mxu0
        %v3810 = vpop.f32.mrb[0].mxu0
        %v3811 = vadd.f32 0.0, %v3810
        %v3812 = vpop.f32.mrb[0].mxu0
        %3813 = vmatprep.mubr.bf16.mxu0 0
        %3814 = vmatmul.mubr.bf16.gmra.mrb[0].mxu0 %v3703
        %v3815 = vpop.f32.mrb[0].mxu0
        %v3816 = vpop.f32.mrb[0].mxu0
        %v3817 = vpop.f32.mrb[0].mxu0
        %v3818 = vadd.f32 0.0, %v3817
        %v3819 = vpop.f32.mrb[0].mxu0
        %3820 = vmatprep.mubr.bf16.mxu0 0
        %3821 = vmatmul.mubr.bf16.gmra.mrb[0].mxu0 %v3704
        %v3822 = vpop.f32.mrb[0].mxu0
        %v3823 = vadd.f32 0.0, %v3822
        %v3824 = vpop.f32.mrb[0].mxu0
        %v3825 = vpop.f32.mrb[0].mxu0
        %v3826 = vpop.f32.mrb[0].mxu0
        %3827 = vmatprep.mubr.bf16.mxu0 0
        %3828 = vmatmul.mubr.bf16.gmra.mrb[0].mxu0 %v3705
        %v3829 = vpop.f32.mrb[0].mxu0
        %v3830 = vadd.f32 0.0, %v3829
        %v3831 = vpop.f32.mrb[0].mxu0
        %v3832 = vpop.f32.mrb[0].mxu0
        %v3833 = vadd.f32 0.0, %v3832
        %v3834 = vpop.f32.mrb[0].mxu0
        %3835 = vmatprep.mubr.bf16.mxu0 0
        %3836 = vmatmul.mubr.bf16.gmra.mrb[0].mxu0 %v3706
        %v3837 = vpop.f32.mrb[0].mxu0
        %v3838 = vpop.f32.mrb[0].mxu0
        %v3839 = vpop.f32.mrb[0].mxu0
        %v3840 = vadd.f32 0.0, %v3839
        %v3841 = vpop.f32.mrb[0].mxu0
        %3842 = vmatprep.mubr.bf16.mxu0 0
        %3843 = vmatmul.mubr.bf16.gmra.mrb[0].mxu0 %v3707
        %v3844 = vpop.f32.mrb[0].mxu0
        %v3845 = vadd.f32 0.0, %v3844
        %v3846 = vpop.f32.mrb[0].mxu0
        %v3847 = vpop.f32.mrb[0].mxu0
        %v3848 = vpop.f32.mrb[0].mxu0
        %3849 = vdwg.mxu0
        %v3850 = vadd.f32 %v3680, %v3808
        %v3851 = vadd.f32 %v3681, %v3811
        %v3852 = vadd.f32 %v3682, %v3818
        %v3853 = vadd.f32 %v3683, %v3823
        %v3854 = vadd.f32 %v3684, %v3830
        %v3855 = vadd.f32 %v3685, %v3833
        %v3856 = vadd.f32 %v3686, %v3840
        %v3857 = vadd.f32 %v3687, %v3845
        %s3858 = sadd.s32 %s3024, 33
        %s3859 = scalar_lea.vmem [#allocation3], %s3858
        %v3860 = vld [vmem:[%s3859] sm:$0xff]
        %v3861 = vld [vmem:[%s3859 + $0x8] sm:$0xff]
        %v3862 = vld [vmem:[%s3859 + $0x10] sm:$0xff]
        %v3863 = vld [vmem:[%s3859 + $0x18] sm:$0xff]
        %v3864 = vld [vmem:[%s3859 + $0x20] sm:$0xff]
        %v3865 = vld [vmem:[%s3859 + $0x28] sm:$0xff]
        %v3866 = vld [vmem:[%s3859 + $0x30] sm:$0xff]
        %v3867 = vld [vmem:[%s3859 + $0x38] sm:$0xff]
        %v3868 = vld [vmem:[%s3859 + $0x40] sm:$0xff]
        %v3869 = vld [vmem:[%s3859 + $0x48] sm:$0xff]
        %v3870 = vld [vmem:[%s3859 + $0x50] sm:$0xff]
        %v3871 = vld [vmem:[%s3859 + $0x58] sm:$0xff]
        %v3872 = vpack.c.bf16 %v3861, %v3860
        %v3873 = vpack.c.bf16 %v3863, %v3862
        %v3874 = vpack.c.bf16 %v3865, %v3864
        %v3875 = vpack.c.bf16 %v3867, %v3866
        %v3876 = vpack.c.bf16 %v3869, %v3868
        %v3877 = vpack.c.bf16 %v3871, %v3870
        %s3878 = scalar_lea.vmem %s11, 320
        %v3879 = vld [vmem:[%s3878] sm:$0xf]
        %v3880 = vld [vmem:[%s3878 + $0x4] sm:$0xf]
        %v3881 = vld [vmem:[%s3878 + $0x8] sm:$0xf]
        %v3882 = vld [vmem:[%s3878 + $0xc] sm:$0xf]
        %v3883 = vld [vmem:[%s3878 + $0x10] sm:$0xf]
        %v3884 = vld [vmem:[%s3878 + $0x14] sm:$0xf]
        %v3885 = vld [vmem:[%s3878 + $0x18] sm:$0xf]
        %v3886 = vld [vmem:[%s3878 + $0x1c] sm:$0xf]
        %v3887 = vld [vmem:[%s3878 + $0x20] sm:$0xf]
        %v3888 = vld [vmem:[%s3878 + $0x24] sm:$0xf]
        %v3889 = vld [vmem:[%s3878 + $0x28] sm:$0xf]
        %v3890 = vld [vmem:[%s3878 + $0x2c] sm:$0xf]
        %v3891 = vld [vmem:[%s3878 + $0x30] sm:$0xf]
        %v3892 = vld [vmem:[%s3878 + $0x34] sm:$0xf]
        %v3893 = vld [vmem:[%s3878 + $0x38] sm:$0xf]
        %v3894 = vld [vmem:[%s3878 + $0x3c] sm:$0xf]
        %v3911 = vunpack.c.l.b16 %v3879
        %v3912 = vunpack.c.l.b16 %v3880
        %v3913 = vunpack.c.l.b16 %v3881
        %v3914 = vunpack.c.l.b16 %v3882
        %v3915 = vunpack.c.l.b16 %v3883
        %v3916 = vunpack.c.l.b16 %v3884
        %v3917 = vunpack.c.l.b16 %v3885
        %v3918 = vunpack.c.l.b16 %v3886
        %v3919 = vunpack.c.l.b16 %v3887
        %v3920 = vunpack.c.l.b16 %v3888
        %v3921 = vunpack.c.l.b16 %v3889
        %v3922 = vunpack.c.l.b16 %v3890
        %v3923 = vunpack.c.l.b16 %v3891
        %v3924 = vunpack.c.l.b16 %v3892
        %v3925 = vunpack.c.l.b16 %v3893
        %v3926 = vunpack.c.l.b16 %v3894
        %v3927 = vpack.c.b16 %v3912, %v3911
        %v3928 = vpack.c.b16 %v3914, %v3913
        %v3929 = vpack.c.b16 %v3916, %v3915
        %v3930 = vpack.c.b16 %v3918, %v3917
        %v3931 = vpack.c.b16 %v3920, %v3919
        %v3932 = vpack.c.b16 %v3922, %v3921
        %v3933 = vpack.c.b16 %v3924, %v3923
        %v3934 = vpack.c.b16 %v3926, %v3925
        %3943 = vmatprep.subr.bf16.mxu0 0
        %3944 = vmatpush1.bf16.msra.mxu0 %v3927
        %3945 = vmatprep.subr.bf16.mxu0 0
        %3946 = vmatpush1.bf16.msra.mxu0 %v3928
        %3947 = vmatprep.subr.bf16.mxu0 0
        %3948 = vmatpush1.bf16.msra.mxu0 %v3929
        %3949 = vmatprep.subr.bf16.mxu0 0
        %3950 = vmatpush1.bf16.msra.mxu0 %v3930
        %3951 = vmatprep.subr.bf16.mxu0 0
        %3952 = vmatpush1.bf16.msra.mxu0 %v3931
        %3953 = vmatprep.subr.bf16.mxu0 0
        %3954 = vmatpush1.bf16.msra.mxu0 %v3932
        %3955 = vmatprep.subr.bf16.mxu0 0
        %3956 = vmatpush1.bf16.msra.mxu0 %v3933
        %3957 = vmatprep.subr.bf16.mxu0 0
        %3958 = vmatpush1.bf16.msra.mxu0 %v3934
        %3959 = vmatprep.subr.bf16.mxu0 0
        %3960 = vmatpush1.bf16.msra.mxu0 0
        %3961 = vmatprep.subr.bf16.mxu0 0
        %3962 = vmatpush1.bf16.msra.mxu0 0
        %3963 = vmatprep.subr.bf16.mxu0 0
        %3964 = vmatpush1.bf16.msra.mxu0 0
        %3965 = vmatprep.subr.bf16.mxu0 0
        %3966 = vmatpush1.bf16.msra.mxu0 0
        %3967 = vmatprep.subr.bf16.mxu0 0
        %3968 = vmatpush1.bf16.msra.mxu0 0
        %3969 = vmatprep.subr.bf16.mxu0 0
        %3970 = vmatpush1.bf16.msra.mxu0 0
        %3971 = vmatprep.subr.bf16.mxu0 0
        %3972 = vmatpush1.bf16.msra.mxu0 0
        %3973 = vmatprep.subr.bf16.mxu0 0
        %3974 = vmatpush1.bf16.msra.mxu0 0
        %3975 = vmatprep.mubr.bf16.mxu0 0
        %3976 = vmatmul.mubr.bf16.gmra.mrb[0].mxu0 %v3872
        %v3977 = vpop.f32.mrb[0].mxu0
        %v3978 = vadd.f32 0.0, %v3977
        %v3979 = vpop.f32.mrb[0].mxu0
        %v3980 = vpop.f32.mrb[0].mxu0
        %v3981 = vadd.f32 0.0, %v3980
        %v3982 = vpop.f32.mrb[0].mxu0
        %3983 = vmatprep.mubr.bf16.mxu0 0
        %3984 = vmatmul.mubr.bf16.gmra.mrb[0].mxu0 %v3873
        %v3985 = vpop.f32.mrb[0].mxu0
        %v3986 = vpop.f32.mrb[0].mxu0
        %v3987 = vpop.f32.mrb[0].mxu0
        %v3988 = vadd.f32 0.0, %v3987
        %v3989 = vpop.f32.mrb[0].mxu0
        %3990 = vmatprep.mubr.bf16.mxu0 0
        %3991 = vmatmul.mubr.bf16.gmra.mrb[0].mxu0 %v3874
        %v3992 = vpop.f32.mrb[0].mxu0
        %v3993 = vadd.f32 0.0, %v3992
        %v3994 = vpop.f32.mrb[0].mxu0
        %v3995 = vpop.f32.mrb[0].mxu0
        %v3996 = vpop.f32.mrb[0].mxu0
        %3997 = vmatprep.mubr.bf16.mxu0 0
        %3998 = vmatmul.mubr.bf16.gmra.mrb[0].mxu0 %v3875
        %v3999 = vpop.f32.mrb[0].mxu0
        %v4000 = vadd.f32 0.0, %v3999
        %v4001 = vpop.f32.mrb[0].mxu0
        %v4002 = vpop.f32.mrb[0].mxu0
        %v4003 = vadd.f32 0.0, %v4002
        %v4004 = vpop.f32.mrb[0].mxu0
        %4005 = vmatprep.mubr.bf16.mxu0 0
        %4006 = vmatmul.mubr.bf16.gmra.mrb[0].mxu0 %v3876
        %v4007 = vpop.f32.mrb[0].mxu0
        %v4008 = vpop.f32.mrb[0].mxu0
        %v4009 = vpop.f32.mrb[0].mxu0
        %v4010 = vadd.f32 0.0, %v4009
        %v4011 = vpop.f32.mrb[0].mxu0
        %4012 = vmatprep.mubr.bf16.mxu0 0
        %4013 = vmatmul.mubr.bf16.gmra.mrb[0].mxu0 %v3877
        %v4014 = vpop.f32.mrb[0].mxu0
        %v4015 = vadd.f32 0.0, %v4014
        %v4016 = vpop.f32.mrb[0].mxu0
        %v4017 = vpop.f32.mrb[0].mxu0
        %v4018 = vpop.f32.mrb[0].mxu0
        %4019 = vdwg.mxu0
        %v4020 = vadd.f32 %v3850, %v3978
        %v4021 = vadd.f32 %v3851, %v3981
        %v4022 = vadd.f32 %v3852, %v3988
        %v4023 = vadd.f32 %v3853, %v3993
        %v4024 = vadd.f32 %v3854, %v4000
        %v4025 = vadd.f32 %v3855, %v4003
        %v4026 = vadd.f32 %v3856, %v4010
        %v4027 = vadd.f32 %v3857, %v4015
        %s4028 = sadd.s32 %s3024, 55
        %s4029 = scalar_lea.vmem [#allocation3], %s4028
        %v4030 = vld [vmem:[%s4029] sm:$0xff]
        %v4031 = vld [vmem:[%s4029 + $0x8] sm:$0xff]
        %v4032 = vld [vmem:[%s4029 + $0x10] sm:$0xff]
        %v4033 = vld [vmem:[%s4029 + $0x18] sm:$0xff]
        %v4034 = vld [vmem:[%s4029 + $0x20] sm:$0xff]
        %v4035 = vld [vmem:[%s4029 + $0x28] sm:$0xff]
        %v4036 = vld [vmem:[%s4029 + $0x30] sm:$0xff]
        %v4037 = vld [vmem:[%s4029 + $0x38] sm:$0xff]
        %v4038 = vld [vmem:[%s4029 + $0x40] sm:$0xff]
        %v4039 = vld [vmem:[%s4029 + $0x48] sm:$0xff]
        %v4040 = vld [vmem:[%s4029 + $0x50] sm:$0xff]
        %v4041 = vld [vmem:[%s4029 + $0x58] sm:$0xff]
        %v4042 = vpack.c.bf16 %v4031, %v4030
        %v4043 = vpack.c.bf16 %v4033, %v4032
        %v4044 = vpack.c.bf16 %v4035, %v4034
        %v4045 = vpack.c.bf16 %v4037, %v4036
        %v4046 = vpack.c.bf16 %v4039, %v4038
        %v4047 = vpack.c.bf16 %v4041, %v4040
        %s4048 = scalar_lea.vmem %s11, 384
        %v4049 = vld [vmem:[%s4048] sm:$0xf]
        %v4050 = vld [vmem:[%s4048 + $0x4] sm:$0xf]
        %v4051 = vld [vmem:[%s4048 + $0x8] sm:$0xf]
        %v4052 = vld [vmem:[%s4048 + $0xc] sm:$0xf]
        %v4053 = vld [vmem:[%s4048 + $0x10] sm:$0xf]
        %v4054 = vld [vmem:[%s4048 + $0x14] sm:$0xf]
        %v4055 = vld [vmem:[%s4048 + $0x18] sm:$0xf]
        %v4056 = vld [vmem:[%s4048 + $0x1c] sm:$0xf]
        %v4057 = vld [vmem:[%s4048 + $0x20] sm:$0xf]
        %v4058 = vld [vmem:[%s4048 + $0x24] sm:$0xf]
        %v4059 = vld [vmem:[%s4048 + $0x28] sm:$0xf]
        %v4060 = vld [vmem:[%s4048 + $0x2c] sm:$0xf]
        %v4061 = vld [vmem:[%s4048 + $0x30] sm:$0xf]
        %v4062 = vld [vmem:[%s4048 + $0x34] sm:$0xf]
        %v4063 = vld [vmem:[%s4048 + $0x38] sm:$0xf]
        %v4064 = vld [vmem:[%s4048 + $0x3c] sm:$0xf]
        %v4081 = vunpack.c.l.b16 %v4049
        %v4082 = vunpack.c.l.b16 %v4050
        %v4083 = vunpack.c.l.b16 %v4051
        %v4084 = vunpack.c.l.b16 %v4052
        %v4085 = vunpack.c.l.b16 %v4053
        %v4086 = vunpack.c.l.b16 %v4054
        %v4087 = vunpack.c.l.b16 %v4055
        %v4088 = vunpack.c.l.b16 %v4056
        %v4089 = vunpack.c.l.b16 %v4057
        %v4090 = vunpack.c.l.b16 %v4058
        %v4091 = vunpack.c.l.b16 %v4059
        %v4092 = vunpack.c.l.b16 %v4060
        %v4093 = vunpack.c.l.b16 %v4061
        %v4094 = vunpack.c.l.b16 %v4062
        %v4095 = vunpack.c.l.b16 %v4063
        %v4096 = vunpack.c.l.b16 %v4064
        %v4097 = vpack.c.b16 %v4082, %v4081
        %v4098 = vpack.c.b16 %v4084, %v4083
        %v4099 = vpack.c.b16 %v4086, %v4085
        %v4100 = vpack.c.b16 %v4088, %v4087
        %v4101 = vpack.c.b16 %v4090, %v4089
        %v4102 = vpack.c.b16 %v4092, %v4091
        %v4103 = vpack.c.b16 %v4094, %v4093
        %v4104 = vpack.c.b16 %v4096, %v4095
        %4113 = vmatprep.subr.bf16.mxu0 0
        %4114 = vmatpush1.bf16.msra.mxu0 %v4097
        %4115 = vmatprep.subr.bf16.mxu0 0
        %4116 = vmatpush1.bf16.msra.mxu0 %v4098
        %4117 = vmatprep.subr.bf16.mxu0 0
        %4118 = vmatpush1.bf16.msra.mxu0 %v4099
        %4119 = vmatprep.subr.bf16.mxu0 0
        %4120 = vmatpush1.bf16.msra.mxu0 %v4100
        %4121 = vmatprep.subr.bf16.mxu0 0
        %4122 = vmatpush1.bf16.msra.mxu0 %v4101
        %4123 = vmatprep.subr.bf16.mxu0 0
        %4124 = vmatpush1.bf16.msra.mxu0 %v4102
        %4125 = vmatprep.subr.bf16.mxu0 0
        %4126 = vmatpush1.bf16.msra.mxu0 %v4103
        %4127 = vmatprep.subr.bf16.mxu0 0
        %4128 = vmatpush1.bf16.msra.mxu0 %v4104
        %4129 = vmatprep.subr.bf16.mxu0 0
        %4130 = vmatpush1.bf16.msra.mxu0 0
        %4131 = vmatprep.subr.bf16.mxu0 0
        %4132 = vmatpush1.bf16.msra.mxu0 0
        %4133 = vmatprep.subr.bf16.mxu0 0
        %4134 = vmatpush1.bf16.msra.mxu0 0
        %4135 = vmatprep.subr.bf16.mxu0 0
        %4136 = vmatpush1.bf16.msra.mxu0 0
        %4137 = vmatprep.subr.bf16.mxu0 0
        %4138 = vmatpush1.bf16.msra.mxu0 0
        %4139 = vmatprep.subr.bf16.mxu0 0
        %4140 = vmatpush1.bf16.msra.mxu0 0
        %4141 = vmatprep.subr.bf16.mxu0 0
        %4142 = vmatpush1.bf16.msra.mxu0 0
        %4143 = vmatprep.subr.bf16.mxu0 0
        %4144 = vmatpush1.bf16.msra.mxu0 0
        %4145 = vmatprep.mubr.bf16.mxu0 0
        %4146 = vmatmul.mubr.bf16.gmra.mrb[0].mxu0 %v4042
        %v4147 = vpop.f32.mrb[0].mxu0
        %v4148 = vadd.f32 0.0, %v4147
        %v4149 = vpop.f32.mrb[0].mxu0
        %v4150 = vpop.f32.mrb[0].mxu0
        %v4151 = vadd.f32 0.0, %v4150
        %v4152 = vpop.f32.mrb[0].mxu0
        %4153 = vmatprep.mubr.bf16.mxu0 0
        %4154 = vmatmul.mubr.bf16.gmra.mrb[0].mxu0 %v4043
        %v4155 = vpop.f32.mrb[0].mxu0
        %v4156 = vpop.f32.mrb[0].mxu0
        %v4157 = vpop.f32.mrb[0].mxu0
        %v4158 = vadd.f32 0.0, %v4157
        %v4159 = vpop.f32.mrb[0].mxu0
        %4160 = vmatprep.mubr.bf16.mxu0 0
        %4161 = vmatmul.mubr.bf16.gmra.mrb[0].mxu0 %v4044
        %v4162 = vpop.f32.mrb[0].mxu0
        %v4163 = vadd.f32 0.0, %v4162
        %v4164 = vpop.f32.mrb[0].mxu0
        %v4165 = vpop.f32.mrb[0].mxu0
        %v4166 = vpop.f32.mrb[0].mxu0
        %4167 = vmatprep.mubr.bf16.mxu0 0
        %4168 = vmatmul.mubr.bf16.gmra.mrb[0].mxu0 %v4045
        %v4169 = vpop.f32.mrb[0].mxu0
        %v4170 = vadd.f32 0.0, %v4169
        %v4171 = vpop.f32.mrb[0].mxu0
        %v4172 = vpop.f32.mrb[0].mxu0
        %v4173 = vadd.f32 0.0, %v4172
        %v4174 = vpop.f32.mrb[0].mxu0
        %4175 = vmatprep.mubr.bf16.mxu0 0
        %4176 = vmatmul.mubr.bf16.gmra.mrb[0].mxu0 %v4046
        %v4177 = vpop.f32.mrb[0].mxu0
        %v4178 = vpop.f32.mrb[0].mxu0
        %v4179 = vpop.f32.mrb[0].mxu0
        %v4180 = vadd.f32 0.0, %v4179
        %v4181 = vpop.f32.mrb[0].mxu0
        %4182 = vmatprep.mubr.bf16.mxu0 0
        %4183 = vmatmul.mubr.bf16.gmra.mrb[0].mxu0 %v4047
        %v4184 = vpop.f32.mrb[0].mxu0
        %v4185 = vadd.f32 0.0, %v4184
        %v4186 = vpop.f32.mrb[0].mxu0
        %v4187 = vpop.f32.mrb[0].mxu0
        %v4188 = vpop.f32.mrb[0].mxu0
        %4189 = vdwg.mxu0
        %v4190 = vadd.f32 %v4020, %v4148
        %v4191 = vadd.f32 %v4021, %v4151
        %v4192 = vadd.f32 %v4022, %v4158
        %v4193 = vadd.f32 %v4023, %v4163
        %v4194 = vadd.f32 %v4024, %v4170
        %v4195 = vadd.f32 %v4025, %v4173
        %v4196 = vadd.f32 %v4026, %v4180
        %v4197 = vadd.f32 %v4027, %v4185
        %s4198 = sadd.s32 %s3024, 56
        %s4199 = scalar_lea.vmem [#allocation3], %s4198
        %v4200 = vld [vmem:[%s4199] sm:$0xff]
        %v4201 = vld [vmem:[%s4199 + $0x8] sm:$0xff]
        %v4202 = vld [vmem:[%s4199 + $0x10] sm:$0xff]
        %v4203 = vld [vmem:[%s4199 + $0x18] sm:$0xff]
        %v4204 = vld [vmem:[%s4199 + $0x20] sm:$0xff]
        %v4205 = vld [vmem:[%s4199 + $0x28] sm:$0xff]
        %v4206 = vld [vmem:[%s4199 + $0x30] sm:$0xff]
        %v4207 = vld [vmem:[%s4199 + $0x38] sm:$0xff]
        %v4208 = vld [vmem:[%s4199 + $0x40] sm:$0xff]
        %v4209 = vld [vmem:[%s4199 + $0x48] sm:$0xff]
        %v4210 = vld [vmem:[%s4199 + $0x50] sm:$0xff]
        %v4211 = vld [vmem:[%s4199 + $0x58] sm:$0xff]
        %v4212 = vpack.c.bf16 %v4201, %v4200
        %v4213 = vpack.c.bf16 %v4203, %v4202
        %v4214 = vpack.c.bf16 %v4205, %v4204
        %v4215 = vpack.c.bf16 %v4207, %v4206
        %v4216 = vpack.c.bf16 %v4209, %v4208
        %v4217 = vpack.c.bf16 %v4211, %v4210
        %s4218 = scalar_lea.vmem %s11, 448
        %v4219 = vld [vmem:[%s4218] sm:$0xf]
        %v4220 = vld [vmem:[%s4218 + $0x4] sm:$0xf]
        %v4221 = vld [vmem:[%s4218 + $0x8] sm:$0xf]
        %v4222 = vld [vmem:[%s4218 + $0xc] sm:$0xf]
        %v4223 = vld [vmem:[%s4218 + $0x10] sm:$0xf]
        %v4224 = vld [vmem:[%s4218 + $0x14] sm:$0xf]
        %v4225 = vld [vmem:[%s4218 + $0x18] sm:$0xf]
        %v4226 = vld [vmem:[%s4218 + $0x1c] sm:$0xf]
        %v4227 = vld [vmem:[%s4218 + $0x20] sm:$0xf]
        %v4228 = vld [vmem:[%s4218 + $0x24] sm:$0xf]
        %v4229 = vld [vmem:[%s4218 + $0x28] sm:$0xf]
        %v4230 = vld [vmem:[%s4218 + $0x2c] sm:$0xf]
        %v4231 = vld [vmem:[%s4218 + $0x30] sm:$0xf]
        %v4232 = vld [vmem:[%s4218 + $0x34] sm:$0xf]
        %v4233 = vld [vmem:[%s4218 + $0x38] sm:$0xf]
        %v4234 = vld [vmem:[%s4218 + $0x3c] sm:$0xf]
        %v4251 = vunpack.c.l.b16 %v4219
        %v4252 = vunpack.c.l.b16 %v4220
        %v4253 = vunpack.c.l.b16 %v4221
        %v4254 = vunpack.c.l.b16 %v4222
        %v4255 = vunpack.c.l.b16 %v4223
        %v4256 = vunpack.c.l.b16 %v4224
        %v4257 = vunpack.c.l.b16 %v4225
        %v4258 = vunpack.c.l.b16 %v4226
        %v4259 = vunpack.c.l.b16 %v4227
        %v4260 = vunpack.c.l.b16 %v4228
        %v4261 = vunpack.c.l.b16 %v4229
        %v4262 = vunpack.c.l.b16 %v4230
        %v4263 = vunpack.c.l.b16 %v4231
        %v4264 = vunpack.c.l.b16 %v4232
        %v4265 = vunpack.c.l.b16 %v4233
        %v4266 = vunpack.c.l.b16 %v4234
        %v4267 = vpack.c.b16 %v4252, %v4251
        %v4268 = vpack.c.b16 %v4254, %v4253
        %v4269 = vpack.c.b16 %v4256, %v4255
        %v4270 = vpack.c.b16 %v4258, %v4257
        %v4271 = vpack.c.b16 %v4260, %v4259
        %v4272 = vpack.c.b16 %v4262, %v4261
        %v4273 = vpack.c.b16 %v4264, %v4263
        %v4274 = vpack.c.b16 %v4266, %v4265
        %4283 = vmatprep.subr.bf16.mxu0 0
        %4284 = vmatpush1.bf16.msra.mxu0 %v4267
        %4285 = vmatprep.subr.bf16.mxu0 0
        %4286 = vmatpush1.bf16.msra.mxu0 %v4268
        %4287 = vmatprep.subr.bf16.mxu0 0
        %4288 = vmatpush1.bf16.msra.mxu0 %v4269
        %4289 = vmatprep.subr.bf16.mxu0 0
        %4290 = vmatpush1.bf16.msra.mxu0 %v4270
        %4291 = vmatprep.subr.bf16.mxu0 0
        %4292 = vmatpush1.bf16.msra.mxu0 %v4271
        %4293 = vmatprep.subr.bf16.mxu0 0
        %4294 = vmatpush1.bf16.msra.mxu0 %v4272
        %4295 = vmatprep.subr.bf16.mxu0 0
        %4296 = vmatpush1.bf16.msra.mxu0 %v4273
        %4297 = vmatprep.subr.bf16.mxu0 0
        %4298 = vmatpush1.bf16.msra.mxu0 %v4274
        %4299 = vmatprep.subr.bf16.mxu0 0
        %4300 = vmatpush1.bf16.msra.mxu0 0
        %4301 = vmatprep.subr.bf16.mxu0 0
        %4302 = vmatpush1.bf16.msra.mxu0 0
        %4303 = vmatprep.subr.bf16.mxu0 0
        %4304 = vmatpush1.bf16.msra.mxu0 0
        %4305 = vmatprep.subr.bf16.mxu0 0
        %4306 = vmatpush1.bf16.msra.mxu0 0
        %4307 = vmatprep.subr.bf16.mxu0 0
        %4308 = vmatpush1.bf16.msra.mxu0 0
        %4309 = vmatprep.subr.bf16.mxu0 0
        %4310 = vmatpush1.bf16.msra.mxu0 0
        %4311 = vmatprep.subr.bf16.mxu0 0
        %4312 = vmatpush1.bf16.msra.mxu0 0
        %4313 = vmatprep.subr.bf16.mxu0 0
        %4314 = vmatpush1.bf16.msra.mxu0 0
        %4315 = vmatprep.mubr.bf16.mxu0 0
        %4316 = vmatmul.mubr.bf16.gmra.mrb[0].mxu0 %v4212
        %v4317 = vpop.f32.mrb[0].mxu0
        %v4318 = vadd.f32 0.0, %v4317
        %v4319 = vpop.f32.mrb[0].mxu0
        %v4320 = vpop.f32.mrb[0].mxu0
        %v4321 = vadd.f32 0.0, %v4320
        %v4322 = vpop.f32.mrb[0].mxu0
        %4323 = vmatprep.mubr.bf16.mxu0 0
        %4324 = vmatmul.mubr.bf16.gmra.mrb[0].mxu0 %v4213
        %v4325 = vpop.f32.mrb[0].mxu0
        %v4326 = vpop.f32.mrb[0].mxu0
        %v4327 = vpop.f32.mrb[0].mxu0
        %v4328 = vadd.f32 0.0, %v4327
        %v4329 = vpop.f32.mrb[0].mxu0
        %4330 = vmatprep.mubr.bf16.mxu0 0
        %4331 = vmatmul.mubr.bf16.gmra.mrb[0].mxu0 %v4214
        %v4332 = vpop.f32.mrb[0].mxu0
        %v4333 = vadd.f32 0.0, %v4332
        %v4334 = vpop.f32.mrb[0].mxu0
        %v4335 = vpop.f32.mrb[0].mxu0
        %v4336 = vpop.f32.mrb[0].mxu0
        %4337 = vmatprep.mubr.bf16.mxu0 0
        %4338 = vmatmul.mubr.bf16.gmra.mrb[0].mxu0 %v4215
        %v4339 = vpop.f32.mrb[0].mxu0
        %v4340 = vadd.f32 0.0, %v4339
        %v4341 = vpop.f32.mrb[0].mxu0
        %v4342 = vpop.f32.mrb[0].mxu0
        %v4343 = vadd.f32 0.0, %v4342
        %v4344 = vpop.f32.mrb[0].mxu0
        %4345 = vmatprep.mubr.bf16.mxu0 0
        %4346 = vmatmul.mubr.bf16.gmra.mrb[0].mxu0 %v4216
        %v4347 = vpop.f32.mrb[0].mxu0
        %v4348 = vpop.f32.mrb[0].mxu0
        %v4349 = vpop.f32.mrb[0].mxu0
        %v4350 = vadd.f32 0.0, %v4349
        %v4351 = vpop.f32.mrb[0].mxu0
        %4352 = vmatprep.mubr.bf16.mxu0 0
        %4353 = vmatmul.mubr.bf16.gmra.mrb[0].mxu0 %v4217
        %v4354 = vpop.f32.mrb[0].mxu0
        %v4355 = vadd.f32 0.0, %v4354
        %v4356 = vpop.f32.mrb[0].mxu0
        %v4357 = vpop.f32.mrb[0].mxu0
        %v4358 = vpop.f32.mrb[0].mxu0
        %4359 = vdwg.mxu0
        %v4360 = vadd.f32 %v4190, %v4318
        %v4361 = vadd.f32 %v4191, %v4321
        %v4362 = vadd.f32 %v4192, %v4328
        %v4363 = vadd.f32 %v4193, %v4333
        %v4364 = vadd.f32 %v4194, %v4340
        %v4365 = vadd.f32 %v4195, %v4343
        %v4366 = vadd.f32 %v4196, %v4350
        %v4367 = vadd.f32 %v4197, %v4355
        %s4368 = sadd.s32 %s3024, 57
        %s4369 = scalar_lea.vmem [#allocation3], %s4368
        %v4370 = vld [vmem:[%s4369] sm:$0xff]
        %v4371 = vld [vmem:[%s4369 + $0x8] sm:$0xff]
        %v4372 = vld [vmem:[%s4369 + $0x10] sm:$0xff]
        %v4373 = vld [vmem:[%s4369 + $0x18] sm:$0xff]
        %v4374 = vld [vmem:[%s4369 + $0x20] sm:$0xff]
        %v4375 = vld [vmem:[%s4369 + $0x28] sm:$0xff]
        %v4376 = vld [vmem:[%s4369 + $0x30] sm:$0xff]
        %v4377 = vld [vmem:[%s4369 + $0x38] sm:$0xff]
        %v4378 = vld [vmem:[%s4369 + $0x40] sm:$0xff]
        %v4379 = vld [vmem:[%s4369 + $0x48] sm:$0xff]
        %v4380 = vld [vmem:[%s4369 + $0x50] sm:$0xff]
        %v4381 = vld [vmem:[%s4369 + $0x58] sm:$0xff]
        %v4382 = vpack.c.bf16 %v4371, %v4370
        %v4383 = vpack.c.bf16 %v4373, %v4372
        %v4384 = vpack.c.bf16 %v4375, %v4374
        %v4385 = vpack.c.bf16 %v4377, %v4376
        %v4386 = vpack.c.bf16 %v4379, %v4378
        %v4387 = vpack.c.bf16 %v4381, %v4380
        %s4388 = scalar_lea.vmem %s11, 512
        %v4389 = vld [vmem:[%s4388] sm:$0xf]
        %v4390 = vld [vmem:[%s4388 + $0x4] sm:$0xf]
        %v4391 = vld [vmem:[%s4388 + $0x8] sm:$0xf]
        %v4392 = vld [vmem:[%s4388 + $0xc] sm:$0xf]
        %v4393 = vld [vmem:[%s4388 + $0x10] sm:$0xf]
        %v4394 = vld [vmem:[%s4388 + $0x14] sm:$0xf]
        %v4395 = vld [vmem:[%s4388 + $0x18] sm:$0xf]
        %v4396 = vld [vmem:[%s4388 + $0x1c] sm:$0xf]
        %v4397 = vld [vmem:[%s4388 + $0x20] sm:$0xf]
        %v4398 = vld [vmem:[%s4388 + $0x24] sm:$0xf]
        %v4399 = vld [vmem:[%s4388 + $0x28] sm:$0xf]
        %v4400 = vld [vmem:[%s4388 + $0x2c] sm:$0xf]
        %v4401 = vld [vmem:[%s4388 + $0x30] sm:$0xf]
        %v4402 = vld [vmem:[%s4388 + $0x34] sm:$0xf]
        %v4403 = vld [vmem:[%s4388 + $0x38] sm:$0xf]
        %v4404 = vld [vmem:[%s4388 + $0x3c] sm:$0xf]
        %v4421 = vunpack.c.l.b16 %v4389
        %v4422 = vunpack.c.l.b16 %v4390
        %v4423 = vunpack.c.l.b16 %v4391
        %v4424 = vunpack.c.l.b16 %v4392
        %v4425 = vunpack.c.l.b16 %v4393
        %v4426 = vunpack.c.l.b16 %v4394
        %v4427 = vunpack.c.l.b16 %v4395
        %v4428 = vunpack.c.l.b16 %v4396
        %v4429 = vunpack.c.l.b16 %v4397
        %v4430 = vunpack.c.l.b16 %v4398
        %v4431 = vunpack.c.l.b16 %v4399
        %v4432 = vunpack.c.l.b16 %v4400
        %v4433 = vunpack.c.l.b16 %v4401
        %v4434 = vunpack.c.l.b16 %v4402
        %v4435 = vunpack.c.l.b16 %v4403
        %v4436 = vunpack.c.l.b16 %v4404
        %v4437 = vpack.c.b16 %v4422, %v4421
        %v4438 = vpack.c.b16 %v4424, %v4423
        %v4439 = vpack.c.b16 %v4426, %v4425
        %v4440 = vpack.c.b16 %v4428, %v4427
        %v4441 = vpack.c.b16 %v4430, %v4429
        %v4442 = vpack.c.b16 %v4432, %v4431
        %v4443 = vpack.c.b16 %v4434, %v4433
        %v4444 = vpack.c.b16 %v4436, %v4435
        %4453 = vmatprep.subr.bf16.mxu0 0
        %4454 = vmatpush1.bf16.msra.mxu0 %v4437
        %4455 = vmatprep.subr.bf16.mxu0 0
        %4456 = vmatpush1.bf16.msra.mxu0 %v4438
        %4457 = vmatprep.subr.bf16.mxu0 0
        %4458 = vmatpush1.bf16.msra.mxu0 %v4439
        %4459 = vmatprep.subr.bf16.mxu0 0
        %4460 = vmatpush1.bf16.msra.mxu0 %v4440
        %4461 = vmatprep.subr.bf16.mxu0 0
        %4462 = vmatpush1.bf16.msra.mxu0 %v4441
        %4463 = vmatprep.subr.bf16.mxu0 0
        %4464 = vmatpush1.bf16.msra.mxu0 %v4442
        %4465 = vmatprep.subr.bf16.mxu0 0
        %4466 = vmatpush1.bf16.msra.mxu0 %v4443
        %4467 = vmatprep.subr.bf16.mxu0 0
        %4468 = vmatpush1.bf16.msra.mxu0 %v4444
        %4469 = vmatprep.subr.bf16.mxu0 0
        %4470 = vmatpush1.bf16.msra.mxu0 0
        %4471 = vmatprep.subr.bf16.mxu0 0
        %4472 = vmatpush1.bf16.msra.mxu0 0
        %4473 = vmatprep.subr.bf16.mxu0 0
        %4474 = vmatpush1.bf16.msra.mxu0 0
        %4475 = vmatprep.subr.bf16.mxu0 0
        %4476 = vmatpush1.bf16.msra.mxu0 0
        %4477 = vmatprep.subr.bf16.mxu0 0
        %4478 = vmatpush1.bf16.msra.mxu0 0
        %4479 = vmatprep.subr.bf16.mxu0 0
        %4480 = vmatpush1.bf16.msra.mxu0 0
        %4481 = vmatprep.subr.bf16.mxu0 0
        %4482 = vmatpush1.bf16.msra.mxu0 0
        %4483 = vmatprep.subr.bf16.mxu0 0
        %4484 = vmatpush1.bf16.msra.mxu0 0
        %4485 = vmatprep.mubr.bf16.mxu0 0
        %4486 = vmatmul.mubr.bf16.gmra.mrb[0].mxu0 %v4382
        %v4487 = vpop.f32.mrb[0].mxu0
        %v4488 = vadd.f32 0.0, %v4487
        %v4489 = vpop.f32.mrb[0].mxu0
        %v4490 = vpop.f32.mrb[0].mxu0
        %v4491 = vadd.f32 0.0, %v4490
        %v4492 = vpop.f32.mrb[0].mxu0
        %4493 = vmatprep.mubr.bf16.mxu0 0
        %4494 = vmatmul.mubr.bf16.gmra.mrb[0].mxu0 %v4383
        %v4495 = vpop.f32.mrb[0].mxu0
        %v4496 = vpop.f32.mrb[0].mxu0
        %v4497 = vpop.f32.mrb[0].mxu0
        %v4498 = vadd.f32 0.0, %v4497
        %v4499 = vpop.f32.mrb[0].mxu0
        %4500 = vmatprep.mubr.bf16.mxu0 0
        %4501 = vmatmul.mubr.bf16.gmra.mrb[0].mxu0 %v4384
        %v4502 = vpop.f32.mrb[0].mxu0
        %v4503 = vadd.f32 0.0, %v4502
        %v4504 = vpop.f32.mrb[0].mxu0
        %v4505 = vpop.f32.mrb[0].mxu0
        %v4506 = vpop.f32.mrb[0].mxu0
        %4507 = vmatprep.mubr.bf16.mxu0 0
        %4508 = vmatmul.mubr.bf16.gmra.mrb[0].mxu0 %v4385
        %v4509 = vpop.f32.mrb[0].mxu0
        %v4510 = vadd.f32 0.0, %v4509
        %v4511 = vpop.f32.mrb[0].mxu0
        %v4512 = vpop.f32.mrb[0].mxu0
        %v4513 = vadd.f32 0.0, %v4512
        %v4514 = vpop.f32.mrb[0].mxu0
        %4515 = vmatprep.mubr.bf16.mxu0 0
        %4516 = vmatmul.mubr.bf16.gmra.mrb[0].mxu0 %v4386
        %v4517 = vpop.f32.mrb[0].mxu0
        %v4518 = vpop.f32.mrb[0].mxu0
        %v4519 = vpop.f32.mrb[0].mxu0
        %v4520 = vadd.f32 0.0, %v4519
        %v4521 = vpop.f32.mrb[0].mxu0
        %4522 = vmatprep.mubr.bf16.mxu0 0
        %4523 = vmatmul.mubr.bf16.gmra.mrb[0].mxu0 %v4387
        %v4524 = vpop.f32.mrb[0].mxu0
        %v4525 = vadd.f32 0.0, %v4524
        %v4526 = vpop.f32.mrb[0].mxu0
        %v4527 = vpop.f32.mrb[0].mxu0
        %v4528 = vpop.f32.mrb[0].mxu0
        %4529 = vdwg.mxu0
        %v4530 = vadd.f32 %v4360, %v4488
        %v4531 = vadd.f32 %v4361, %v4491
        %v4532 = vadd.f32 %v4362, %v4498
        %v4533 = vadd.f32 %v4363, %v4503
        %v4534 = vadd.f32 %v4364, %v4510
        %v4535 = vadd.f32 %v4365, %v4513
        %v4536 = vadd.f32 %v4366, %v4520
        %v4537 = vadd.f32 %v4367, %v4525
        %v4539 = vlaneseq
        %v4540 = vshrl.u32 %v4539, 7
        %v4541 = vsub.s32 0, %v4540
        %v4542 = vrot.slane %v3016, %v4541
        %v4544 = vadd.f32 %v4530, %v4542
        %v4545 = vadd.f32 %v4531, %v4542
        %v4546 = vadd.f32 %v4532, %v4542
        %v4547 = vadd.f32 %v4533, %v4542
        %v4548 = vadd.f32 %v4534, %v4542
        %v4549 = vadd.f32 %v4535, %v4542
        %v4550 = vadd.f32 %v4536, %v4542
        %v4551 = vadd.f32 %v4537, %v4542
        %s4552 = smul.u32 %s3019, 64
        %s4553 = scalar_lea.vmem %s492, %s4552
        %v4554 = vld [vmem:[%s4553] sm:$0xff]
        %v4555 = vld [vmem:[%s4553 + $0x8] sm:$0xff]
        %v4556 = vld [vmem:[%s4553 + $0x10] sm:$0xff]
        %v4557 = vld [vmem:[%s4553 + $0x18] sm:$0xff]
        %v4558 = vld [vmem:[%s4553 + $0x20] sm:$0xff]
        %v4559 = vld [vmem:[%s4553 + $0x28] sm:$0xff]
        %v4560 = vld [vmem:[%s4553 + $0x30] sm:$0xff]
        %v4561 = vld [vmem:[%s4553 + $0x38] sm:$0xff]
        %v4562 = vpack.c.bf16 %v4555, %v4554
        %v4563 = vpack.c.bf16 %v4557, %v4556
        %v4564 = vpack.c.bf16 %v4559, %v4558
        %v4565 = vpack.c.bf16 %v4561, %v4560
        %v4566 = vld [vmem:[%s13] sm:$0xf]
        %v4567 = vld [vmem:[%s13 + $0x4] sm:$0xf]
        %v4568 = vld [vmem:[%s13 + $0x8] sm:$0xf]
        %v4569 = vld [vmem:[%s13 + $0xc] sm:$0xf]
        %v4574 = vunpack.c.l.b16 %v4566
        %v4575 = vunpack.c.l.b16 %v4567
        %v4576 = vunpack.c.l.b16 %v4568
        %v4577 = vunpack.c.l.b16 %v4569
        %v4578 = vpack.c.b16 %v4575, %v4574
        %v4579 = vpack.c.b16 %v4577, %v4576
        %v4583 = vsel %vm501, %v4562, 0
        %v4586 = vsel %vm501, %v4563, 0
        %v4589 = vsel %vm501, %v4564, 0
        %v4592 = vsel %vm501, %v4565, 0
        %4594 = vmatprep.subr.bf16.mxu0 0
        %4595 = vmatpush1.bf16.msra.mxu0 %v4578
        %4596 = vmatprep.subr.bf16.mxu0 0
        %4597 = vmatpush1.bf16.msra.mxu0 %v4579
        %4598 = vmatprep.subr.bf16.mxu0 0
        %4599 = vmatpush1.bf16.msra.mxu0 0
        %4600 = vmatprep.subr.bf16.mxu0 0
        %4601 = vmatpush1.bf16.msra.mxu0 0
        %4602 = vmatprep.subr.bf16.mxu0 0
        %4603 = vmatpush1.bf16.msra.mxu0 0
        %4604 = vmatprep.subr.bf16.mxu0 0
        %4605 = vmatpush1.bf16.msra.mxu0 0
        %4606 = vmatprep.subr.bf16.mxu0 0
        %4607 = vmatpush1.bf16.msra.mxu0 0
        %4608 = vmatprep.subr.bf16.mxu0 0
        %4609 = vmatpush1.bf16.msra.mxu0 0
        %4610 = vmatprep.subr.bf16.mxu0 0
        %4611 = vmatpush1.bf16.msra.mxu0 0
        %4612 = vmatprep.subr.bf16.mxu0 0
        %4613 = vmatpush1.bf16.msra.mxu0 0
        %4614 = vmatprep.subr.bf16.mxu0 0
        %4615 = vmatpush1.bf16.msra.mxu0 0
        %4616 = vmatprep.subr.bf16.mxu0 0
        %4617 = vmatpush1.bf16.msra.mxu0 0
        %4618 = vmatprep.subr.bf16.mxu0 0
        %4619 = vmatpush1.bf16.msra.mxu0 0
        %4620 = vmatprep.subr.bf16.mxu0 0
        %4621 = vmatpush1.bf16.msra.mxu0 0
        %4622 = vmatprep.subr.bf16.mxu0 0
        %4623 = vmatpush1.bf16.msra.mxu0 0
        %4624 = vmatprep.subr.bf16.mxu0 0
        %4625 = vmatpush1.bf16.msra.mxu0 0
        %4626 = vmatprep.mubr.bf16.mxu0 0
        %4627 = vmatmul.mubr.bf16.gmra.mrb[0].mxu0 %v4583
        %v4628 = vpop.f32.mrb[0].mxu0
        %v4629 = vadd.f32 0.0, %v4628
        %v4630 = vpop.f32.mrb[0].mxu0
        %v4631 = vpop.f32.mrb[0].mxu0
        %v4632 = vadd.f32 0.0, %v4631
        %v4633 = vpop.f32.mrb[0].mxu0
        %4634 = vmatprep.mubr.bf16.mxu0 0
        %4635 = vmatmul.mubr.bf16.gmra.mrb[0].mxu0 %v4586
        %v4636 = vpop.f32.mrb[0].mxu0
        %v4637 = vadd.f32 0.0, %v4636
        %v4638 = vpop.f32.mrb[0].mxu0
        %v4639 = vpop.f32.mrb[0].mxu0
        %v4640 = vadd.f32 0.0, %v4639
        %v4641 = vpop.f32.mrb[0].mxu0
        %4642 = vmatprep.mubr.bf16.mxu0 0
        %4643 = vmatmul.mubr.bf16.gmra.mrb[0].mxu0 %v4589
        %v4644 = vpop.f32.mrb[0].mxu0
        %v4645 = vadd.f32 0.0, %v4644
        %v4646 = vpop.f32.mrb[0].mxu0
        %v4647 = vpop.f32.mrb[0].mxu0
        %v4648 = vadd.f32 0.0, %v4647
        %v4649 = vpop.f32.mrb[0].mxu0
        %4650 = vmatprep.mubr.bf16.mxu0 0
        %4651 = vmatmul.mubr.bf16.gmra.mrb[0].mxu0 %v4592
        %v4652 = vpop.f32.mrb[0].mxu0
        %v4653 = vadd.f32 0.0, %v4652
        %v4654 = vpop.f32.mrb[0].mxu0
        %v4655 = vpop.f32.mrb[0].mxu0
        %v4656 = vadd.f32 0.0, %v4655
        %v4657 = vpop.f32.mrb[0].mxu0
        %4658 = vdwg.mxu0
        %v4660 = vlaneseq
        %v4661 = vshrl.u32 %v4660, 7
        %v4662 = vsub.s32 0, %v4661
        %v4663 = vrot.slane %v3017, %v4662
        %4664 = vset.pattern.permute.xlu0 0
        %4665 = vperm.xlu0 %4664, %v4663
        %v4666 = vpop.permute.xlu0 %4665
        %v4668 = vmul.f32 %v4544, %v4666
        %v4669 = vmul.f32 %v4545, %v4666
        %v4670 = vadd.f32 %v4629, %v4668
        %v4671 = vadd.f32 %v4632, %v4669
        %s4672 = scalar_lea.vmem %s498, %s4552
        %4673 = vst [vmem:[%s4672] sm:$0xff] %v4670
        %4674 = vst [vmem:[%s4672 + $0x8] sm:$0xff] %v4671
        %v4675 = vmul.f32 %v4546, %v4666
        %v4676 = vmul.f32 %v4547, %v4666
        %v4677 = vadd.f32 %v4637, %v4675
        %v4678 = vadd.f32 %v4640, %v4676
        %s4679 = smul.u32 %s3019, 4
        %s4680 = sadd.s32 %s4679, 1
        %s4681 = smul.u32 %s4680, 16
        %s4682 = scalar_lea.vmem %s498, %s4681
        %4683 = vst [vmem:[%s4682] sm:$0xff] %v4677
        %4684 = vst [vmem:[%s4682 + $0x8] sm:$0xff] %v4678
        %v4685 = vmul.f32 %v4548, %v4666
        %v4686 = vmul.f32 %v4549, %v4666
        %v4687 = vadd.f32 %v4645, %v4685
        %v4688 = vadd.f32 %v4648, %v4686
        %s4689 = sadd.s32 %s4679, 2
        %s4690 = smul.u32 %s4689, 16
        %s4691 = scalar_lea.vmem %s498, %s4690
        %4692 = vst [vmem:[%s4691] sm:$0xff] %v4687
        %4693 = vst [vmem:[%s4691 + $0x8] sm:$0xff] %v4688
        %v4694 = vmul.f32 %v4550, %v4666
        %v4695 = vmul.f32 %v4551, %v4666
        %v4696 = vadd.f32 %v4653, %v4694
        %v4697 = vadd.f32 %v4656, %v4695
        %s4698 = sadd.s32 %s4679, 3
        %s4699 = smul.u32 %s4698, 16
        %s4700 = scalar_lea.vmem %s498, %s4699
        %4701 = vst [vmem:[%s4700] sm:$0xff] %v4696
        %4702 = vst [vmem:[%s4700 + $0x8] sm:$0xff] %v4697
      $region113: #{resnet_block_2d.1} parent=79 // loop_footer
        %s3023 = sadd.s32 1, %s3019
      $region114: #{resnet_block_2d.1} parent=79 // loop_footer_branch
        %3018 = sbr.rel target = $region110
      $region115: #{resnet_block_2d.1} parent=79 // loop_exit
        _
      %s4703 = smul.u32 32, %s28
      %p4704 = scmp.lt.s32.totalorder %s4703, 63
      %s4705 = scalar_select %p4704, %s4703, 63
      %s4706 = smul.addr %s4705, 8
      %s4707 = scalar_lea.vmem %s15, %s4706
      // Predicated region
      $region116: #{resnet_block_2d.1} parent=79 // pred_check
        %p4708 = pneg %p366
      $region117: #{resnet_block_2d.1} parent=79 // pred_check_branch
        %4710 = sbr.rel (%p4708) target = $region119
      $region118: #{resnet_block_2d.1} parent=79 // pred_region
        %s4711 = smul.u32 32, %s28
      $region119: #{resnet_block_2d.1} parent=79 // pred_fallthru
        _
    $region80: #{resnet_block_2d.1} parent=5 // pred_fallthru
      _
    %p4712 = scmp.le.s32.totalorder 2, %s23
    // Predicated region
    $region120: #{resnet_block_2d.1} parent=5 // pred_check
      %p4713 = pneg %p4712
    $region121: #{resnet_block_2d.1} parent=5 // pred_check_branch
      %4715 = sbr.rel (%p4713) target = $region123
    $region122: #{resnet_block_2d.1} parent=5 // pred_region
      %s4716 = ssub.s32 %s23, 2
      // Predicated region
      $region124: #{resnet_block_2d.1} parent=122 // pred_check
        %p4717 = pneg %p372
      $region125: #{resnet_block_2d.1} parent=122 // pred_check_branch
        %4719 = sbr.rel (%p4717) target = $region127
      $region126: #{resnet_block_2d.1} parent=122 // pred_region
        %s4720 = smul.u32 32, %s29
        %p4721 = scmp.lt.s32.totalorder %s4720, 63
        %s4722 = scalar_select %p4721, %s4720, 63
        %s4723 = smul.addr %s4722, 8
        %s4724 = scalar_lea.vmem %s15, %s4723
      $region127: #{resnet_block_2d.1} parent=122 // pred_fallthru
        _
    $region123: #{resnet_block_2d.1} parent=5 // pred_fallthru
      _
  $region6: #{resnet_block_2d.1} parent=0 // loop_footer
    %s27 = sadd.s32 1, %s23
  $region7: #{resnet_block_2d.1} parent=0 // loop_footer_branch
    %22 = sbr.rel target = $region3
  $region8: #{resnet_block_2d.1} parent=0 // loop_exit
    _

</llo_original>
